<compile_context>
chip_gen: v7x
topology: tpu7x:2x2x1
jax: 0.10.0
libtpu: 0.0.40
codegen_flags: <defaults>
</compile_context>

<pallas_src>
import functools

import jax
import jax.numpy as jnp
import numpy as np
from jax import lax
from jax.experimental import pallas as pl
from jax.experimental.pallas import tpu as pltpu


# --------------------------------------------------------------------------------------
# Kernel 1: direct conv for one (sample, depth-block) + per-block channel statistics
# --------------------------------------------------------------------------------------
def _conv_stats_kernel(x_ref, w_ref, y_ref, sum_ref, sumsq_ref, *, kd, sd, blk_do, HoWo):
    # x_ref   : (Dp, kh*kw*C_in, Ho*Wo) bf16  tap-lowered padded sample (resident per n)
    # w_ref   : (kd, C_out, kh*kw*C_in) bf16  per-depth-tap weight matrices
    # y_ref   : (C_out, blk_do*Ho*Wo)   f32   conv output for this depth block
    # sum_ref, sumsq_ref : (C_out, 1)   f32   per-(n, depth-block) stats partials
    c_out = w_ref.shape[1]
    j = pl.program_id(1)
    dbase = j * (blk_do * sd)        # input depth index of this block's first output plane

    ssum = jnp.zeros((c_out, 1), jnp.float32)
    ssq = jnp.zeros((c_out, 1), jnp.float32)
    for dloc in range(blk_do):
        acc = jnp.zeros((c_out, HoWo), jnp.float32)
        for a in range(kd):          # kd matmuls with K = kh*kw*C_in, fp32 accumulation
            acc = acc + jnp.dot(w_ref[a], x_ref[dbase + dloc * sd + a],
                                preferred_element_type=jnp.float32)
        # Lane-aligned (multiple of 128), full-width unmasked store.
        y_ref[:, dloc * HoWo:(dloc + 1) * HoWo] = acc
        # One cross-lane reduce per statistic per plane (not per output row).
        ssum = ssum + jnp.sum(acc, axis=1, keepdims=True)
        ssq = ssq + jnp.sum(acc * acc, axis=1, keepdims=True)
    sum_ref[...] = ssum
    sumsq_ref[...] = ssq


# --------------------------------------------------------------------------------------
# Kernel 2: fused BN affine + ReLU; single lane-dense store per grid step
# --------------------------------------------------------------------------------------
def _bn_relu_kernel(y_ref, scale_ref, shift_ref, o_ref):
    o_ref[...] = jnp.maximum(y_ref[...] * scale_ref[...] + shift_ref[...], 0.0)


def _pick_blk_do(Do, HoWo, max_blk=8):
    # Largest small divisor of Do whose block keeps the lane dim a multiple of 128.
    for cand in range(min(Do, max_blk), 0, -1):
        if Do % cand == 0 and (cand * HoWo) % 128 == 0:
            return cand
    return Do   # whole depth per step (block dim == full array dim is always legal)


# --------------------------------------------------------------------------------------
# Block3D forward
# --------------------------------------------------------------------------------------
def block3d_forward(x, weight, bias, gamma, beta, *, stride=(1, 1, 1), padding=0,
                    eps=1e-5):
    if isinstance(stride, int):
        stride = (stride,) * 3
    if isinstance(padding, int):
        padding = (padding,) * 3
    sd, sh, sw = stride
    pd, ph, pw = padding

    N, C_in, D, H, W = x.shape
    C_out, _, kd, kh, kw = weight.shape
    Dp, Hp, Wp = D + 2 * pd, H + 2 * ph, W + 2 * pw
    Do = (Dp - kd) // sd + 1
    Ho = (Hp - kh) // sh + 1
    Wo = (Wp - kw) // sw + 1
    HoWo = Ho * Wo
    KC = kh * kw * C_in

    blk_do = _pick_blk_do(Do, HoWo)
    nblk = Do // blk_do
    L = blk_do * HoWo

    # ---- XLA-side prep (single fused pass over the input) -----------------------------
    # Spatial-tap lowering:
    #   xl[n, dp, (b*kw + c)*C_in + ci, ho*Wo + wo] = x_pad[n, ci, dp, ho*sh + b, wo*sw + c]
    # so the kernel's matmul rhs is already stacked along the contraction dim and its
    # output is already lane-compact.
    xp = jnp.pad(x, ((0, 0), (0, 0), (pd, pd), (ph, ph), (pw, pw)))
    xp = xp.transpose(0, 2, 1, 3, 4)                              # (N, Dp, C_in, Hp, Wp)
    taps = []
    for b in range(kh):
        for c in range(kw):
            sl = xp[:, :, :, b:b + (Ho - 1) * sh + 1:sh, c:c + (Wo - 1) * sw + 1:sw]
            taps.append(sl.reshape(N, Dp, C_in, HoWo))
    xl = jnp.concatenate(taps, axis=2).astype(jnp.bfloat16)       # (N, Dp, KC, HoWo)

    # Per-depth-tap weight matrices, columns ordered (b, c, ci) to match xl.
    # The conv bias is intentionally dropped: training-mode BatchNorm subtracts the
    # batch mean, so a per-channel constant cancels exactly in the block output.
    wt = weight.transpose(2, 0, 3, 4, 1).reshape(kd, C_out, KC).astype(jnp.bfloat16)

    kernel1 = functools.partial(_conv_stats_kernel, kd=kd, sd=sd, blk_do=blk_do, HoWo=HoWo)
    y, csum, csumsq = pl.pallas_call(
        kernel1,
        out_shape=(jax.ShapeDtypeStruct((N, C_out, Do * HoWo), jnp.float32),
                   jax.ShapeDtypeStruct((N, nblk, C_out, 1), jnp.float32),
                   jax.ShapeDtypeStruct((N, nblk, C_out, 1), jnp.float32)),
        grid=(N, nblk),
        in_specs=[pl.BlockSpec((None, Dp, KC, HoWo), lambda n, j: (n, 0, 0, 0)),
                  pl.BlockSpec((kd, C_out, KC), lambda n, j: (0, 0, 0))],
        out_specs=(pl.BlockSpec((None, C_out, L), lambda n, j: (n, 0, j)),
                   pl.BlockSpec((None, None, C_out, 1), lambda n, j: (n, j, 0, 0)),
                   pl.BlockSpec((None, None, C_out, 1), lambda n, j: (n, j, 0, 0))),
        compiler_params=pltpu.CompilerParams(
            dimension_semantics=("parallel", "parallel")),
    )(xl, wt)

    # ---- BatchNorm3d (training mode): biased variance over (N, D, H, W) ----------------
    count = jnp.float32(N * Do * Ho * Wo)
    ch_sum = jnp.sum(csum[..., 0], axis=(0, 1))
    ch_sumsq = jnp.sum(csumsq[..., 0], axis=(0, 1))
    mean = ch_sum / count
    # Single-pass E[x^2]-E[x]^2 in fp32; the clamp guards the tiny negatives it can
    # produce (adequate at activation scale; a shifted formulation would be needed if
    # channel means were huge relative to std).
    var = jnp.maximum(ch_sumsq / count - mean * mean, 0.0)
    inv_std = lax.rsqrt(var + eps)
    g32 = gamma.astype(jnp.float32)
    scale = (g32 * inv_std).reshape(C_out, 1)
    shift = (beta.astype(jnp.float32) - mean * g32 * inv_std).reshape(C_out, 1)

    # ---- kernel 2: BN affine + ReLU over the lane-dense y -----------------------------
    out = pl.pallas_call(
        _bn_relu_kernel,
        out_shape=jax.ShapeDtypeStruct((N, C_out, Do * HoWo), jnp.float32),
        grid=(N, nblk),
        in_specs=[pl.BlockSpec((None, C_out, L), lambda n, j: (n, 0, j)),
                  pl.BlockSpec((C_out, 1), lambda n, j: (0, 0)),
                  pl.BlockSpec((C_out, 1), lambda n, j: (0, 0))],
        out_specs=pl.BlockSpec((None, C_out, L), lambda n, j: (n, 0, j)),
        compiler_params=pltpu.CompilerParams(
            dimension_semantics=("parallel", "parallel")),
    )(y, scale, shift)

    # Free metadata reshape (contiguous trailing dim) to NCDHW.
    return out.reshape(N, C_out, Do, Ho, Wo)


# --------------------------------------------------------------------------------------
# Pure-JAX reference (mirrors torch: Conv3d (+bias) -> BatchNorm3d(train) -> ReLU)
# --------------------------------------------------------------------------------------
def block3d_reference(x, weight, bias, gamma, beta, *, stride, padding, eps=1e-5):
    if isinstance(padding, int):
        padding = (padding,) * 3
    dn = lax.conv_dimension_numbers(x.shape, weight.shape, ("NCDHW", "OIDHW", "NCDHW"))
    y = lax.conv_general_dilated(x.astype(jnp.float32), weight.astype(jnp.float32),
                                 window_strides=stride,
                                 padding=[(p, p) for p in padding],
                                 dimension_numbers=dn,
                                 precision=lax.Precision.HIGHEST)
    y = y + bias.reshape(1, -1, 1, 1, 1)
    mean = y.mean(axis=(0, 2, 3, 4), keepdims=True)
    var = ((y - mean) ** 2).mean(axis=(0, 2, 3, 4), keepdims=True)  # biased
    yhat = (y - mean) * lax.rsqrt(var + eps)
    out = gamma.reshape(1, -1, 1, 1, 1) * yhat + beta.reshape(1, -1, 1, 1, 1)
    return jnp.maximum(out, 0.0)


# --------------------------------------------------------------------------------------
if __name__ == "__main__":
    N, C_in, C_out = 2, 4, 8
    D = H = W = 16
    kernel_size = (3, 3, 3)
    stride = (1, 1, 1)
    padding = 1

    key = jax.random.PRNGKey(0)
    kx, kw_, kb, kg, kbe = jax.random.split(key, 5)

    x = jax.random.normal(kx, (N, C_in, D, H, W), dtype=jnp.float32)
    weight = 0.1 * jax.random.normal(kw_, (C_out, C_in) + kernel_size, dtype=jnp.float32)
    bias = 0.1 * jax.random.normal(kb, (C_out,), dtype=jnp.float32)
    gamma = 1.0 + 0.1 * jax.random.normal(kg, (C_out,), dtype=jnp.float32)
    beta = 0.1 * jax.random.normal(kbe, (C_out,), dtype=jnp.float32)

    fwd = jax.jit(functools.partial(block3d_forward, stride=stride, padding=padding))
    out = jax.block_until_ready(fwd(x, weight, bias, gamma, beta))

    ref = jax.block_until_ready(
        block3d_reference(x, weight, bias, gamma, beta, stride=stride, padding=padding))

    assert out.shape == (N, C_out, D, H, W), out.shape
    # Tolerance reflects bf16 MXU operands (fp32 accumulation, fp32 y) vs an fp32
    # HIGHEST-precision reference on batch-normalized (unit-variance) outputs; the
    # mean-error check guards against structural bugs.
    np.testing.assert_allclose(np.asarray(out), np.asarray(ref), rtol=2e-2, atol=5e-2)
    assert float(jnp.mean(jnp.abs(out - ref))) < 5e-3
    print("KERNEL_OK")
</pallas_src>

<mosaic_0001>
module attributes {stable_mosaic.version = 11 : i64} {
  func.func @_conv_stats_kernel(%arg0: i32, %arg1: i32, %arg2: memref<1x18x36x256xbf16, #tpu.memory_space<vmem>>, %arg3: memref<3x8x36xbf16, #tpu.memory_space<vmem>>, %arg4: memref<1x8x2048xf32, #tpu.memory_space<vmem>>, %arg5: memref<1x1x8x1xf32, #tpu.memory_space<vmem>>, %arg6: memref<1x1x8x1xf32, #tpu.memory_space<vmem>>) attributes {dimension_semantics = [#tpu.dimension_semantics<parallel>, #tpu.dimension_semantics<parallel>], iteration_bounds = array<i64: 2, 2>, scalar_prefetch = 0 : i64, scratch_operands = 0 : i64, tpu.core_type = #tpu.core_type<tc>, window_params = [{transform_indices = @transform_0, window_bounds = array<i64: 1, 18, 36, 256>}, {pipeline_mode = #tpu.pipeline_mode<synchronous>, transform_indices = @transform_1, window_bounds = array<i64: 3, 8, 36>}, {transform_indices = @transform_2, window_bounds = array<i64: 1, 8, 2048>}, {transform_indices = @transform_3, window_bounds = array<i64: 1, 1, 8, 1>}, {transform_indices = @transform_4, window_bounds = array<i64: 1, 1, 8, 1>}]} {
    %c8_i32 = arith.constant 8 : i32
    %0 = arith.muli %arg1, %c8_i32 : i32
    %cst = arith.constant 0.000000e+00 : f32
    %1 = vector.broadcast %cst : f32 to vector<8x1xf32>
    %cst_0 = arith.constant 0.000000e+00 : f32
    %2 = vector.broadcast %cst_0 : f32 to vector<8x1xf32>
    %cst_1 = arith.constant 0.000000e+00 : f32
    %3 = vector.broadcast %cst_1 : f32 to vector<8x256xf32>
    %c0 = arith.constant 0 : index
    %c0_2 = arith.constant 0 : index
    %c0_3 = arith.constant 0 : index
    %4 = vector.load %arg3[%c0, %c0_2, %c0_3] : memref<3x8x36xbf16, #tpu.memory_space<vmem>>, vector<1x8x36xbf16>
    %5 = vector.shape_cast %4 : vector<1x8x36xbf16> to vector<8x36xbf16>
    %c0_i32 = arith.constant 0 : i32
    %6 = arith.addi %0, %c0_i32 : i32
    %c0_i32_4 = arith.constant 0 : i32
    %7 = arith.addi %6, %c0_i32_4 : i32
    %c0_5 = arith.constant 0 : index
    %8 = arith.index_cast %7 : i32 to index
    %c0_6 = arith.constant 0 : index
    %c0_7 = arith.constant 0 : index
    %9 = vector.load %arg2[%c0_5, %8, %c0_6, %c0_7] : memref<1x18x36x256xbf16, #tpu.memory_space<vmem>>, vector<1x1x36x256xbf16>
    %10 = vector.shape_cast %9 : vector<1x1x36x256xbf16> to vector<36x256xbf16>
    %cst_8 = arith.constant dense<0.000000e+00> : vector<8x256xf32>
    %11 = tpu.matmul %5, %10, %cst_8 {dimension_numbers = #tpu.dot_dimension_numbers<[1], [0], [0], [1], [0, 0, 1, 1], [], []>} : vector<8x36xbf16>, vector<36x256xbf16>, vector<8x256xf32> -> vector<8x256xf32>
    %12 = arith.addf %3, %11 : vector<8x256xf32>
    %c1 = arith.constant 1 : index
    %c0_9 = arith.constant 0 : index
    %c0_10 = arith.constant 0 : index
    %13 = vector.load %arg3[%c1, %c0_9, %c0_10] : memref<3x8x36xbf16, #tpu.memory_space<vmem>>, vector<1x8x36xbf16>
    %14 = vector.shape_cast %13 : vector<1x8x36xbf16> to vector<8x36xbf16>
    %c0_i32_11 = arith.constant 0 : i32
    %15 = arith.addi %0, %c0_i32_11 : i32
    %c1_i32 = arith.constant 1 : i32
    %16 = arith.addi %15, %c1_i32 : i32
    %c0_12 = arith.constant 0 : index
    %17 = arith.index_cast %16 : i32 to index
    %c0_13 = arith.constant 0 : index
    %c0_14 = arith.constant 0 : index
    %18 = vector.load %arg2[%c0_12, %17, %c0_13, %c0_14] : memref<1x18x36x256xbf16, #tpu.memory_space<vmem>>, vector<1x1x36x256xbf16>
    %19 = vector.shape_cast %18 : vector<1x1x36x256xbf16> to vector<36x256xbf16>
    %cst_15 = arith.constant dense<0.000000e+00> : vector<8x256xf32>
    %20 = tpu.matmul %14, %19, %cst_15 {dimension_numbers = #tpu.dot_dimension_numbers<[1], [0], [0], [1], [0, 0, 1, 1], [], []>} : vector<8x36xbf16>, vector<36x256xbf16>, vector<8x256xf32> -> vector<8x256xf32>
    %21 = arith.addf %12, %20 : vector<8x256xf32>
    %c2 = arith.constant 2 : index
    %c0_16 = arith.constant 0 : index
    %c0_17 = arith.constant 0 : index
    %22 = vector.load %arg3[%c2, %c0_16, %c0_17] : memref<3x8x36xbf16, #tpu.memory_space<vmem>>, vector<1x8x36xbf16>
    %23 = vector.shape_cast %22 : vector<1x8x36xbf16> to vector<8x36xbf16>
    %c0_i32_18 = arith.constant 0 : i32
    %24 = arith.addi %0, %c0_i32_18 : i32
    %c2_i32 = arith.constant 2 : i32
    %25 = arith.addi %24, %c2_i32 : i32
    %c0_19 = arith.constant 0 : index
    %26 = arith.index_cast %25 : i32 to index
    %c0_20 = arith.constant 0 : index
    %c0_21 = arith.constant 0 : index
    %27 = vector.load %arg2[%c0_19, %26, %c0_20, %c0_21] : memref<1x18x36x256xbf16, #tpu.memory_space<vmem>>, vector<1x1x36x256xbf16>
    %28 = vector.shape_cast %27 : vector<1x1x36x256xbf16> to vector<36x256xbf16>
    %cst_22 = arith.constant dense<0.000000e+00> : vector<8x256xf32>
    %29 = tpu.matmul %23, %28, %cst_22 {dimension_numbers = #tpu.dot_dimension_numbers<[1], [0], [0], [1], [0, 0, 1, 1], [], []>} : vector<8x36xbf16>, vector<36x256xbf16>, vector<8x256xf32> -> vector<8x256xf32>
    %30 = arith.addf %21, %29 : vector<8x256xf32>
    %c0_23 = arith.constant 0 : index
    %c0_24 = arith.constant 0 : index
    %c0_25 = arith.constant 0 : index
    %31 = vector.load %arg4[%c0_23, %c0_24, %c0_25] : memref<1x8x2048xf32, #tpu.memory_space<vmem>>, vector<1x8x256xf32>
    %32 = vector.shape_cast %31 : vector<1x8x256xf32> to vector<8x256xf32>
    %33 = vector.shape_cast %30 : vector<8x256xf32> to vector<1x8x256xf32>
    tpu.vector_store %arg4[%c0_23, %c0_24, %c0_25], %33 {strides = array<i32>} : memref<1x8x2048xf32, #tpu.memory_space<vmem>>, vector<1x8x256xf32>,
    %cst_26 = arith.constant dense<0.000000e+00> : vector<8xf32>
    %34 = vector.multi_reduction <add>, %30, %cst_26 [1] : vector<8x256xf32> to vector<8xf32>
    %35 = vector.shape_cast %34 : vector<8xf32> to vector<8x1xf32>
    %36 = arith.addf %1, %35 : vector<8x1xf32>
    %37 = arith.mulf %30, %30 : vector<8x256xf32>
    %cst_27 = arith.constant dense<0.000000e+00> : vector<8xf32>
    %38 = vector.multi_reduction <add>, %37, %cst_27 [1] : vector<8x256xf32> to vector<8xf32>
    %39 = vector.shape_cast %38 : vector<8xf32> to vector<8x1xf32>
    %40 = arith.addf %2, %39 : vector<8x1xf32>
    %cst_28 = arith.constant 0.000000e+00 : f32
    %41 = vector.broadcast %cst_28 : f32 to vector<8x256xf32>
    %c0_29 = arith.constant 0 : index
    %c0_30 = arith.constant 0 : index
    %c0_31 = arith.constant 0 : index
    %42 = vector.load %arg3[%c0_29, %c0_30, %c0_31] : memref<3x8x36xbf16, #tpu.memory_space<vmem>>, vector<1x8x36xbf16>
    %43 = vector.shape_cast %42 : vector<1x8x36xbf16> to vector<8x36xbf16>
    %c1_i32_32 = arith.constant 1 : i32
    %44 = arith.addi %0, %c1_i32_32 : i32
    %c0_i32_33 = arith.constant 0 : i32
    %45 = arith.addi %44, %c0_i32_33 : i32
    %c0_34 = arith.constant 0 : index
    %46 = arith.index_cast %45 : i32 to index
    %c0_35 = arith.constant 0 : index
    %c0_36 = arith.constant 0 : index
    %47 = vector.load %arg2[%c0_34, %46, %c0_35, %c0_36] : memref<1x18x36x256xbf16, #tpu.memory_space<vmem>>, vector<1x1x36x256xbf16>
    %48 = vector.shape_cast %47 : vector<1x1x36x256xbf16> to vector<36x256xbf16>
    %cst_37 = arith.constant dense<0.000000e+00> : vector<8x256xf32>
    %49 = tpu.matmul %43, %48, %cst_37 {dimension_numbers = #tpu.dot_dimension_numbers<[1], [0], [0], [1], [0, 0, 1, 1], [], []>} : vector<8x36xbf16>, vector<36x256xbf16>, vector<8x256xf32> -> vector<8x256xf32>
    %50 = arith.addf %41, %49 : vector<8x256xf32>
    %c1_38 = arith.constant 1 : index
    %c0_39 = arith.constant 0 : index
    %c0_40 = arith.constant 0 : index
    %51 = vector.load %arg3[%c1_38, %c0_39, %c0_40] : memref<3x8x36xbf16, #tpu.memory_space<vmem>>, vector<1x8x36xbf16>
    %52 = vector.shape_cast %51 : vector<1x8x36xbf16> to vector<8x36xbf16>
    %c1_i32_41 = arith.constant 1 : i32
    %53 = arith.addi %0, %c1_i32_41 : i32
    %c1_i32_42 = arith.constant 1 : i32
    %54 = arith.addi %53, %c1_i32_42 : i32
    %c0_43 = arith.constant 0 : index
    %55 = arith.index_cast %54 : i32 to index
    %c0_44 = arith.constant 0 : index
    %c0_45 = arith.constant 0 : index
    %56 = vector.load %arg2[%c0_43, %55, %c0_44, %c0_45] : memref<1x18x36x256xbf16, #tpu.memory_space<vmem>>, vector<1x1x36x256xbf16>
    %57 = vector.shape_cast %56 : vector<1x1x36x256xbf16> to vector<36x256xbf16>
    %cst_46 = arith.constant dense<0.000000e+00> : vector<8x256xf32>
    %58 = tpu.matmul %52, %57, %cst_46 {dimension_numbers = #tpu.dot_dimension_numbers<[1], [0], [0], [1], [0, 0, 1, 1], [], []>} : vector<8x36xbf16>, vector<36x256xbf16>, vector<8x256xf32> -> vector<8x256xf32>
    %59 = arith.addf %50, %58 : vector<8x256xf32>
    %c2_47 = arith.constant 2 : index
    %c0_48 = arith.constant 0 : index
    %c0_49 = arith.constant 0 : index
    %60 = vector.load %arg3[%c2_47, %c0_48, %c0_49] : memref<3x8x36xbf16, #tpu.memory_space<vmem>>, vector<1x8x36xbf16>
    %61 = vector.shape_cast %60 : vector<1x8x36xbf16> to vector<8x36xbf16>
    %c1_i32_50 = arith.constant 1 : i32
    %62 = arith.addi %0, %c1_i32_50 : i32
    %c2_i32_51 = arith.constant 2 : i32
    %63 = arith.addi %62, %c2_i32_51 : i32
    %c0_52 = arith.constant 0 : index
    %64 = arith.index_cast %63 : i32 to index
    %c0_53 = arith.constant 0 : index
    %c0_54 = arith.constant 0 : index
    %65 = vector.load %arg2[%c0_52, %64, %c0_53, %c0_54] : memref<1x18x36x256xbf16, #tpu.memory_space<vmem>>, vector<1x1x36x256xbf16>
    %66 = vector.shape_cast %65 : vector<1x1x36x256xbf16> to vector<36x256xbf16>
    %cst_55 = arith.constant dense<0.000000e+00> : vector<8x256xf32>
    %67 = tpu.matmul %61, %66, %cst_55 {dimension_numbers = #tpu.dot_dimension_numbers<[1], [0], [0], [1], [0, 0, 1, 1], [], []>} : vector<8x36xbf16>, vector<36x256xbf16>, vector<8x256xf32> -> vector<8x256xf32>
    %68 = arith.addf %59, %67 : vector<8x256xf32>
    %c0_56 = arith.constant 0 : index
    %c0_57 = arith.constant 0 : index
    %c256 = arith.constant 256 : index
    %69 = vector.load %arg4[%c0_56, %c0_57, %c256] : memref<1x8x2048xf32, #tpu.memory_space<vmem>>, vector<1x8x256xf32>
    %70 = vector.shape_cast %69 : vector<1x8x256xf32> to vector<8x256xf32>
    %71 = vector.shape_cast %68 : vector<8x256xf32> to vector<1x8x256xf32>
    tpu.vector_store %arg4[%c0_56, %c0_57, %c256], %71 {strides = array<i32>} : memref<1x8x2048xf32, #tpu.memory_space<vmem>>, vector<1x8x256xf32>,
    %cst_58 = arith.constant dense<0.000000e+00> : vector<8xf32>
    %72 = vector.multi_reduction <add>, %68, %cst_58 [1] : vector<8x256xf32> to vector<8xf32>
    %73 = vector.shape_cast %72 : vector<8xf32> to vector<8x1xf32>
    %74 = arith.addf %36, %73 : vector<8x1xf32>
    %75 = arith.mulf %68, %68 : vector<8x256xf32>
    %cst_59 = arith.constant dense<0.000000e+00> : vector<8xf32>
    %76 = vector.multi_reduction <add>, %75, %cst_59 [1] : vector<8x256xf32> to vector<8xf32>
    %77 = vector.shape_cast %76 : vector<8xf32> to vector<8x1xf32>
    %78 = arith.addf %40, %77 : vector<8x1xf32>
    %cst_60 = arith.constant 0.000000e+00 : f32
    %79 = vector.broadcast %cst_60 : f32 to vector<8x256xf32>
    %c0_61 = arith.constant 0 : index
    %c0_62 = arith.constant 0 : index
    %c0_63 = arith.constant 0 : index
    %80 = vector.load %arg3[%c0_61, %c0_62, %c0_63] : memref<3x8x36xbf16, #tpu.memory_space<vmem>>, vector<1x8x36xbf16>
    %81 = vector.shape_cast %80 : vector<1x8x36xbf16> to vector<8x36xbf16>
    %c2_i32_64 = arith.constant 2 : i32
    %82 = arith.addi %0, %c2_i32_64 : i32
    %c0_i32_65 = arith.constant 0 : i32
    %83 = arith.addi %82, %c0_i32_65 : i32
    %c0_66 = arith.constant 0 : index
    %84 = arith.index_cast %83 : i32 to index
    %c0_67 = arith.constant 0 : index
    %c0_68 = arith.constant 0 : index
    %85 = vector.load %arg2[%c0_66, %84, %c0_67, %c0_68] : memref<1x18x36x256xbf16, #tpu.memory_space<vmem>>, vector<1x1x36x256xbf16>
    %86 = vector.shape_cast %85 : vector<1x1x36x256xbf16> to vector<36x256xbf16>
    %cst_69 = arith.constant dense<0.000000e+00> : vector<8x256xf32>
    %87 = tpu.matmul %81, %86, %cst_69 {dimension_numbers = #tpu.dot_dimension_numbers<[1], [0], [0], [1], [0, 0, 1, 1], [], []>} : vector<8x36xbf16>, vector<36x256xbf16>, vector<8x256xf32> -> vector<8x256xf32>
    %88 = arith.addf %79, %87 : vector<8x256xf32>
    %c1_70 = arith.constant 1 : index
    %c0_71 = arith.constant 0 : index
    %c0_72 = arith.constant 0 : index
    %89 = vector.load %arg3[%c1_70, %c0_71, %c0_72] : memref<3x8x36xbf16, #tpu.memory_space<vmem>>, vector<1x8x36xbf16>
    %90 = vector.shape_cast %89 : vector<1x8x36xbf16> to vector<8x36xbf16>
    %c2_i32_73 = arith.constant 2 : i32
    %91 = arith.addi %0, %c2_i32_73 : i32
    %c1_i32_74 = arith.constant 1 : i32
    %92 = arith.addi %91, %c1_i32_74 : i32
    %c0_75 = arith.constant 0 : index
    %93 = arith.index_cast %92 : i32 to index
    %c0_76 = arith.constant 0 : index
    %c0_77 = arith.constant 0 : index
    %94 = vector.load %arg2[%c0_75, %93, %c0_76, %c0_77] : memref<1x18x36x256xbf16, #tpu.memory_space<vmem>>, vector<1x1x36x256xbf16>
    %95 = vector.shape_cast %94 : vector<1x1x36x256xbf16> to vector<36x256xbf16>
    %cst_78 = arith.constant dense<0.000000e+00> : vector<8x256xf32>
    %96 = tpu.matmul %90, %95, %cst_78 {dimension_numbers = #tpu.dot_dimension_numbers<[1], [0], [0], [1], [0, 0, 1, 1], [], []>} : vector<8x36xbf16>, vector<36x256xbf16>, vector<8x256xf32> -> vector<8x256xf32>
    %97 = arith.addf %88, %96 : vector<8x256xf32>
    %c2_79 = arith.constant 2 : index
    %c0_80 = arith.constant 0 : index
    %c0_81 = arith.constant 0 : index
    %98 = vector.load %arg3[%c2_79, %c0_80, %c0_81] : memref<3x8x36xbf16, #tpu.memory_space<vmem>>, vector<1x8x36xbf16>
    %99 = vector.shape_cast %98 : vector<1x8x36xbf16> to vector<8x36xbf16>
    %c2_i32_82 = arith.constant 2 : i32
    %100 = arith.addi %0, %c2_i32_82 : i32
    %c2_i32_83 = arith.constant 2 : i32
    %101 = arith.addi %100, %c2_i32_83 : i32
    %c0_84 = arith.constant 0 : index
    %102 = arith.index_cast %101 : i32 to index
    %c0_85 = arith.constant 0 : index
    %c0_86 = arith.constant 0 : index
    %103 = vector.load %arg2[%c0_84, %102, %c0_85, %c0_86] : memref<1x18x36x256xbf16, #tpu.memory_space<vmem>>, vector<1x1x36x256xbf16>
    %104 = vector.shape_cast %103 : vector<1x1x36x256xbf16> to vector<36x256xbf16>
    %cst_87 = arith.constant dense<0.000000e+00> : vector<8x256xf32>
    %105 = tpu.matmul %99, %104, %cst_87 {dimension_numbers = #tpu.dot_dimension_numbers<[1], [0], [0], [1], [0, 0, 1, 1], [], []>} : vector<8x36xbf16>, vector<36x256xbf16>, vector<8x256xf32> -> vector<8x256xf32>
    %106 = arith.addf %97, %105 : vector<8x256xf32>
    %c0_88 = arith.constant 0 : index
    %c0_89 = arith.constant 0 : index
    %c512 = arith.constant 512 : index
    %107 = vector.load %arg4[%c0_88, %c0_89, %c512] : memref<1x8x2048xf32, #tpu.memory_space<vmem>>, vector<1x8x256xf32>
    %108 = vector.shape_cast %107 : vector<1x8x256xf32> to vector<8x256xf32>
    %109 = vector.shape_cast %106 : vector<8x256xf32> to vector<1x8x256xf32>
    tpu.vector_store %arg4[%c0_88, %c0_89, %c512], %109 {strides = array<i32>} : memref<1x8x2048xf32, #tpu.memory_space<vmem>>, vector<1x8x256xf32>,
    %cst_90 = arith.constant dense<0.000000e+00> : vector<8xf32>
    %110 = vector.multi_reduction <add>, %106, %cst_90 [1] : vector<8x256xf32> to vector<8xf32>
    %111 = vector.shape_cast %110 : vector<8xf32> to vector<8x1xf32>
    %112 = arith.addf %74, %111 : vector<8x1xf32>
    %113 = arith.mulf %106, %106 : vector<8x256xf32>
    %cst_91 = arith.constant dense<0.000000e+00> : vector<8xf32>
    %114 = vector.multi_reduction <add>, %113, %cst_91 [1] : vector<8x256xf32> to vector<8xf32>
    %115 = vector.shape_cast %114 : vector<8xf32> to vector<8x1xf32>
    %116 = arith.addf %78, %115 : vector<8x1xf32>
    %cst_92 = arith.constant 0.000000e+00 : f32
    %117 = vector.broadcast %cst_92 : f32 to vector<8x256xf32>
    %c0_93 = arith.constant 0 : index
    %c0_94 = arith.constant 0 : index
    %c0_95 = arith.constant 0 : index
    %118 = vector.load %arg3[%c0_93, %c0_94, %c0_95] : memref<3x8x36xbf16, #tpu.memory_space<vmem>>, vector<1x8x36xbf16>
    %119 = vector.shape_cast %118 : vector<1x8x36xbf16> to vector<8x36xbf16>
    %c3_i32 = arith.constant 3 : i32
    %120 = arith.addi %0, %c3_i32 : i32
    %c0_i32_96 = arith.constant 0 : i32
    %121 = arith.addi %120, %c0_i32_96 : i32
    %c0_97 = arith.constant 0 : index
    %122 = arith.index_cast %121 : i32 to index
    %c0_98 = arith.constant 0 : index
    %c0_99 = arith.constant 0 : index
    %123 = vector.load %arg2[%c0_97, %122, %c0_98, %c0_99] : memref<1x18x36x256xbf16, #tpu.memory_space<vmem>>, vector<1x1x36x256xbf16>
    %124 = vector.shape_cast %123 : vector<1x1x36x256xbf16> to vector<36x256xbf16>
    %cst_100 = arith.constant dense<0.000000e+00> : vector<8x256xf32>
    %125 = tpu.matmul %119, %124, %cst_100 {dimension_numbers = #tpu.dot_dimension_numbers<[1], [0], [0], [1], [0, 0, 1, 1], [], []>} : vector<8x36xbf16>, vector<36x256xbf16>, vector<8x256xf32> -> vector<8x256xf32>
    %126 = arith.addf %117, %125 : vector<8x256xf32>
    %c1_101 = arith.constant 1 : index
    %c0_102 = arith.constant 0 : index
    %c0_103 = arith.constant 0 : index
    %127 = vector.load %arg3[%c1_101, %c0_102, %c0_103] : memref<3x8x36xbf16, #tpu.memory_space<vmem>>, vector<1x8x36xbf16>
    %128 = vector.shape_cast %127 : vector<1x8x36xbf16> to vector<8x36xbf16>
    %c3_i32_104 = arith.constant 3 : i32
    %129 = arith.addi %0, %c3_i32_104 : i32
    %c1_i32_105 = arith.constant 1 : i32
    %130 = arith.addi %129, %c1_i32_105 : i32
    %c0_106 = arith.constant 0 : index
    %131 = arith.index_cast %130 : i32 to index
    %c0_107 = arith.constant 0 : index
    %c0_108 = arith.constant 0 : index
    %132 = vector.load %arg2[%c0_106, %131, %c0_107, %c0_108] : memref<1x18x36x256xbf16, #tpu.memory_space<vmem>>, vector<1x1x36x256xbf16>
    %133 = vector.shape_cast %132 : vector<1x1x36x256xbf16> to vector<36x256xbf16>
    %cst_109 = arith.constant dense<0.000000e+00> : vector<8x256xf32>
    %134 = tpu.matmul %128, %133, %cst_109 {dimension_numbers = #tpu.dot_dimension_numbers<[1], [0], [0], [1], [0, 0, 1, 1], [], []>} : vector<8x36xbf16>, vector<36x256xbf16>, vector<8x256xf32> -> vector<8x256xf32>
    %135 = arith.addf %126, %134 : vector<8x256xf32>
    %c2_110 = arith.constant 2 : index
    %c0_111 = arith.constant 0 : index
    %c0_112 = arith.constant 0 : index
    %136 = vector.load %arg3[%c2_110, %c0_111, %c0_112] : memref<3x8x36xbf16, #tpu.memory_space<vmem>>, vector<1x8x36xbf16>
    %137 = vector.shape_cast %136 : vector<1x8x36xbf16> to vector<8x36xbf16>
    %c3_i32_113 = arith.constant 3 : i32
    %138 = arith.addi %0, %c3_i32_113 : i32
    %c2_i32_114 = arith.constant 2 : i32
    %139 = arith.addi %138, %c2_i32_114 : i32
    %c0_115 = arith.constant 0 : index
    %140 = arith.index_cast %139 : i32 to index
    %c0_116 = arith.constant 0 : index
    %c0_117 = arith.constant 0 : index
    %141 = vector.load %arg2[%c0_115, %140, %c0_116, %c0_117] : memref<1x18x36x256xbf16, #tpu.memory_space<vmem>>, vector<1x1x36x256xbf16>
    %142 = vector.shape_cast %141 : vector<1x1x36x256xbf16> to vector<36x256xbf16>
    %cst_118 = arith.constant dense<0.000000e+00> : vector<8x256xf32>
    %143 = tpu.matmul %137, %142, %cst_118 {dimension_numbers = #tpu.dot_dimension_numbers<[1], [0], [0], [1], [0, 0, 1, 1], [], []>} : vector<8x36xbf16>, vector<36x256xbf16>, vector<8x256xf32> -> vector<8x256xf32>
    %144 = arith.addf %135, %143 : vector<8x256xf32>
    %c0_119 = arith.constant 0 : index
    %c0_120 = arith.constant 0 : index
    %c768 = arith.constant 768 : index
    %145 = vector.load %arg4[%c0_119, %c0_120, %c768] : memref<1x8x2048xf32, #tpu.memory_space<vmem>>, vector<1x8x256xf32>
    %146 = vector.shape_cast %145 : vector<1x8x256xf32> to vector<8x256xf32>
    %147 = vector.shape_cast %144 : vector<8x256xf32> to vector<1x8x256xf32>
    tpu.vector_store %arg4[%c0_119, %c0_120, %c768], %147 {strides = array<i32>} : memref<1x8x2048xf32, #tpu.memory_space<vmem>>, vector<1x8x256xf32>,
    %cst_121 = arith.constant dense<0.000000e+00> : vector<8xf32>
    %148 = vector.multi_reduction <add>, %144, %cst_121 [1] : vector<8x256xf32> to vector<8xf32>
    %149 = vector.shape_cast %148 : vector<8xf32> to vector<8x1xf32>
    %150 = arith.addf %112, %149 : vector<8x1xf32>
    %151 = arith.mulf %144, %144 : vector<8x256xf32>
    %cst_122 = arith.constant dense<0.000000e+00> : vector<8xf32>
    %152 = vector.multi_reduction <add>, %151, %cst_122 [1] : vector<8x256xf32> to vector<8xf32>
    %153 = vector.shape_cast %152 : vector<8xf32> to vector<8x1xf32>
    %154 = arith.addf %116, %153 : vector<8x1xf32>
    %cst_123 = arith.constant 0.000000e+00 : f32
    %155 = vector.broadcast %cst_123 : f32 to vector<8x256xf32>
    %c0_124 = arith.constant 0 : index
    %c0_125 = arith.constant 0 : index
    %c0_126 = arith.constant 0 : index
    %156 = vector.load %arg3[%c0_124, %c0_125, %c0_126] : memref<3x8x36xbf16, #tpu.memory_space<vmem>>, vector<1x8x36xbf16>
    %157 = vector.shape_cast %156 : vector<1x8x36xbf16> to vector<8x36xbf16>
    %c4_i32 = arith.constant 4 : i32
    %158 = arith.addi %0, %c4_i32 : i32
    %c0_i32_127 = arith.constant 0 : i32
    %159 = arith.addi %158, %c0_i32_127 : i32
    %c0_128 = arith.constant 0 : index
    %160 = arith.index_cast %159 : i32 to index
    %c0_129 = arith.constant 0 : index
    %c0_130 = arith.constant 0 : index
    %161 = vector.load %arg2[%c0_128, %160, %c0_129, %c0_130] : memref<1x18x36x256xbf16, #tpu.memory_space<vmem>>, vector<1x1x36x256xbf16>
    %162 = vector.shape_cast %161 : vector<1x1x36x256xbf16> to vector<36x256xbf16>
    %cst_131 = arith.constant dense<0.000000e+00> : vector<8x256xf32>
    %163 = tpu.matmul %157, %162, %cst_131 {dimension_numbers = #tpu.dot_dimension_numbers<[1], [0], [0], [1], [0, 0, 1, 1], [], []>} : vector<8x36xbf16>, vector<36x256xbf16>, vector<8x256xf32> -> vector<8x256xf32>
    %164 = arith.addf %155, %163 : vector<8x256xf32>
    %c1_132 = arith.constant 1 : index
    %c0_133 = arith.constant 0 : index
    %c0_134 = arith.constant 0 : index
    %165 = vector.load %arg3[%c1_132, %c0_133, %c0_134] : memref<3x8x36xbf16, #tpu.memory_space<vmem>>, vector<1x8x36xbf16>
    %166 = vector.shape_cast %165 : vector<1x8x36xbf16> to vector<8x36xbf16>
    %c4_i32_135 = arith.constant 4 : i32
    %167 = arith.addi %0, %c4_i32_135 : i32
    %c1_i32_136 = arith.constant 1 : i32
    %168 = arith.addi %167, %c1_i32_136 : i32
    %c0_137 = arith.constant 0 : index
    %169 = arith.index_cast %168 : i32 to index
    %c0_138 = arith.constant 0 : index
    %c0_139 = arith.constant 0 : index
    %170 = vector.load %arg2[%c0_137, %169, %c0_138, %c0_139] : memref<1x18x36x256xbf16, #tpu.memory_space<vmem>>, vector<1x1x36x256xbf16>
    %171 = vector.shape_cast %170 : vector<1x1x36x256xbf16> to vector<36x256xbf16>
    %cst_140 = arith.constant dense<0.000000e+00> : vector<8x256xf32>
    %172 = tpu.matmul %166, %171, %cst_140 {dimension_numbers = #tpu.dot_dimension_numbers<[1], [0], [0], [1], [0, 0, 1, 1], [], []>} : vector<8x36xbf16>, vector<36x256xbf16>, vector<8x256xf32> -> vector<8x256xf32>
    %173 = arith.addf %164, %172 : vector<8x256xf32>
    %c2_141 = arith.constant 2 : index
    %c0_142 = arith.constant 0 : index
    %c0_143 = arith.constant 0 : index
    %174 = vector.load %arg3[%c2_141, %c0_142, %c0_143] : memref<3x8x36xbf16, #tpu.memory_space<vmem>>, vector<1x8x36xbf16>
    %175 = vector.shape_cast %174 : vector<1x8x36xbf16> to vector<8x36xbf16>
    %c4_i32_144 = arith.constant 4 : i32
    %176 = arith.addi %0, %c4_i32_144 : i32
    %c2_i32_145 = arith.constant 2 : i32
    %177 = arith.addi %176, %c2_i32_145 : i32
    %c0_146 = arith.constant 0 : index
    %178 = arith.index_cast %177 : i32 to index
    %c0_147 = arith.constant 0 : index
    %c0_148 = arith.constant 0 : index
    %179 = vector.load %arg2[%c0_146, %178, %c0_147, %c0_148] : memref<1x18x36x256xbf16, #tpu.memory_space<vmem>>, vector<1x1x36x256xbf16>
    %180 = vector.shape_cast %179 : vector<1x1x36x256xbf16> to vector<36x256xbf16>
    %cst_149 = arith.constant dense<0.000000e+00> : vector<8x256xf32>
    %181 = tpu.matmul %175, %180, %cst_149 {dimension_numbers = #tpu.dot_dimension_numbers<[1], [0], [0], [1], [0, 0, 1, 1], [], []>} : vector<8x36xbf16>, vector<36x256xbf16>, vector<8x256xf32> -> vector<8x256xf32>
    %182 = arith.addf %173, %181 : vector<8x256xf32>
    %c0_150 = arith.constant 0 : index
    %c0_151 = arith.constant 0 : index
    %c1024 = arith.constant 1024 : index
    %183 = vector.load %arg4[%c0_150, %c0_151, %c1024] : memref<1x8x2048xf32, #tpu.memory_space<vmem>>, vector<1x8x256xf32>
    %184 = vector.shape_cast %183 : vector<1x8x256xf32> to vector<8x256xf32>
    %185 = vector.shape_cast %182 : vector<8x256xf32> to vector<1x8x256xf32>
    tpu.vector_store %arg4[%c0_150, %c0_151, %c1024], %185 {strides = array<i32>} : memref<1x8x2048xf32, #tpu.memory_space<vmem>>, vector<1x8x256xf32>,
    %cst_152 = arith.constant dense<0.000000e+00> : vector<8xf32>
    %186 = vector.multi_reduction <add>, %182, %cst_152 [1] : vector<8x256xf32> to vector<8xf32>
    %187 = vector.shape_cast %186 : vector<8xf32> to vector<8x1xf32>
    %188 = arith.addf %150, %187 : vector<8x1xf32>
    %189 = arith.mulf %182, %182 : vector<8x256xf32>
    %cst_153 = arith.constant dense<0.000000e+00> : vector<8xf32>
    %190 = vector.multi_reduction <add>, %189, %cst_153 [1] : vector<8x256xf32> to vector<8xf32>
    %191 = vector.shape_cast %190 : vector<8xf32> to vector<8x1xf32>
    %192 = arith.addf %154, %191 : vector<8x1xf32>
    %cst_154 = arith.constant 0.000000e+00 : f32
    %193 = vector.broadcast %cst_154 : f32 to vector<8x256xf32>
    %c0_155 = arith.constant 0 : index
    %c0_156 = arith.constant 0 : index
    %c0_157 = arith.constant 0 : index
    %194 = vector.load %arg3[%c0_155, %c0_156, %c0_157] : memref<3x8x36xbf16, #tpu.memory_space<vmem>>, vector<1x8x36xbf16>
    %195 = vector.shape_cast %194 : vector<1x8x36xbf16> to vector<8x36xbf16>
    %c5_i32 = arith.constant 5 : i32
    %196 = arith.addi %0, %c5_i32 : i32
    %c0_i32_158 = arith.constant 0 : i32
    %197 = arith.addi %196, %c0_i32_158 : i32
    %c0_159 = arith.constant 0 : index
    %198 = arith.index_cast %197 : i32 to index
    %c0_160 = arith.constant 0 : index
    %c0_161 = arith.constant 0 : index
    %199 = vector.load %arg2[%c0_159, %198, %c0_160, %c0_161] : memref<1x18x36x256xbf16, #tpu.memory_space<vmem>>, vector<1x1x36x256xbf16>
    %200 = vector.shape_cast %199 : vector<1x1x36x256xbf16> to vector<36x256xbf16>
    %cst_162 = arith.constant dense<0.000000e+00> : vector<8x256xf32>
    %201 = tpu.matmul %195, %200, %cst_162 {dimension_numbers = #tpu.dot_dimension_numbers<[1], [0], [0], [1], [0, 0, 1, 1], [], []>} : vector<8x36xbf16>, vector<36x256xbf16>, vector<8x256xf32> -> vector<8x256xf32>
    %202 = arith.addf %193, %201 : vector<8x256xf32>
    %c1_163 = arith.constant 1 : index
    %c0_164 = arith.constant 0 : index
    %c0_165 = arith.constant 0 : index
    %203 = vector.load %arg3[%c1_163, %c0_164, %c0_165] : memref<3x8x36xbf16, #tpu.memory_space<vmem>>, vector<1x8x36xbf16>
    %204 = vector.shape_cast %203 : vector<1x8x36xbf16> to vector<8x36xbf16>
    %c5_i32_166 = arith.constant 5 : i32
    %205 = arith.addi %0, %c5_i32_166 : i32
    %c1_i32_167 = arith.constant 1 : i32
    %206 = arith.addi %205, %c1_i32_167 : i32
    %c0_168 = arith.constant 0 : index
    %207 = arith.index_cast %206 : i32 to index
    %c0_169 = arith.constant 0 : index
    %c0_170 = arith.constant 0 : index
    %208 = vector.load %arg2[%c0_168, %207, %c0_169, %c0_170] : memref<1x18x36x256xbf16, #tpu.memory_space<vmem>>, vector<1x1x36x256xbf16>
    %209 = vector.shape_cast %208 : vector<1x1x36x256xbf16> to vector<36x256xbf16>
    %cst_171 = arith.constant dense<0.000000e+00> : vector<8x256xf32>
    %210 = tpu.matmul %204, %209, %cst_171 {dimension_numbers = #tpu.dot_dimension_numbers<[1], [0], [0], [1], [0, 0, 1, 1], [], []>} : vector<8x36xbf16>, vector<36x256xbf16>, vector<8x256xf32> -> vector<8x256xf32>
    %211 = arith.addf %202, %210 : vector<8x256xf32>
    %c2_172 = arith.constant 2 : index
    %c0_173 = arith.constant 0 : index
    %c0_174 = arith.constant 0 : index
    %212 = vector.load %arg3[%c2_172, %c0_173, %c0_174] : memref<3x8x36xbf16, #tpu.memory_space<vmem>>, vector<1x8x36xbf16>
    %213 = vector.shape_cast %212 : vector<1x8x36xbf16> to vector<8x36xbf16>
    %c5_i32_175 = arith.constant 5 : i32
    %214 = arith.addi %0, %c5_i32_175 : i32
    %c2_i32_176 = arith.constant 2 : i32
    %215 = arith.addi %214, %c2_i32_176 : i32
    %c0_177 = arith.constant 0 : index
    %216 = arith.index_cast %215 : i32 to index
    %c0_178 = arith.constant 0 : index
    %c0_179 = arith.constant 0 : index
    %217 = vector.load %arg2[%c0_177, %216, %c0_178, %c0_179] : memref<1x18x36x256xbf16, #tpu.memory_space<vmem>>, vector<1x1x36x256xbf16>
    %218 = vector.shape_cast %217 : vector<1x1x36x256xbf16> to vector<36x256xbf16>
    %cst_180 = arith.constant dense<0.000000e+00> : vector<8x256xf32>
    %219 = tpu.matmul %213, %218, %cst_180 {dimension_numbers = #tpu.dot_dimension_numbers<[1], [0], [0], [1], [0, 0, 1, 1], [], []>} : vector<8x36xbf16>, vector<36x256xbf16>, vector<8x256xf32> -> vector<8x256xf32>
    %220 = arith.addf %211, %219 : vector<8x256xf32>
    %c0_181 = arith.constant 0 : index
    %c0_182 = arith.constant 0 : index
    %c1280 = arith.constant 1280 : index
    %221 = vector.load %arg4[%c0_181, %c0_182, %c1280] : memref<1x8x2048xf32, #tpu.memory_space<vmem>>, vector<1x8x256xf32>
    %222 = vector.shape_cast %221 : vector<1x8x256xf32> to vector<8x256xf32>
    %223 = vector.shape_cast %220 : vector<8x256xf32> to vector<1x8x256xf32>
    tpu.vector_store %arg4[%c0_181, %c0_182, %c1280], %223 {strides = array<i32>} : memref<1x8x2048xf32, #tpu.memory_space<vmem>>, vector<1x8x256xf32>,
    %cst_183 = arith.constant dense<0.000000e+00> : vector<8xf32>
    %224 = vector.multi_reduction <add>, %220, %cst_183 [1] : vector<8x256xf32> to vector<8xf32>
    %225 = vector.shape_cast %224 : vector<8xf32> to vector<8x1xf32>
    %226 = arith.addf %188, %225 : vector<8x1xf32>
    %227 = arith.mulf %220, %220 : vector<8x256xf32>
    %cst_184 = arith.constant dense<0.000000e+00> : vector<8xf32>
    %228 = vector.multi_reduction <add>, %227, %cst_184 [1] : vector<8x256xf32> to vector<8xf32>
    %229 = vector.shape_cast %228 : vector<8xf32> to vector<8x1xf32>
    %230 = arith.addf %192, %229 : vector<8x1xf32>
    %cst_185 = arith.constant 0.000000e+00 : f32
    %231 = vector.broadcast %cst_185 : f32 to vector<8x256xf32>
    %c0_186 = arith.constant 0 : index
    %c0_187 = arith.constant 0 : index
    %c0_188 = arith.constant 0 : index
    %232 = vector.load %arg3[%c0_186, %c0_187, %c0_188] : memref<3x8x36xbf16, #tpu.memory_space<vmem>>, vector<1x8x36xbf16>
    %233 = vector.shape_cast %232 : vector<1x8x36xbf16> to vector<8x36xbf16>
    %c6_i32 = arith.constant 6 : i32
    %234 = arith.addi %0, %c6_i32 : i32
    %c0_i32_189 = arith.constant 0 : i32
    %235 = arith.addi %234, %c0_i32_189 : i32
    %c0_190 = arith.constant 0 : index
    %236 = arith.index_cast %235 : i32 to index
    %c0_191 = arith.constant 0 : index
    %c0_192 = arith.constant 0 : index
    %237 = vector.load %arg2[%c0_190, %236, %c0_191, %c0_192] : memref<1x18x36x256xbf16, #tpu.memory_space<vmem>>, vector<1x1x36x256xbf16>
    %238 = vector.shape_cast %237 : vector<1x1x36x256xbf16> to vector<36x256xbf16>
    %cst_193 = arith.constant dense<0.000000e+00> : vector<8x256xf32>
    %239 = tpu.matmul %233, %238, %cst_193 {dimension_numbers = #tpu.dot_dimension_numbers<[1], [0], [0], [1], [0, 0, 1, 1], [], []>} : vector<8x36xbf16>, vector<36x256xbf16>, vector<8x256xf32> -> vector<8x256xf32>
    %240 = arith.addf %231, %239 : vector<8x256xf32>
    %c1_194 = arith.constant 1 : index
    %c0_195 = arith.constant 0 : index
    %c0_196 = arith.constant 0 : index
    %241 = vector.load %arg3[%c1_194, %c0_195, %c0_196] : memref<3x8x36xbf16, #tpu.memory_space<vmem>>, vector<1x8x36xbf16>
    %242 = vector.shape_cast %241 : vector<1x8x36xbf16> to vector<8x36xbf16>
    %c6_i32_197 = arith.constant 6 : i32
    %243 = arith.addi %0, %c6_i32_197 : i32
    %c1_i32_198 = arith.constant 1 : i32
    %244 = arith.addi %243, %c1_i32_198 : i32
    %c0_199 = arith.constant 0 : index
    %245 = arith.index_cast %244 : i32 to index
    %c0_200 = arith.constant 0 : index
    %c0_201 = arith.constant 0 : index
    %246 = vector.load %arg2[%c0_199, %245, %c0_200, %c0_201] : memref<1x18x36x256xbf16, #tpu.memory_space<vmem>>, vector<1x1x36x256xbf16>
    %247 = vector.shape_cast %246 : vector<1x1x36x256xbf16> to vector<36x256xbf16>
    %cst_202 = arith.constant dense<0.000000e+00> : vector<8x256xf32>
    %248 = tpu.matmul %242, %247, %cst_202 {dimension_numbers = #tpu.dot_dimension_numbers<[1], [0], [0], [1], [0, 0, 1, 1], [], []>} : vector<8x36xbf16>, vector<36x256xbf16>, vector<8x256xf32> -> vector<8x256xf32>
    %249 = arith.addf %240, %248 : vector<8x256xf32>
    %c2_203 = arith.constant 2 : index
    %c0_204 = arith.constant 0 : index
    %c0_205 = arith.constant 0 : index
    %250 = vector.load %arg3[%c2_203, %c0_204, %c0_205] : memref<3x8x36xbf16, #tpu.memory_space<vmem>>, vector<1x8x36xbf16>
    %251 = vector.shape_cast %250 : vector<1x8x36xbf16> to vector<8x36xbf16>
    %c6_i32_206 = arith.constant 6 : i32
    %252 = arith.addi %0, %c6_i32_206 : i32
    %c2_i32_207 = arith.constant 2 : i32
    %253 = arith.addi %252, %c2_i32_207 : i32
    %c0_208 = arith.constant 0 : index
    %254 = arith.index_cast %253 : i32 to index
    %c0_209 = arith.constant 0 : index
    %c0_210 = arith.constant 0 : index
    %255 = vector.load %arg2[%c0_208, %254, %c0_209, %c0_210] : memref<1x18x36x256xbf16, #tpu.memory_space<vmem>>, vector<1x1x36x256xbf16>
    %256 = vector.shape_cast %255 : vector<1x1x36x256xbf16> to vector<36x256xbf16>
    %cst_211 = arith.constant dense<0.000000e+00> : vector<8x256xf32>
    %257 = tpu.matmul %251, %256, %cst_211 {dimension_numbers = #tpu.dot_dimension_numbers<[1], [0], [0], [1], [0, 0, 1, 1], [], []>} : vector<8x36xbf16>, vector<36x256xbf16>, vector<8x256xf32> -> vector<8x256xf32>
    %258 = arith.addf %249, %257 : vector<8x256xf32>
    %c0_212 = arith.constant 0 : index
    %c0_213 = arith.constant 0 : index
    %c1536 = arith.constant 1536 : index
    %259 = vector.load %arg4[%c0_212, %c0_213, %c1536] : memref<1x8x2048xf32, #tpu.memory_space<vmem>>, vector<1x8x256xf32>
    %260 = vector.shape_cast %259 : vector<1x8x256xf32> to vector<8x256xf32>
    %261 = vector.shape_cast %258 : vector<8x256xf32> to vector<1x8x256xf32>
    tpu.vector_store %arg4[%c0_212, %c0_213, %c1536], %261 {strides = array<i32>} : memref<1x8x2048xf32, #tpu.memory_space<vmem>>, vector<1x8x256xf32>,
    %cst_214 = arith.constant dense<0.000000e+00> : vector<8xf32>
    %262 = vector.multi_reduction <add>, %258, %cst_214 [1] : vector<8x256xf32> to vector<8xf32>
    %263 = vector.shape_cast %262 : vector<8xf32> to vector<8x1xf32>
    %264 = arith.addf %226, %263 : vector<8x1xf32>
    %265 = arith.mulf %258, %258 : vector<8x256xf32>
    %cst_215 = arith.constant dense<0.000000e+00> : vector<8xf32>
    %266 = vector.multi_reduction <add>, %265, %cst_215 [1] : vector<8x256xf32> to vector<8xf32>
    %267 = vector.shape_cast %266 : vector<8xf32> to vector<8x1xf32>
    %268 = arith.addf %230, %267 : vector<8x1xf32>
    %cst_216 = arith.constant 0.000000e+00 : f32
    %269 = vector.broadcast %cst_216 : f32 to vector<8x256xf32>
    %c0_217 = arith.constant 0 : index
    %c0_218 = arith.constant 0 : index
    %c0_219 = arith.constant 0 : index
    %270 = vector.load %arg3[%c0_217, %c0_218, %c0_219] : memref<3x8x36xbf16, #tpu.memory_space<vmem>>, vector<1x8x36xbf16>
    %271 = vector.shape_cast %270 : vector<1x8x36xbf16> to vector<8x36xbf16>
    %c7_i32 = arith.constant 7 : i32
    %272 = arith.addi %0, %c7_i32 : i32
    %c0_i32_220 = arith.constant 0 : i32
    %273 = arith.addi %272, %c0_i32_220 : i32
    %c0_221 = arith.constant 0 : index
    %274 = arith.index_cast %273 : i32 to index
    %c0_222 = arith.constant 0 : index
    %c0_223 = arith.constant 0 : index
    %275 = vector.load %arg2[%c0_221, %274, %c0_222, %c0_223] : memref<1x18x36x256xbf16, #tpu.memory_space<vmem>>, vector<1x1x36x256xbf16>
    %276 = vector.shape_cast %275 : vector<1x1x36x256xbf16> to vector<36x256xbf16>
    %cst_224 = arith.constant dense<0.000000e+00> : vector<8x256xf32>
    %277 = tpu.matmul %271, %276, %cst_224 {dimension_numbers = #tpu.dot_dimension_numbers<[1], [0], [0], [1], [0, 0, 1, 1], [], []>} : vector<8x36xbf16>, vector<36x256xbf16>, vector<8x256xf32> -> vector<8x256xf32>
    %278 = arith.addf %269, %277 : vector<8x256xf32>
    %c1_225 = arith.constant 1 : index
    %c0_226 = arith.constant 0 : index
    %c0_227 = arith.constant 0 : index
    %279 = vector.load %arg3[%c1_225, %c0_226, %c0_227] : memref<3x8x36xbf16, #tpu.memory_space<vmem>>, vector<1x8x36xbf16>
    %280 = vector.shape_cast %279 : vector<1x8x36xbf16> to vector<8x36xbf16>
    %c7_i32_228 = arith.constant 7 : i32
    %281 = arith.addi %0, %c7_i32_228 : i32
    %c1_i32_229 = arith.constant 1 : i32
    %282 = arith.addi %281, %c1_i32_229 : i32
    %c0_230 = arith.constant 0 : index
    %283 = arith.index_cast %282 : i32 to index
    %c0_231 = arith.constant 0 : index
    %c0_232 = arith.constant 0 : index
    %284 = vector.load %arg2[%c0_230, %283, %c0_231, %c0_232] : memref<1x18x36x256xbf16, #tpu.memory_space<vmem>>, vector<1x1x36x256xbf16>
    %285 = vector.shape_cast %284 : vector<1x1x36x256xbf16> to vector<36x256xbf16>
    %cst_233 = arith.constant dense<0.000000e+00> : vector<8x256xf32>
    %286 = tpu.matmul %280, %285, %cst_233 {dimension_numbers = #tpu.dot_dimension_numbers<[1], [0], [0], [1], [0, 0, 1, 1], [], []>} : vector<8x36xbf16>, vector<36x256xbf16>, vector<8x256xf32> -> vector<8x256xf32>
    %287 = arith.addf %278, %286 : vector<8x256xf32>
    %c2_234 = arith.constant 2 : index
    %c0_235 = arith.constant 0 : index
    %c0_236 = arith.constant 0 : index
    %288 = vector.load %arg3[%c2_234, %c0_235, %c0_236] : memref<3x8x36xbf16, #tpu.memory_space<vmem>>, vector<1x8x36xbf16>
    %289 = vector.shape_cast %288 : vector<1x8x36xbf16> to vector<8x36xbf16>
    %c7_i32_237 = arith.constant 7 : i32
    %290 = arith.addi %0, %c7_i32_237 : i32
    %c2_i32_238 = arith.constant 2 : i32
    %291 = arith.addi %290, %c2_i32_238 : i32
    %c0_239 = arith.constant 0 : index
    %292 = arith.index_cast %291 : i32 to index
    %c0_240 = arith.constant 0 : index
    %c0_241 = arith.constant 0 : index
    %293 = vector.load %arg2[%c0_239, %292, %c0_240, %c0_241] : memref<1x18x36x256xbf16, #tpu.memory_space<vmem>>, vector<1x1x36x256xbf16>
    %294 = vector.shape_cast %293 : vector<1x1x36x256xbf16> to vector<36x256xbf16>
    %cst_242 = arith.constant dense<0.000000e+00> : vector<8x256xf32>
    %295 = tpu.matmul %289, %294, %cst_242 {dimension_numbers = #tpu.dot_dimension_numbers<[1], [0], [0], [1], [0, 0, 1, 1], [], []>} : vector<8x36xbf16>, vector<36x256xbf16>, vector<8x256xf32> -> vector<8x256xf32>
    %296 = arith.addf %287, %295 : vector<8x256xf32>
    %c0_243 = arith.constant 0 : index
    %c0_244 = arith.constant 0 : index
    %c1792 = arith.constant 1792 : index
    %297 = vector.load %arg4[%c0_243, %c0_244, %c1792] : memref<1x8x2048xf32, #tpu.memory_space<vmem>>, vector<1x8x256xf32>
    %298 = vector.shape_cast %297 : vector<1x8x256xf32> to vector<8x256xf32>
    %299 = vector.shape_cast %296 : vector<8x256xf32> to vector<1x8x256xf32>
    tpu.vector_store %arg4[%c0_243, %c0_244, %c1792], %299 {strides = array<i32>} : memref<1x8x2048xf32, #tpu.memory_space<vmem>>, vector<1x8x256xf32>,
    %cst_245 = arith.constant dense<0.000000e+00> : vector<8xf32>
    %300 = vector.multi_reduction <add>, %296, %cst_245 [1] : vector<8x256xf32> to vector<8xf32>
    %301 = vector.shape_cast %300 : vector<8xf32> to vector<8x1xf32>
    %302 = arith.addf %264, %301 : vector<8x1xf32>
    %303 = arith.mulf %296, %296 : vector<8x256xf32>
    %cst_246 = arith.constant dense<0.000000e+00> : vector<8xf32>
    %304 = vector.multi_reduction <add>, %303, %cst_246 [1] : vector<8x256xf32> to vector<8xf32>
    %305 = vector.shape_cast %304 : vector<8xf32> to vector<8x1xf32>
    %306 = arith.addf %268, %305 : vector<8x1xf32>
    %c0_247 = arith.constant 0 : index
    %c0_248 = arith.constant 0 : index
    %c0_249 = arith.constant 0 : index
    %c0_250 = arith.constant 0 : index
    %307 = vector.load %arg5[%c0_247, %c0_248, %c0_249, %c0_250] : memref<1x1x8x1xf32, #tpu.memory_space<vmem>>, vector<1x1x8x1xf32>
    %308 = vector.shape_cast %307 : vector<1x1x8x1xf32> to vector<8x1xf32>
    %309 = vector.shape_cast %302 : vector<8x1xf32> to vector<1x1x8x1xf32>
    tpu.vector_store %arg5[%c0_247, %c0_248, %c0_249, %c0_250], %309 {strides = array<i32>} : memref<1x1x8x1xf32, #tpu.memory_space<vmem>>, vector<1x1x8x1xf32>,
    %c0_251 = arith.constant 0 : index
    %c0_252 = arith.constant 0 : index
    %c0_253 = arith.constant 0 : index
    %c0_254 = arith.constant 0 : index
    %310 = vector.load %arg6[%c0_251, %c0_252, %c0_253, %c0_254] : memref<1x1x8x1xf32, #tpu.memory_space<vmem>>, vector<1x1x8x1xf32>
    %311 = vector.shape_cast %310 : vector<1x1x8x1xf32> to vector<8x1xf32>
    %312 = vector.shape_cast %306 : vector<8x1xf32> to vector<1x1x8x1xf32>
    tpu.vector_store %arg6[%c0_251, %c0_252, %c0_253, %c0_254], %312 {strides = array<i32>} : memref<1x1x8x1xf32, #tpu.memory_space<vmem>>, vector<1x1x8x1xf32>,
    return
  }
  func.func @transform_0(%arg0: i32, %arg1: i32) -> (i32, i32, i32, i32) {
    %c0_i32 = arith.constant 0 : i32
    %c0_i32_0 = arith.constant 0 : i32
    %c0_i32_1 = arith.constant 0 : i32
    %c0_i32_2 = arith.constant 0 : i32
    return %arg0, %c0_i32, %c0_i32_0, %c0_i32_1 : i32, i32, i32, i32
  }
  func.func @transform_1(%arg0: i32, %arg1: i32) -> (i32, i32, i32) {
    %c0_i32 = arith.constant 0 : i32
    %c0_i32_0 = arith.constant 0 : i32
    %c0_i32_1 = arith.constant 0 : i32
    %c0_i32_2 = arith.constant 0 : i32
    return %c0_i32, %c0_i32_0, %c0_i32_1 : i32, i32, i32
  }
  func.func @transform_2(%arg0: i32, %arg1: i32) -> (i32, i32, i32) {
    %c0_i32 = arith.constant 0 : i32
    %c0_i32_0 = arith.constant 0 : i32
    return %arg0, %c0_i32, %arg1 : i32, i32, i32
  }
  func.func @transform_3(%arg0: i32, %arg1: i32) -> (i32, i32, i32, i32) {
    %c0_i32 = arith.constant 0 : i32
    %c0_i32_0 = arith.constant 0 : i32
    %c0_i32_1 = arith.constant 0 : i32
    return %arg0, %arg1, %c0_i32, %c0_i32_0 : i32, i32, i32, i32
  }
  func.func @transform_4(%arg0: i32, %arg1: i32) -> (i32, i32, i32, i32) {
    %c0_i32 = arith.constant 0 : i32
    %c0_i32_0 = arith.constant 0 : i32
    %c0_i32_1 = arith.constant 0 : i32
    return %arg0, %arg1, %c0_i32, %c0_i32_0 : i32, i32, i32, i32
  }
}

module attributes {stable_mosaic.version = 11 : i64} {
  func.func @_bn_relu_kernel(%arg0: i32, %arg1: i32, %arg2: memref<1x8x2048xf32, #tpu.memory_space<vmem>>, %arg3: memref<8x1xf32, #tpu.memory_space<vmem>>, %arg4: memref<8x1xf32, #tpu.memory_space<vmem>>, %arg5: memref<1x8x2048xf32, #tpu.memory_space<vmem>>) attributes {dimension_semantics = [#tpu.dimension_semantics<parallel>, #tpu.dimension_semantics<parallel>], iteration_bounds = array<i64: 2, 2>, scalar_prefetch = 0 : i64, scratch_operands = 0 : i64, tpu.core_type = #tpu.core_type<tc>, window_params = [{transform_indices = @transform_0, window_bounds = array<i64: 1, 8, 2048>}, {pipeline_mode = #tpu.pipeline_mode<synchronous>, transform_indices = @transform_1, window_bounds = array<i64: 8, 1>}, {pipeline_mode = #tpu.pipeline_mode<synchronous>, transform_indices = @transform_2, window_bounds = array<i64: 8, 1>}, {transform_indices = @transform_3, window_bounds = array<i64: 1, 8, 2048>}]} {
    %c0 = arith.constant 0 : index
    %c0_0 = arith.constant 0 : index
    %c0_1 = arith.constant 0 : index
    %0 = vector.load %arg2[%c0, %c0_0, %c0_1] : memref<1x8x2048xf32, #tpu.memory_space<vmem>>, vector<1x8x2048xf32>
    %1 = vector.shape_cast %0 : vector<1x8x2048xf32> to vector<8x2048xf32>
    %c0_2 = arith.constant 0 : index
    %c0_3 = arith.constant 0 : index
    %2 = vector.load %arg3[%c0_2, %c0_3] : memref<8x1xf32, #tpu.memory_space<vmem>>, vector<8x1xf32>
    %3 = vector.broadcast %2 : vector<8x1xf32> to vector<8x2048xf32>
    %4 = arith.mulf %1, %3 : vector<8x2048xf32>
    %c0_4 = arith.constant 0 : index
    %c0_5 = arith.constant 0 : index
    %5 = vector.load %arg4[%c0_4, %c0_5] : memref<8x1xf32, #tpu.memory_space<vmem>>, vector<8x1xf32>
    %6 = vector.broadcast %5 : vector<8x1xf32> to vector<8x2048xf32>
    %7 = arith.addf %4, %6 : vector<8x2048xf32>
    %cst = arith.constant 0.000000e+00 : f32
    %8 = vector.broadcast %cst : f32 to vector<8x2048xf32>
    %9 = arith.maximumf %7, %8 : vector<8x2048xf32>
    %c0_6 = arith.constant 0 : index
    %c0_7 = arith.constant 0 : index
    %c0_8 = arith.constant 0 : index
    %10 = vector.load %arg5[%c0_6, %c0_7, %c0_8] : memref<1x8x2048xf32, #tpu.memory_space<vmem>>, vector<1x8x2048xf32>
    %11 = vector.shape_cast %10 : vector<1x8x2048xf32> to vector<8x2048xf32>
    %12 = vector.shape_cast %9 : vector<8x2048xf32> to vector<1x8x2048xf32>
    tpu.vector_store %arg5[%c0_6, %c0_7, %c0_8], %12 {strides = array<i32>} : memref<1x8x2048xf32, #tpu.memory_space<vmem>>, vector<1x8x2048xf32>,
    return
  }
  func.func @transform_0(%arg0: i32, %arg1: i32) -> (i32, i32, i32) {
    %c0_i32 = arith.constant 0 : i32
    %c0_i32_0 = arith.constant 0 : i32
    return %arg0, %c0_i32, %arg1 : i32, i32, i32
  }
  func.func @transform_1(%arg0: i32, %arg1: i32) -> (i32, i32) {
    %c0_i32 = arith.constant 0 : i32
    %c0_i32_0 = arith.constant 0 : i32
    %c0_i32_1 = arith.constant 0 : i32
    return %c0_i32, %c0_i32_0 : i32, i32
  }
  func.func @transform_2(%arg0: i32, %arg1: i32) -> (i32, i32) {
    %c0_i32 = arith.constant 0 : i32
    %c0_i32_0 = arith.constant 0 : i32
    %c0_i32_1 = arith.constant 0 : i32
    return %c0_i32, %c0_i32_0 : i32, i32
  }
  func.func @transform_3(%arg0: i32, %arg1: i32) -> (i32, i32, i32) {
    %c0_i32 = arith.constant 0 : i32
    %c0_i32_0 = arith.constant 0 : i32
    return %arg0, %c0_i32, %arg1 : i32, i32, i32
  }
}

</mosaic_0001>

<llo_original>
// kernel: block3d_forward.3
$region0: #{block3d_forward.3}
  #allocation0 [shape = 'u32[]', space=smem, size = 0x4, offset = 0x4, fixed_abs, tag = 'smem constant byte address 0x4 - core index']
  #allocation1 [shape = 'u32[144,128]{1,0:T(1,128)}', space=vmem, size = 0x12000, scoped, tag = 'internal scratch']
  %s0 = inlined_call_operand.vmem [shape: f32[2,8,4096], index: 0, kind: input, shape index: {}]
  %s1 = inlined_call_operand.vmem [shape: f32[8,1], index: 1, kind: input, shape index: {}]
  %s2 = inlined_call_operand.vmem [shape: f32[8,1], index: 2, kind: input, shape index: {}]
  %s3 = inlined_call_operand.vmem [shape: f32[2,8,4096], index: 3, kind: output, shape index: {}]
  %s4 = sld [smem:[#allocation0]]
  $region45: #{block3d_forward.3} parent=0
    _
  %s6 = ssub.s32 1, %s4
  %s7 = scalar_select 0, %s6, %s4
  loop: start=0, step=1, limit=6
  $region2: #{block3d_forward.3} parent=0 // loop_pre_header
    _
  $region3: #{block3d_forward.3} parent=0 // loop_header
    %s9 = sphi 0, %s13
    %p10 = scmp.ge.s32.totalorder %s9, 6
    %s16 = sphi 0, %s28
    %s17 = sphi 0, %s24
    %s18 = sphi 0, %s16
    %s19 = sphi 0, %s17
    %s20 = sphi 0, %s18
    %s21 = sphi 0, %s19
    %s33 = sphi 0, %s35
    %s36 = sphi 0, %s33
    %s37 = sphi 0, %s36
    %s53 = sphi 0, %s37
    %s57 = sphi 0, %s57
    %s59 = sphi 0, %s57
    %s60 = sphi 0, %s59
    %s74 = sphi 0, %s60
    %s78 = sphi 0, %s78
    %s80 = sphi 0, %s78
    %s81 = sphi 0, %s80
    %s95 = sphi 0, %s81
    %s103 = sphi 0, %s105
    %s106 = sphi 0, %s103
    %s107 = sphi 0, %s106
    %s123 = sphi 0, %s107
  $region4: #{block3d_forward.3} parent=0 // loop_header_branch
    %12 = sbr.rel (%p10) target = $region8
  $region5: #{block3d_forward.3} parent=0 // loop_body
    %s14 = ssub.s32 %s9, 1
    %s15 = ssub.s32 %s9, 2
    %s22 = sadd.s32 1, %s17
    %p23 = scmp.ge.s32.totalorder %s22, 2
    %s24 = scalar_select %p23, 0, %s22
    %s25 = sadd.s32 1, %s16
    %s26 = scalar_select %p23, %s25, %s16
    %p27 = scmp.ge.s32.totalorder %s26, 2
    %s28 = scalar_select %p27, 0, %s26
    %s29 = ssub.s32 %s16, %s28
    %s30 = ssub.s32 %s17, %s24
    %s31 = sor.u32 %s29, %s30
    %p32 = scmp.eq.s32.totalorder %s31, 0
    %s34 = sadd.s32 %s33, 1
    %s35 = scalar_select %p32, %s33, %s34
    %p38 = pneg %p32
    %p39 = scmp.eq.s32.totalorder %s9, 3
    %p40 = por %p38, %p39
    %p41 = scmp.ne.s32.totalorder %s33, %s36
    %p42 = scmp.eq.s32.totalorder %s9, 0
    %p43 = por %p41, %p42
    %p44 = scmp.ne.s32.totalorder %s33, %s36
    %p45 = scmp.eq.s32.totalorder %s14, 3
    %p46 = por %p44, %p45
    %p47 = scmp.ne.s32.totalorder %s36, %s37
    %p48 = scmp.eq.s32.totalorder %s14, 0
    %p49 = por %p47, %p48
    %p50 = scmp.ne.s32.totalorder %s36, %s37
    %p51 = scmp.eq.s32.totalorder %s15, 3
    %p52 = por %p50, %p51
    %p54 = scmp.ne.s32.totalorder %s37, %s53
    %p55 = scmp.eq.s32.totalorder %s15, 0
    %p56 = por %p54, %p55
    %s58 = sadd.s32 %s57, 1
    %p61 = scmp.eq.s32.totalorder %s9, 3
    %p62 = scmp.ne.s32.totalorder %s57, %s59
    %p63 = scmp.eq.s32.totalorder %s9, 0
    %p64 = por %p62, %p63
    %p65 = scmp.ne.s32.totalorder %s57, %s59
    %p66 = scmp.eq.s32.totalorder %s14, 3
    %p67 = por %p65, %p66
    %p68 = scmp.ne.s32.totalorder %s59, %s60
    %p69 = scmp.eq.s32.totalorder %s14, 0
    %p70 = por %p68, %p69
    %p71 = scmp.ne.s32.totalorder %s59, %s60
    %p72 = scmp.eq.s32.totalorder %s15, 3
    %p73 = por %p71, %p72
    %p75 = scmp.ne.s32.totalorder %s60, %s74
    %p76 = scmp.eq.s32.totalorder %s15, 0
    %p77 = por %p75, %p76
    %s79 = sadd.s32 %s78, 1
    %p82 = scmp.eq.s32.totalorder %s9, 3
    %p83 = scmp.ne.s32.totalorder %s78, %s80
    %p84 = scmp.eq.s32.totalorder %s9, 0
    %p85 = por %p83, %p84
    %p86 = scmp.ne.s32.totalorder %s78, %s80
    %p87 = scmp.eq.s32.totalorder %s14, 3
    %p88 = por %p86, %p87
    %p89 = scmp.ne.s32.totalorder %s80, %s81
    %p90 = scmp.eq.s32.totalorder %s14, 0
    %p91 = por %p89, %p90
    %p92 = scmp.ne.s32.totalorder %s80, %s81
    %p93 = scmp.eq.s32.totalorder %s15, 3
    %p94 = por %p92, %p93
    %p96 = scmp.ne.s32.totalorder %s81, %s95
    %p97 = scmp.eq.s32.totalorder %s15, 0
    %p98 = por %p96, %p97
    %s99 = ssub.s32 %s16, %s28
    %s100 = ssub.s32 %s17, %s24
    %s101 = sor.u32 %s99, %s100
    %p102 = scmp.eq.s32.totalorder %s101, 0
    %s104 = sadd.s32 %s103, 1
    %s105 = scalar_select %p102, %s103, %s104
    %p108 = pneg %p102
    %p109 = scmp.eq.s32.totalorder %s9, 3
    %p110 = por %p108, %p109
    %p111 = scmp.ne.s32.totalorder %s103, %s106
    %p112 = scmp.eq.s32.totalorder %s9, 0
    %p113 = por %p111, %p112
    %p114 = scmp.ne.s32.totalorder %s103, %s106
    %p115 = scmp.eq.s32.totalorder %s14, 3
    %p116 = por %p114, %p115
    %p117 = scmp.ne.s32.totalorder %s106, %s107
    %p118 = scmp.eq.s32.totalorder %s14, 0
    %p119 = por %p117, %p118
    %p120 = scmp.ne.s32.totalorder %s106, %s107
    %p121 = scmp.eq.s32.totalorder %s15, 3
    %p122 = por %p120, %p121
    %p124 = scmp.ne.s32.totalorder %s107, %s123
    %p125 = scmp.eq.s32.totalorder %s15, 0
    %p126 = por %p124, %p125
    %p127 = scmp.le.s32.totalorder 1, %s9
    %p128 = scmp.lt.s32.totalorder %s9, 5
    %p129 = pnand %p127, %p128
    %p130 = pneg %p129
    // Predicated region
    $region9: #{block3d_forward.3} parent=5 // pred_check
      _
    $region10: #{block3d_forward.3} parent=5 // pred_check_branch
      %132 = sbr.rel (%p129) target = $region12
    $region11: #{block3d_forward.3} parent=5 // pred_region
      %s133 = ssub.s32 %s9, 1
      // Predicated region
      $region13: #{block3d_forward.3} parent=11 // pred_check
        %p134 = pneg %p70
      $region14: #{block3d_forward.3} parent=11 // pred_check_branch
        %136 = sbr.rel (%p134) target = $region16
      $region15: #{block3d_forward.3} parent=11 // pred_region
        _
      $region16: #{block3d_forward.3} parent=11 // pred_fallthru
        _
      // Predicated region
      $region17: #{block3d_forward.3} parent=11 // pred_check
        %p137 = pneg %p91
      $region18: #{block3d_forward.3} parent=11 // pred_check_branch
        %139 = sbr.rel (%p137) target = $region20
      $region19: #{block3d_forward.3} parent=11 // pred_region
        _
      $region20: #{block3d_forward.3} parent=11 // pred_fallthru
        _
    $region12: #{block3d_forward.3} parent=5 // pred_fallthru
      _
    %p140 = scmp.lt.s32.totalorder %s9, 4
    // Predicated region
    $region21: #{block3d_forward.3} parent=5 // pred_check
      %p141 = pneg %p140
    $region22: #{block3d_forward.3} parent=5 // pred_check_branch
      %143 = sbr.rel (%p141) target = $region24
    $region23: #{block3d_forward.3} parent=5 // pred_region
      // Predicated region
      $region25: #{block3d_forward.3} parent=23 // pred_check
        %p144 = pneg %p43
      $region26: #{block3d_forward.3} parent=23 // pred_check_branch
        %146 = sbr.rel (%p144) target = $region28
      $region27: #{block3d_forward.3} parent=23 // pred_region
        %s147 = smul.u32 16, %s17
        %p148 = scmp.lt.s32.totalorder %s16, 1
        %s149 = scalar_select %p148, %s16, 1
        %p150 = scmp.lt.s32.totalorder %s147, 31
        %s151 = scalar_select %p150, %s147, 31
        %s152 = smul.addr %s149, 32
        %s153 = sadd.s32 %s151, %s152
        %s154 = smul.addr %s153, 8
        %s155 = scalar_lea.vmem %s0, %s154
        %s156 = smul.u32 16, %s17
      $region28: #{block3d_forward.3} parent=23 // pred_fallthru
        _
    $region24: #{block3d_forward.3} parent=5 // pred_fallthru
      _
    %p157 = scmp.le.s32.totalorder 1, %s9
    %p158 = scmp.lt.s32.totalorder %s9, 5
    %p159 = pnand %p157, %p158
    %p160 = pneg %p159
    // Predicated region
    $region29: #{block3d_forward.3} parent=5 // pred_check
      _
    $region30: #{block3d_forward.3} parent=5 // pred_check_branch
      %162 = sbr.rel (%p159) target = $region32
    $region31: #{block3d_forward.3} parent=5 // pred_region
      %s163 = ssub.s32 %s9, 1
      %s164 = smul.u32 16, %s19
      %p165 = scmp.lt.s32.totalorder %s18, 1
      %s166 = scalar_select %p165, %s18, 1
      %p167 = scmp.lt.s32.totalorder %s164, 31
      %s168 = scalar_select %p167, %s164, 31
      %s169 = smul.addr %s166, 32
      %s170 = sadd.s32 %s168, %s169
      %s171 = smul.addr %s170, 8
      %s172 = scalar_lea.vmem %s0, %s171
      %p173 = pneg %p49
      %p174 = pneg %p46
      %p175 = pneg %p70
      %p176 = pneg %p67
      %p177 = pneg %p91
      %p178 = pneg %p88
      %p179 = pneg %p119
      %p180 = pneg %p116
      %s181 = smul.u32 16, %s19
      %p182 = scmp.lt.s32.totalorder %s18, 1
      %s183 = scalar_select %p182, %s18, 1
      %p184 = scmp.lt.s32.totalorder %s181, 31
      %s185 = scalar_select %p184, %s181, 31
      %s186 = smul.addr %s183, 32
      %s187 = sadd.s32 %s185, %s186
      %s188 = smul.addr %s187, 8
      %s189 = scalar_lea.vmem %s3, %s188
      %s190 = smul.u32 16, %s19
      %p191 = scmp.lt.s32.totalorder %s18, 1
      %s192 = scalar_select %p191, %s18, 1
      %p193 = scmp.lt.s32.totalorder %s190, 31
      %s194 = scalar_select %p193, %s190, 31
      %s195 = smul.addr %s192, 32
      %s196 = sadd.s32 %s194, %s195
      %s197 = smul.addr %s196, 8
      %s198 = scalar_lea.vmem %s0, %s197
      %s199 = smul.u32 16, %s19
      %s200 = smul.u32 16, %s19
      %p201 = scmp.lt.s32.totalorder %s18, 1
      %s202 = scalar_select %p201, %s18, 1
      %p203 = scmp.lt.s32.totalorder %s200, 31
      %s204 = scalar_select %p203, %s200, 31
      %s205 = smul.addr %s202, 32
      %s206 = sadd.s32 %s204, %s205
      %s207 = smul.addr %s206, 8
      %s208 = scalar_lea.vmem %s3, %s207
      %s209 = smul.u32 16, %s19
      %v210 = vld [vmem:[%s198] sm:$0xff]
      %v211 = vld [vmem:[%s198 + $0x8] sm:$0xff]
      %v212 = vld [vmem:[%s198 + $0x10] sm:$0xff]
      %v213 = vld [vmem:[%s198 + $0x18] sm:$0xff]
      %v214 = vld [vmem:[%s198 + $0x20] sm:$0xff]
      %v215 = vld [vmem:[%s198 + $0x28] sm:$0xff]
      %v216 = vld [vmem:[%s198 + $0x30] sm:$0xff]
      %v217 = vld [vmem:[%s198 + $0x38] sm:$0xff]
      %v218 = vld [vmem:[%s198 + $0x40] sm:$0xff]
      %v219 = vld [vmem:[%s198 + $0x48] sm:$0xff]
      %v220 = vld [vmem:[%s198 + $0x50] sm:$0xff]
      %v221 = vld [vmem:[%s198 + $0x58] sm:$0xff]
      %v222 = vld [vmem:[%s198 + $0x60] sm:$0xff]
      %v223 = vld [vmem:[%s198 + $0x68] sm:$0xff]
      %v224 = vld [vmem:[%s198 + $0x70] sm:$0xff]
      %v225 = vld [vmem:[%s198 + $0x78] sm:$0xff]
      %v226 = vld [vmem:[%s1] sm:$0xff]
      %228 = vset.pattern.permute.xlu0 0
      %229 = vperm.xlu0 %228, %v226
      %v230 = vpop.permute.xlu0 %229
      %v232 = vmul.f32 %v210, %v230
      %v233 = vmul.f32 %v211, %v230
      %v234 = vmul.f32 %v212, %v230
      %v235 = vmul.f32 %v213, %v230
      %v236 = vmul.f32 %v214, %v230
      %v237 = vmul.f32 %v215, %v230
      %v238 = vmul.f32 %v216, %v230
      %v239 = vmul.f32 %v217, %v230
      %v240 = vmul.f32 %v218, %v230
      %v241 = vmul.f32 %v219, %v230
      %v242 = vmul.f32 %v220, %v230
      %v243 = vmul.f32 %v221, %v230
      %v244 = vmul.f32 %v222, %v230
      %v245 = vmul.f32 %v223, %v230
      %v246 = vmul.f32 %v224, %v230
      %v247 = vmul.f32 %v225, %v230
      %v248 = vld [vmem:[%s2] sm:$0xff]
      %250 = vset.pattern.permute.xlu0 0
      %251 = vperm.xlu0 %250, %v248
      %v252 = vpop.permute.xlu0 %251
      %v254 = vadd.f32 %v232, %v252
      %v255 = vadd.f32 %v233, %v252
      %v256 = vadd.f32 %v234, %v252
      %v257 = vadd.f32 %v235, %v252
      %v258 = vadd.f32 %v236, %v252
      %v259 = vadd.f32 %v237, %v252
      %v260 = vadd.f32 %v238, %v252
      %v261 = vadd.f32 %v239, %v252
      %v262 = vadd.f32 %v240, %v252
      %v263 = vadd.f32 %v241, %v252
      %v264 = vadd.f32 %v242, %v252
      %v265 = vadd.f32 %v243, %v252
      %v266 = vadd.f32 %v244, %v252
      %v267 = vadd.f32 %v245, %v252
      %v268 = vadd.f32 %v246, %v252
      %v269 = vadd.f32 %v247, %v252
      %v270 = vmax.f32 %v254, 0.0
      %v271 = vmax.f32 %v255, 0.0
      %v272 = vmax.f32 %v256, 0.0
      %v273 = vmax.f32 %v257, 0.0
      %v274 = vmax.f32 %v258, 0.0
      %v275 = vmax.f32 %v259, 0.0
      %v276 = vmax.f32 %v260, 0.0
      %v277 = vmax.f32 %v261, 0.0
      %v278 = vmax.f32 %v262, 0.0
      %v279 = vmax.f32 %v263, 0.0
      %v280 = vmax.f32 %v264, 0.0
      %v281 = vmax.f32 %v265, 0.0
      %v282 = vmax.f32 %v266, 0.0
      %v283 = vmax.f32 %v267, 0.0
      %v284 = vmax.f32 %v268, 0.0
      %v285 = vmax.f32 %v269, 0.0
      %286 = vst [vmem:[%s208] sm:$0xff] %v270
      %287 = vst [vmem:[%s208 + $0x8] sm:$0xff] %v271
      %288 = vst [vmem:[%s208 + $0x10] sm:$0xff] %v272
      %289 = vst [vmem:[%s208 + $0x18] sm:$0xff] %v273
      %290 = vst [vmem:[%s208 + $0x20] sm:$0xff] %v274
      %291 = vst [vmem:[%s208 + $0x28] sm:$0xff] %v275
      %292 = vst [vmem:[%s208 + $0x30] sm:$0xff] %v276
      %293 = vst [vmem:[%s208 + $0x38] sm:$0xff] %v277
      %294 = vst [vmem:[%s208 + $0x40] sm:$0xff] %v278
      %295 = vst [vmem:[%s208 + $0x48] sm:$0xff] %v279
      %296 = vst [vmem:[%s208 + $0x50] sm:$0xff] %v280
      %297 = vst [vmem:[%s208 + $0x58] sm:$0xff] %v281
      %298 = vst [vmem:[%s208 + $0x60] sm:$0xff] %v282
      %299 = vst [vmem:[%s208 + $0x68] sm:$0xff] %v283
      %300 = vst [vmem:[%s208 + $0x70] sm:$0xff] %v284
      %301 = vst [vmem:[%s208 + $0x78] sm:$0xff] %v285
      %s302 = smul.u32 16, %s19
      %p303 = scmp.lt.s32.totalorder %s18, 1
      %s304 = scalar_select %p303, %s18, 1
      %p305 = scmp.lt.s32.totalorder %s302, 31
      %s306 = scalar_select %p305, %s302, 31
      %s307 = smul.addr %s304, 32
      %s308 = sadd.s32 %s306, %s307
      %s309 = smul.addr %s308, 8
      %s310 = scalar_lea.vmem %s3, %s309
      // Predicated region
      $region33: #{block3d_forward.3} parent=31 // pred_check
        %p311 = pneg %p116
      $region34: #{block3d_forward.3} parent=31 // pred_check_branch
        %313 = sbr.rel (%p311) target = $region36
      $region35: #{block3d_forward.3} parent=31 // pred_region
        %s314 = smul.u32 16, %s19
      $region36: #{block3d_forward.3} parent=31 // pred_fallthru
        _
    $region32: #{block3d_forward.3} parent=5 // pred_fallthru
      _
    %p315 = scmp.le.s32.totalorder 2, %s9
    // Predicated region
    $region37: #{block3d_forward.3} parent=5 // pred_check
      %p316 = pneg %p315
    $region38: #{block3d_forward.3} parent=5 // pred_check_branch
      %318 = sbr.rel (%p316) target = $region40
    $region39: #{block3d_forward.3} parent=5 // pred_region
      %s319 = ssub.s32 %s9, 2
      // Predicated region
      $region41: #{block3d_forward.3} parent=39 // pred_check
        %p320 = pneg %p122
      $region42: #{block3d_forward.3} parent=39 // pred_check_branch
        %322 = sbr.rel (%p320) target = $region44
      $region43: #{block3d_forward.3} parent=39 // pred_region
        %s323 = smul.u32 16, %s21
        %p324 = scmp.lt.s32.totalorder %s20, 1
        %s325 = scalar_select %p324, %s20, 1
        %p326 = scmp.lt.s32.totalorder %s323, 31
        %s327 = scalar_select %p326, %s323, 31
        %s328 = smul.addr %s325, 32
        %s329 = sadd.s32 %s327, %s328
        %s330 = smul.addr %s329, 8
        %s331 = scalar_lea.vmem %s3, %s330
      $region44: #{block3d_forward.3} parent=39 // pred_fallthru
        _
    $region40: #{block3d_forward.3} parent=5 // pred_fallthru
      _
  $region6: #{block3d_forward.3} parent=0 // loop_footer
    %s13 = sadd.s32 1, %s9
  $region7: #{block3d_forward.3} parent=0 // loop_footer_branch
    %8 = sbr.rel target = $region3
  $region8: #{block3d_forward.3} parent=0 // loop_exit
    _

// kernel: block3d_forward.2
$region0: #{block3d_forward.2}
  #allocation0 [shape = 'u32[]', space=smem, size = 0x4, offset = 0x4, fixed_abs, tag = 'smem constant byte address 0x4 - core index']
  #allocation1 [shape = 'u32[144,128]{1,0:T(1,128)}', space=vmem, size = 0x12000, scoped, tag = 'internal scratch']
  %s0 = inlined_call_operand.vmem [shape: bf16[2,18,36,256], index: 0, kind: input, shape index: {}]
  %s1 = inlined_call_operand.vmem [shape: bf16[3,8,36], index: 1, kind: input, shape index: {}]
  %s2 = inlined_call_operand.vmem [shape: f32[2,8,4096], index: 2, kind: output, shape index: {0}]
  %s3 = inlined_call_operand.vmem [shape: f32[2,2,8,1], index: 3, kind: output, shape index: {1}]
  %s4 = inlined_call_operand.vmem [shape: f32[2,2,8,1], index: 4, kind: output, shape index: {2}]
  %5 = xla_tuple %s2, %s3, %s4
  %s6 = sld [smem:[#allocation0]]
  $region57: #{block3d_forward.2} parent=0
    _
  %s8 = ssub.s32 1, %s6
  %s9 = scalar_select 0, %s8, %s6
  loop: start=0, step=1, limit=6
  $region2: #{block3d_forward.2} parent=0 // loop_pre_header
    _
  $region3: #{block3d_forward.2} parent=0 // loop_header
    %s11 = sphi 0, %s15
    %p12 = scmp.ge.s32.totalorder %s11, 6
    %s18 = sphi 0, %s30
    %s19 = sphi 0, %s26
    %s20 = sphi 0, %s18
    %s21 = sphi 0, %s19
    %s22 = sphi 0, %s20
    %s23 = sphi 0, %s21
    %s33 = sphi 0, %s35
    %s36 = sphi 0, %s33
    %s37 = sphi 0, %s36
    %s53 = sphi 0, %s37
    %s57 = sphi 0, %s57
    %s59 = sphi 0, %s57
    %s60 = sphi 0, %s59
    %s74 = sphi 0, %s60
    %s82 = sphi 0, %s84
    %s85 = sphi 0, %s82
    %s86 = sphi 0, %s85
    %s102 = sphi 0, %s86
    %s110 = sphi 0, %s112
    %s113 = sphi 0, %s110
    %s114 = sphi 0, %s113
    %s130 = sphi 0, %s114
    %s138 = sphi 0, %s140
    %s141 = sphi 0, %s138
    %s142 = sphi 0, %s141
    %s158 = sphi 0, %s142
  $region4: #{block3d_forward.2} parent=0 // loop_header_branch
    %14 = sbr.rel (%p12) target = $region8
  $region5: #{block3d_forward.2} parent=0 // loop_body
    %s16 = ssub.s32 %s11, 1
    %s17 = ssub.s32 %s11, 2
    %s24 = sadd.s32 1, %s19
    %p25 = scmp.ge.s32.totalorder %s24, 2
    %s26 = scalar_select %p25, 0, %s24
    %s27 = sadd.s32 1, %s18
    %s28 = scalar_select %p25, %s27, %s18
    %p29 = scmp.ge.s32.totalorder %s28, 2
    %s30 = scalar_select %p29, 0, %s28
    %s31 = ssub.s32 %s18, %s30
    %p32 = scmp.eq.s32.totalorder %s31, 0
    %s34 = sadd.s32 %s33, 1
    %s35 = scalar_select %p32, %s33, %s34
    %p38 = pneg %p32
    %p39 = scmp.eq.s32.totalorder %s11, 3
    %p40 = por %p38, %p39
    %p41 = scmp.ne.s32.totalorder %s33, %s36
    %p42 = scmp.eq.s32.totalorder %s11, 0
    %p43 = por %p41, %p42
    %p44 = scmp.ne.s32.totalorder %s33, %s36
    %p45 = scmp.eq.s32.totalorder %s16, 3
    %p46 = por %p44, %p45
    %p47 = scmp.ne.s32.totalorder %s36, %s37
    %p48 = scmp.eq.s32.totalorder %s16, 0
    %p49 = por %p47, %p48
    %p50 = scmp.ne.s32.totalorder %s36, %s37
    %p51 = scmp.eq.s32.totalorder %s17, 3
    %p52 = por %p50, %p51
    %p54 = scmp.ne.s32.totalorder %s37, %s53
    %p55 = scmp.eq.s32.totalorder %s17, 0
    %p56 = por %p54, %p55
    %s58 = sadd.s32 %s57, 1
    %p61 = scmp.eq.s32.totalorder %s11, 3
    %p62 = scmp.ne.s32.totalorder %s57, %s59
    %p63 = scmp.eq.s32.totalorder %s11, 0
    %p64 = por %p62, %p63
    %p65 = scmp.ne.s32.totalorder %s57, %s59
    %p66 = scmp.eq.s32.totalorder %s16, 3
    %p67 = por %p65, %p66
    %p68 = scmp.ne.s32.totalorder %s59, %s60
    %p69 = scmp.eq.s32.totalorder %s16, 0
    %p70 = por %p68, %p69
    %p71 = scmp.ne.s32.totalorder %s59, %s60
    %p72 = scmp.eq.s32.totalorder %s17, 3
    %p73 = por %p71, %p72
    %p75 = scmp.ne.s32.totalorder %s60, %s74
    %p76 = scmp.eq.s32.totalorder %s17, 0
    %p77 = por %p75, %p76
    %s78 = ssub.s32 %s18, %s30
    %s79 = ssub.s32 %s19, %s26
    %s80 = sor.u32 %s78, %s79
    %p81 = scmp.eq.s32.totalorder %s80, 0
    %s83 = sadd.s32 %s82, 1
    %s84 = scalar_select %p81, %s82, %s83
    %p87 = pneg %p81
    %p88 = scmp.eq.s32.totalorder %s11, 3
    %p89 = por %p87, %p88
    %p90 = scmp.ne.s32.totalorder %s82, %s85
    %p91 = scmp.eq.s32.totalorder %s11, 0
    %p92 = por %p90, %p91
    %p93 = scmp.ne.s32.totalorder %s82, %s85
    %p94 = scmp.eq.s32.totalorder %s16, 3
    %p95 = por %p93, %p94
    %p96 = scmp.ne.s32.totalorder %s85, %s86
    %p97 = scmp.eq.s32.totalorder %s16, 0
    %p98 = por %p96, %p97
    %p99 = scmp.ne.s32.totalorder %s85, %s86
    %p100 = scmp.eq.s32.totalorder %s17, 3
    %p101 = por %p99, %p100
    %p103 = scmp.ne.s32.totalorder %s86, %s102
    %p104 = scmp.eq.s32.totalorder %s17, 0
    %p105 = por %p103, %p104
    %s106 = ssub.s32 %s18, %s30
    %s107 = ssub.s32 %s19, %s26
    %s108 = sor.u32 %s106, %s107
    %p109 = scmp.eq.s32.totalorder %s108, 0
    %s111 = sadd.s32 %s110, 1
    %s112 = scalar_select %p109, %s110, %s111
    %p115 = pneg %p109
    %p116 = scmp.eq.s32.totalorder %s11, 3
    %p117 = por %p115, %p116
    %p118 = scmp.ne.s32.totalorder %s110, %s113
    %p119 = scmp.eq.s32.totalorder %s11, 0
    %p120 = por %p118, %p119
    %p121 = scmp.ne.s32.totalorder %s110, %s113
    %p122 = scmp.eq.s32.totalorder %s16, 3
    %p123 = por %p121, %p122
    %p124 = scmp.ne.s32.totalorder %s113, %s114
    %p125 = scmp.eq.s32.totalorder %s16, 0
    %p126 = por %p124, %p125
    %p127 = scmp.ne.s32.totalorder %s113, %s114
    %p128 = scmp.eq.s32.totalorder %s17, 3
    %p129 = por %p127, %p128
    %p131 = scmp.ne.s32.totalorder %s114, %s130
    %p132 = scmp.eq.s32.totalorder %s17, 0
    %p133 = por %p131, %p132
    %s134 = ssub.s32 %s18, %s30
    %s135 = ssub.s32 %s19, %s26
    %s136 = sor.u32 %s134, %s135
    %p137 = scmp.eq.s32.totalorder %s136, 0
    %s139 = sadd.s32 %s138, 1
    %s140 = scalar_select %p137, %s138, %s139
    %p143 = pneg %p137
    %p144 = scmp.eq.s32.totalorder %s11, 3
    %p145 = por %p143, %p144
    %p146 = scmp.ne.s32.totalorder %s138, %s141
    %p147 = scmp.eq.s32.totalorder %s11, 0
    %p148 = por %p146, %p147
    %p149 = scmp.ne.s32.totalorder %s138, %s141
    %p150 = scmp.eq.s32.totalorder %s16, 3
    %p151 = por %p149, %p150
    %p152 = scmp.ne.s32.totalorder %s141, %s142
    %p153 = scmp.eq.s32.totalorder %s16, 0
    %p154 = por %p152, %p153
    %p155 = scmp.ne.s32.totalorder %s141, %s142
    %p156 = scmp.eq.s32.totalorder %s17, 3
    %p157 = por %p155, %p156
    %p159 = scmp.ne.s32.totalorder %s142, %s158
    %p160 = scmp.eq.s32.totalorder %s17, 0
    %p161 = por %p159, %p160
    %p162 = scmp.le.s32.totalorder 1, %s11
    %p163 = scmp.lt.s32.totalorder %s11, 5
    %p164 = pnand %p162, %p163
    %p165 = pneg %p164
    // Predicated region
    $region9: #{block3d_forward.2} parent=5 // pred_check
      _
    $region10: #{block3d_forward.2} parent=5 // pred_check_branch
      %167 = sbr.rel (%p164) target = $region12
    $region11: #{block3d_forward.2} parent=5 // pred_region
      %s168 = ssub.s32 %s11, 1
      // Predicated region
      $region13: #{block3d_forward.2} parent=11 // pred_check
        %p169 = pneg %p70
      $region14: #{block3d_forward.2} parent=11 // pred_check_branch
        %171 = sbr.rel (%p169) target = $region16
      $region15: #{block3d_forward.2} parent=11 // pred_region
        _
      $region16: #{block3d_forward.2} parent=11 // pred_fallthru
        _
    $region12: #{block3d_forward.2} parent=5 // pred_fallthru
      _
    %p172 = scmp.lt.s32.totalorder %s11, 4
    // Predicated region
    $region17: #{block3d_forward.2} parent=5 // pred_check
      %p173 = pneg %p172
    $region18: #{block3d_forward.2} parent=5 // pred_check_branch
      %175 = sbr.rel (%p173) target = $region20
    $region19: #{block3d_forward.2} parent=5 // pred_region
      // Predicated region
      $region21: #{block3d_forward.2} parent=19 // pred_check
        %p176 = pneg %p43
      $region22: #{block3d_forward.2} parent=19 // pred_check_branch
        %178 = sbr.rel (%p176) target = $region24
      $region23: #{block3d_forward.2} parent=19 // pred_region
        %p179 = scmp.lt.s32.totalorder %s18, 1
        %s180 = scalar_select %p179, %s18, 1
        %s181 = smul.addr %s180, 180
        %s182 = smul.addr %s181, 4
        %s183 = scalar_lea.vmem %s0, %s182
      $region24: #{block3d_forward.2} parent=19 // pred_fallthru
        _
    $region20: #{block3d_forward.2} parent=5 // pred_fallthru
      _
    %p184 = scmp.le.s32.totalorder 1, %s11
    %p185 = scmp.lt.s32.totalorder %s11, 5
    %p186 = pnand %p184, %p185
    %p187 = pneg %p186
    // Predicated region
    $region25: #{block3d_forward.2} parent=5 // pred_check
      _
    $region26: #{block3d_forward.2} parent=5 // pred_check_branch
      %189 = sbr.rel (%p186) target = $region28
    $region27: #{block3d_forward.2} parent=5 // pred_region
      %s190 = ssub.s32 %s11, 1
      %p191 = scmp.lt.s32.totalorder %s20, 1
      %s192 = scalar_select %p191, %s20, 1
      %s193 = smul.addr %s192, 180
      %s194 = smul.addr %s193, 4
      %s195 = scalar_lea.vmem %s0, %s194
      %p196 = pneg %p49
      %p197 = pneg %p46
      %p198 = pneg %p70
      %p199 = pneg %p67
      %p200 = pneg %p98
      %p201 = pneg %p95
      %s202 = smul.u32 16, %s21
      %p203 = scmp.lt.s32.totalorder %s20, 1
      %s204 = scalar_select %p203, %s20, 1
      %p205 = scmp.lt.s32.totalorder %s202, 31
      %s206 = scalar_select %p205, %s202, 31
      %s207 = smul.addr %s204, 32
      %s208 = sadd.s32 %s206, %s207
      %s209 = smul.addr %s208, 8
      %s210 = scalar_lea.vmem %s2, %s209
      %p211 = pneg %p126
      %p212 = pneg %p123
      %p213 = scmp.lt.s32.totalorder %s20, 1
      %s214 = scalar_select %p213, %s20, 1
      %p215 = scmp.lt.s32.totalorder %s21, 1
      %s216 = scalar_select %p215, %s21, 1
      %s217 = smul.addr %s214, 2
      %s218 = sadd.s32 %s216, %s217
      %s219 = smul.addr %s218, 8
      %s220 = scalar_lea.vmem %s3, %s219
      %p221 = pneg %p154
      %p222 = pneg %p151
      %p223 = scmp.lt.s32.totalorder %s20, 1
      %s224 = scalar_select %p223, %s20, 1
      %p225 = scmp.lt.s32.totalorder %s21, 1
      %s226 = scalar_select %p225, %s21, 1
      %s227 = smul.addr %s224, 2
      %s228 = sadd.s32 %s226, %s227
      %s229 = smul.addr %s228, 8
      %s230 = scalar_lea.vmem %s4, %s229
      %p231 = scmp.lt.s32.totalorder %s20, 1
      %s232 = scalar_select %p231, %s20, 1
      %s233 = smul.addr %s232, 180
      %s234 = smul.addr %s233, 4
      %s235 = scalar_lea.vmem %s0, %s234
      %s236 = smul.u32 16, %s21
      %p237 = scmp.lt.s32.totalorder %s20, 1
      %s238 = scalar_select %p237, %s20, 1
      %p239 = scmp.lt.s32.totalorder %s236, 31
      %s240 = scalar_select %p239, %s236, 31
      %s241 = smul.addr %s238, 32
      %s242 = sadd.s32 %s240, %s241
      %s243 = smul.addr %s242, 8
      %s244 = scalar_lea.vmem %s2, %s243
      %s245 = smul.u32 16, %s21
      %p246 = scmp.lt.s32.totalorder %s20, 1
      %s247 = scalar_select %p246, %s20, 1
      %p248 = scmp.lt.s32.totalorder %s21, 1
      %s249 = scalar_select %p248, %s21, 1
      %s250 = smul.addr %s247, 2
      %s251 = sadd.s32 %s249, %s250
      %s252 = smul.addr %s251, 8
      %s253 = scalar_lea.vmem %s3, %s252
      %p254 = scmp.lt.s32.totalorder %s20, 1
      %s255 = scalar_select %p254, %s20, 1
      %p256 = scmp.lt.s32.totalorder %s21, 1
      %s257 = scalar_select %p256, %s21, 1
      %s258 = smul.addr %s255, 2
      %s259 = sadd.s32 %s257, %s258
      %s260 = smul.addr %s259, 8
      %s261 = scalar_lea.vmem %s4, %s260
      %s263 = smul.u32 %s21, 8
      %v264 = vld [vmem:[%s1] sm:$0xf]
      %s265 = smul.u32 %s263, 10
      %s266 = smul.addr %s265, 4
      %s267 = scalar_lea.vmem %s235, %s266
      %v268 = vld [vmem:[%s267] sm:$0xff]
      %v269 = vld [vmem:[%s267 + $0x8] sm:$0xff]
      %v270 = vld [vmem:[%s267 + $0x10] sm:$0xff]
      %v271 = vld [vmem:[%s267 + $0x18] sm:$0xff]
      %v272 = vld [vmem:[%s267 + $0x20] sm:$0x33]
      %s273 = scalar_lea.vmem %s1, 4
      %v274 = vld [vmem:[%s273] sm:$0xf]
      %s275 = sadd.s32 %s263, 1
      %s276 = smul.u32 %s275, 10
      %s277 = smul.addr %s276, 4
      %s278 = scalar_lea.vmem %s235, %s277
      %v279 = vld [vmem:[%s278] sm:$0xff]
      %v280 = vld [vmem:[%s278 + $0x8] sm:$0xff]
      %v281 = vld [vmem:[%s278 + $0x10] sm:$0xff]
      %v282 = vld [vmem:[%s278 + $0x18] sm:$0xff]
      %v283 = vld [vmem:[%s278 + $0x20] sm:$0x33]
      %v289 = vunpack.c.l.b16 %v279
      %v290 = vunpack.c.h.b16 %v279
      %v291 = vunpack.c.l.b16 %v280
      %v292 = vunpack.c.h.b16 %v280
      %v293 = vunpack.c.l.b16 %v281
      %v294 = vunpack.c.h.b16 %v281
      %v295 = vunpack.c.l.b16 %v282
      %v296 = vunpack.c.h.b16 %v282
      %v297 = vunpack.c.l.b16 %v283
      %v298 = vunpack.c.h.b16 %v283
      %v299 = vpack.c.b16 %v291, %v289
      %v300 = vpack.c.b16 %v292, %v290
      %v301 = vpack.c.b16 %v295, %v293
      %v302 = vpack.c.b16 %v296, %v294
      %v303 = vpack.c.b16 %v297, %v297
      %v304 = vpack.c.b16 %v298, %v298
      %vm309 = vcmask 293888
      %v311 = vsel %vm309, %v274, 0
      %vm313 = vcmask 1041408
      %v315 = vsel %vm313, %v303, 0
      %v318 = vsel %vm313, %v304, 0
      %320 = vmatprep.subr.bf16.mxu0 %v300
      %321 = vmatpush1.bf16.msra.mxu0 %v299
      %322 = vmatprep.subr.bf16.mxu0 %v302
      %323 = vmatpush1.bf16.msra.mxu0 %v301
      %324 = vmatprep.subr.bf16.mxu0 %v318
      %325 = vmatpush1.bf16.msra.mxu0 %v315
      %326 = vmatprep.subr.bf16.mxu0 0
      %327 = vmatpush1.bf16.msra.mxu0 0
      %328 = vmatprep.subr.bf16.mxu0 0
      %329 = vmatpush1.bf16.msra.mxu0 0
      %330 = vmatprep.subr.bf16.mxu0 0
      %331 = vmatpush1.bf16.msra.mxu0 0
      %332 = vmatprep.subr.bf16.mxu0 0
      %333 = vmatpush1.bf16.msra.mxu0 0
      %334 = vmatprep.subr.bf16.mxu0 0
      %335 = vmatpush1.bf16.msra.mxu0 0
      %336 = vmatprep.subr.bf16.mxu0 0
      %337 = vmatpush1.bf16.msra.mxu0 0
      %338 = vmatprep.subr.bf16.mxu0 0
      %339 = vmatpush1.bf16.msra.mxu0 0
      %340 = vmatprep.subr.bf16.mxu0 0
      %341 = vmatpush1.bf16.msra.mxu0 0
      %342 = vmatprep.subr.bf16.mxu0 0
      %343 = vmatpush1.bf16.msra.mxu0 0
      %344 = vmatprep.subr.bf16.mxu0 0
      %345 = vmatpush1.bf16.msra.mxu0 0
      %346 = vmatprep.subr.bf16.mxu0 0
      %347 = vmatpush1.bf16.msra.mxu0 0
      %348 = vmatprep.subr.bf16.mxu0 0
      %349 = vmatpush1.bf16.msra.mxu0 0
      %350 = vmatprep.subr.bf16.mxu0 0
      %351 = vmatpush1.bf16.msra.mxu0 0
      %352 = vmatprep.mubr.bf16.mxu0 0
      %353 = vmatmul.mubr.bf16.gmra.mrb[0].mxu0 %v311
      %v354 = vpop.f32.mrb[0].mxu0
      %v355 = vadd.f32 0.0, %v354
      %v356 = vpop.f32.mrb[0].mxu0
      %v357 = vadd.f32 0.0, %v356
      %v358 = vpop.f32.mrb[0].mxu0
      %v359 = vpop.f32.mrb[0].mxu0
      %360 = vdwg.mxu0
      %v366 = vunpack.c.l.b16 %v268
      %v367 = vunpack.c.h.b16 %v268
      %v368 = vunpack.c.l.b16 %v269
      %v369 = vunpack.c.h.b16 %v269
      %v370 = vunpack.c.l.b16 %v270
      %v371 = vunpack.c.h.b16 %v270
      %v372 = vunpack.c.l.b16 %v271
      %v373 = vunpack.c.h.b16 %v271
      %v374 = vunpack.c.l.b16 %v272
      %v375 = vunpack.c.h.b16 %v272
      %v376 = vpack.c.b16 %v368, %v366
      %v377 = vpack.c.b16 %v369, %v367
      %v378 = vpack.c.b16 %v372, %v370
      %v379 = vpack.c.b16 %v373, %v371
      %v380 = vpack.c.b16 %v374, %v374
      %v381 = vpack.c.b16 %v375, %v375
      %v387 = vsel %vm309, %v264, 0
      %v390 = vsel %vm313, %v380, 0
      %v393 = vsel %vm313, %v381, 0
      %395 = vmatprep.subr.bf16.mxu0 %v377
      %396 = vmatpush1.bf16.msra.mxu0 %v376
      %397 = vmatprep.subr.bf16.mxu0 %v379
      %398 = vmatpush1.bf16.msra.mxu0 %v378
      %399 = vmatprep.subr.bf16.mxu0 %v393
      %400 = vmatpush1.bf16.msra.mxu0 %v390
      %401 = vmatprep.subr.bf16.mxu0 0
      %402 = vmatpush1.bf16.msra.mxu0 0
      %403 = vmatprep.subr.bf16.mxu0 0
      %404 = vmatpush1.bf16.msra.mxu0 0
      %405 = vmatprep.subr.bf16.mxu0 0
      %406 = vmatpush1.bf16.msra.mxu0 0
      %407 = vmatprep.subr.bf16.mxu0 0
      %408 = vmatpush1.bf16.msra.mxu0 0
      %409 = vmatprep.subr.bf16.mxu0 0
      %410 = vmatpush1.bf16.msra.mxu0 0
      %411 = vmatprep.subr.bf16.mxu0 0
      %412 = vmatpush1.bf16.msra.mxu0 0
      %413 = vmatprep.subr.bf16.mxu0 0
      %414 = vmatpush1.bf16.msra.mxu0 0
      %415 = vmatprep.subr.bf16.mxu0 0
      %416 = vmatpush1.bf16.msra.mxu0 0
      %417 = vmatprep.subr.bf16.mxu0 0
      %418 = vmatpush1.bf16.msra.mxu0 0
      %419 = vmatprep.subr.bf16.mxu0 0
      %420 = vmatpush1.bf16.msra.mxu0 0
      %421 = vmatprep.subr.bf16.mxu0 0
      %422 = vmatpush1.bf16.msra.mxu0 0
      %423 = vmatprep.subr.bf16.mxu0 0
      %424 = vmatpush1.bf16.msra.mxu0 0
      %425 = vmatprep.subr.bf16.mxu0 0
      %426 = vmatpush1.bf16.msra.mxu0 0
      %427 = vmatprep.mubr.bf16.mxu0 0
      %428 = vmatmul.mubr.bf16.gmra.mrb[0].mxu0 %v387
      %v429 = vpop.f32.mrb[0].mxu0
      %v430 = vadd.f32 %v355, %v429
      %v431 = vpop.f32.mrb[0].mxu0
      %v432 = vadd.f32 %v357, %v431
      %v433 = vpop.f32.mrb[0].mxu0
      %v434 = vpop.f32.mrb[0].mxu0
      %435 = vdwg.mxu0
      %s436 = scalar_lea.vmem %s1, 8
      %v437 = vld [vmem:[%s436] sm:$0xf]
      %s438 = sadd.s32 %s263, 2
      %s439 = smul.u32 %s438, 10
      %s440 = smul.addr %s439, 4
      %s441 = scalar_lea.vmem %s235, %s440
      %v442 = vld [vmem:[%s441] sm:$0xff]
      %v443 = vld [vmem:[%s441 + $0x8] sm:$0xff]
      %v444 = vld [vmem:[%s441 + $0x10] sm:$0xff]
      %v445 = vld [vmem:[%s441 + $0x18] sm:$0xff]
      %v446 = vld [vmem:[%s441 + $0x20] sm:$0x33]
      %v452 = vunpack.c.l.b16 %v442
      %v453 = vunpack.c.h.b16 %v442
      %v454 = vunpack.c.l.b16 %v443
      %v455 = vunpack.c.h.b16 %v443
      %v456 = vunpack.c.l.b16 %v444
      %v457 = vunpack.c.h.b16 %v444
      %v458 = vunpack.c.l.b16 %v445
      %v459 = vunpack.c.h.b16 %v445
      %v460 = vunpack.c.l.b16 %v446
      %v461 = vunpack.c.h.b16 %v446
      %v462 = vpack.c.b16 %v454, %v452
      %v463 = vpack.c.b16 %v455, %v453
      %v464 = vpack.c.b16 %v458, %v456
      %v465 = vpack.c.b16 %v459, %v457
      %v466 = vpack.c.b16 %v460, %v460
      %v467 = vpack.c.b16 %v461, %v461
      %v473 = vsel %vm309, %v437, 0
      %v476 = vsel %vm313, %v466, 0
      %v479 = vsel %vm313, %v467, 0
      %481 = vmatprep.subr.bf16.mxu0 %v463
      %482 = vmatpush1.bf16.msra.mxu0 %v462
      %483 = vmatprep.subr.bf16.mxu0 %v465
      %484 = vmatpush1.bf16.msra.mxu0 %v464
      %485 = vmatprep.subr.bf16.mxu0 %v479
      %486 = vmatpush1.bf16.msra.mxu0 %v476
      %487 = vmatprep.subr.bf16.mxu0 0
      %488 = vmatpush1.bf16.msra.mxu0 0
      %489 = vmatprep.subr.bf16.mxu0 0
      %490 = vmatpush1.bf16.msra.mxu0 0
      %491 = vmatprep.subr.bf16.mxu0 0
      %492 = vmatpush1.bf16.msra.mxu0 0
      %493 = vmatprep.subr.bf16.mxu0 0
      %494 = vmatpush1.bf16.msra.mxu0 0
      %495 = vmatprep.subr.bf16.mxu0 0
      %496 = vmatpush1.bf16.msra.mxu0 0
      %497 = vmatprep.subr.bf16.mxu0 0
      %498 = vmatpush1.bf16.msra.mxu0 0
      %499 = vmatprep.subr.bf16.mxu0 0
      %500 = vmatpush1.bf16.msra.mxu0 0
      %501 = vmatprep.subr.bf16.mxu0 0
      %502 = vmatpush1.bf16.msra.mxu0 0
      %503 = vmatprep.subr.bf16.mxu0 0
      %504 = vmatpush1.bf16.msra.mxu0 0
      %505 = vmatprep.subr.bf16.mxu0 0
      %506 = vmatpush1.bf16.msra.mxu0 0
      %507 = vmatprep.subr.bf16.mxu0 0
      %508 = vmatpush1.bf16.msra.mxu0 0
      %509 = vmatprep.subr.bf16.mxu0 0
      %510 = vmatpush1.bf16.msra.mxu0 0
      %511 = vmatprep.subr.bf16.mxu0 0
      %512 = vmatpush1.bf16.msra.mxu0 0
      %513 = vmatprep.mubr.bf16.mxu0 0
      %514 = vmatmul.mubr.bf16.gmra.mrb[0].mxu0 %v473
      %v515 = vpop.f32.mrb[0].mxu0
      %v516 = vadd.f32 0.0, %v515
      %v517 = vpop.f32.mrb[0].mxu0
      %v518 = vadd.f32 0.0, %v517
      %v519 = vpop.f32.mrb[0].mxu0
      %v520 = vpop.f32.mrb[0].mxu0
      %521 = vdwg.mxu0
      %v522 = vadd.f32 %v430, %v516
      %v523 = vadd.f32 %v432, %v518
      %524 = vst [vmem:[%s244] sm:$0xff] %v522
      %525 = vst [vmem:[%s244 + $0x8] sm:$0xff] %v523
      %v526 = vadd.f32 %v522, %v523
      %527 = vadd.xlane.f32.xlu0 %v526
      %v528 = vpop.xlane.xlu0 %527
      %v529 = vadd.f32 %v528, 0.0
      %v530 = vmul.f32 %v522, %v522
      %v531 = vmul.f32 %v523, %v523
      %v532 = vadd.f32 %v530, %v531
      %533 = vadd.xlane.f32.xlu0 %v532
      %v534 = vpop.xlane.xlu0 %533
      %v535 = vadd.f32 %v534, 0.0
      %v536 = vld [vmem:[%s1] sm:$0xf]
      %v537 = vld [vmem:[%s278] sm:$0xff]
      %v538 = vld [vmem:[%s278 + $0x8] sm:$0xff]
      %v539 = vld [vmem:[%s278 + $0x10] sm:$0xff]
      %v540 = vld [vmem:[%s278 + $0x18] sm:$0xff]
      %v541 = vld [vmem:[%s278 + $0x20] sm:$0x33]
      %v542 = vld [vmem:[%s273] sm:$0xf]
      %v543 = vld [vmem:[%s441] sm:$0xff]
      %v544 = vld [vmem:[%s441 + $0x8] sm:$0xff]
      %v545 = vld [vmem:[%s441 + $0x10] sm:$0xff]
      %v546 = vld [vmem:[%s441 + $0x18] sm:$0xff]
      %v547 = vld [vmem:[%s441 + $0x20] sm:$0x33]
      %v553 = vunpack.c.l.b16 %v543
      %v554 = vunpack.c.h.b16 %v543
      %v555 = vunpack.c.l.b16 %v544
      %v556 = vunpack.c.h.b16 %v544
      %v557 = vunpack.c.l.b16 %v545
      %v558 = vunpack.c.h.b16 %v545
      %v559 = vunpack.c.l.b16 %v546
      %v560 = vunpack.c.h.b16 %v546
      %v561 = vunpack.c.l.b16 %v547
      %v562 = vunpack.c.h.b16 %v547
      %v563 = vpack.c.b16 %v555, %v553
      %v564 = vpack.c.b16 %v556, %v554
      %v565 = vpack.c.b16 %v559, %v557
      %v566 = vpack.c.b16 %v560, %v558
      %v567 = vpack.c.b16 %v561, %v561
      %v568 = vpack.c.b16 %v562, %v562
      %v574 = vsel %vm309, %v542, 0
      %v577 = vsel %vm313, %v567, 0
      %v580 = vsel %vm313, %v568, 0
      %582 = vmatprep.subr.bf16.mxu0 %v564
      %583 = vmatpush1.bf16.msra.mxu0 %v563
      %584 = vmatprep.subr.bf16.mxu0 %v566
      %585 = vmatpush1.bf16.msra.mxu0 %v565
      %586 = vmatprep.subr.bf16.mxu0 %v580
      %587 = vmatpush1.bf16.msra.mxu0 %v577
      %588 = vmatprep.subr.bf16.mxu0 0
      %589 = vmatpush1.bf16.msra.mxu0 0
      %590 = vmatprep.subr.bf16.mxu0 0
      %591 = vmatpush1.bf16.msra.mxu0 0
      %592 = vmatprep.subr.bf16.mxu0 0
      %593 = vmatpush1.bf16.msra.mxu0 0
      %594 = vmatprep.subr.bf16.mxu0 0
      %595 = vmatpush1.bf16.msra.mxu0 0
      %596 = vmatprep.subr.bf16.mxu0 0
      %597 = vmatpush1.bf16.msra.mxu0 0
      %598 = vmatprep.subr.bf16.mxu0 0
      %599 = vmatpush1.bf16.msra.mxu0 0
      %600 = vmatprep.subr.bf16.mxu0 0
      %601 = vmatpush1.bf16.msra.mxu0 0
      %602 = vmatprep.subr.bf16.mxu0 0
      %603 = vmatpush1.bf16.msra.mxu0 0
      %604 = vmatprep.subr.bf16.mxu0 0
      %605 = vmatpush1.bf16.msra.mxu0 0
      %606 = vmatprep.subr.bf16.mxu0 0
      %607 = vmatpush1.bf16.msra.mxu0 0
      %608 = vmatprep.subr.bf16.mxu0 0
      %609 = vmatpush1.bf16.msra.mxu0 0
      %610 = vmatprep.subr.bf16.mxu0 0
      %611 = vmatpush1.bf16.msra.mxu0 0
      %612 = vmatprep.subr.bf16.mxu0 0
      %613 = vmatpush1.bf16.msra.mxu0 0
      %614 = vmatprep.mubr.bf16.mxu0 0
      %615 = vmatmul.mubr.bf16.gmra.mrb[0].mxu0 %v574
      %v616 = vpop.f32.mrb[0].mxu0
      %v617 = vadd.f32 0.0, %v616
      %v618 = vpop.f32.mrb[0].mxu0
      %v619 = vadd.f32 0.0, %v618
      %v620 = vpop.f32.mrb[0].mxu0
      %v621 = vpop.f32.mrb[0].mxu0
      %622 = vdwg.mxu0
      %v628 = vunpack.c.l.b16 %v537
      %v629 = vunpack.c.h.b16 %v537
      %v630 = vunpack.c.l.b16 %v538
      %v631 = vunpack.c.h.b16 %v538
      %v632 = vunpack.c.l.b16 %v539
      %v633 = vunpack.c.h.b16 %v539
      %v634 = vunpack.c.l.b16 %v540
      %v635 = vunpack.c.h.b16 %v540
      %v636 = vunpack.c.l.b16 %v541
      %v637 = vunpack.c.h.b16 %v541
      %v638 = vpack.c.b16 %v630, %v628
      %v639 = vpack.c.b16 %v631, %v629
      %v640 = vpack.c.b16 %v634, %v632
      %v641 = vpack.c.b16 %v635, %v633
      %v642 = vpack.c.b16 %v636, %v636
      %v643 = vpack.c.b16 %v637, %v637
      %v649 = vsel %vm309, %v536, 0
      %v652 = vsel %vm313, %v642, 0
      %v655 = vsel %vm313, %v643, 0
      %657 = vmatprep.subr.bf16.mxu0 %v639
      %658 = vmatpush1.bf16.msra.mxu0 %v638
      %659 = vmatprep.subr.bf16.mxu0 %v641
      %660 = vmatpush1.bf16.msra.mxu0 %v640
      %661 = vmatprep.subr.bf16.mxu0 %v655
      %662 = vmatpush1.bf16.msra.mxu0 %v652
      %663 = vmatprep.subr.bf16.mxu0 0
      %664 = vmatpush1.bf16.msra.mxu0 0
      %665 = vmatprep.subr.bf16.mxu0 0
      %666 = vmatpush1.bf16.msra.mxu0 0
      %667 = vmatprep.subr.bf16.mxu0 0
      %668 = vmatpush1.bf16.msra.mxu0 0
      %669 = vmatprep.subr.bf16.mxu0 0
      %670 = vmatpush1.bf16.msra.mxu0 0
      %671 = vmatprep.subr.bf16.mxu0 0
      %672 = vmatpush1.bf16.msra.mxu0 0
      %673 = vmatprep.subr.bf16.mxu0 0
      %674 = vmatpush1.bf16.msra.mxu0 0
      %675 = vmatprep.subr.bf16.mxu0 0
      %676 = vmatpush1.bf16.msra.mxu0 0
      %677 = vmatprep.subr.bf16.mxu0 0
      %678 = vmatpush1.bf16.msra.mxu0 0
      %679 = vmatprep.subr.bf16.mxu0 0
      %680 = vmatpush1.bf16.msra.mxu0 0
      %681 = vmatprep.subr.bf16.mxu0 0
      %682 = vmatpush1.bf16.msra.mxu0 0
      %683 = vmatprep.subr.bf16.mxu0 0
      %684 = vmatpush1.bf16.msra.mxu0 0
      %685 = vmatprep.subr.bf16.mxu0 0
      %686 = vmatpush1.bf16.msra.mxu0 0
      %687 = vmatprep.subr.bf16.mxu0 0
      %688 = vmatpush1.bf16.msra.mxu0 0
      %689 = vmatprep.mubr.bf16.mxu0 0
      %690 = vmatmul.mubr.bf16.gmra.mrb[0].mxu0 %v649
      %v691 = vpop.f32.mrb[0].mxu0
      %v692 = vadd.f32 %v617, %v691
      %v693 = vpop.f32.mrb[0].mxu0
      %v694 = vadd.f32 %v619, %v693
      %v695 = vpop.f32.mrb[0].mxu0
      %v696 = vpop.f32.mrb[0].mxu0
      %697 = vdwg.mxu0
      %v698 = vld [vmem:[%s436] sm:$0xf]
      %s699 = sadd.s32 %s263, 3
      %s700 = smul.u32 %s699, 10
      %s701 = smul.addr %s700, 4
      %s702 = scalar_lea.vmem %s235, %s701
      %v703 = vld [vmem:[%s702] sm:$0xff]
      %v704 = vld [vmem:[%s702 + $0x8] sm:$0xff]
      %v705 = vld [vmem:[%s702 + $0x10] sm:$0xff]
      %v706 = vld [vmem:[%s702 + $0x18] sm:$0xff]
      %v707 = vld [vmem:[%s702 + $0x20] sm:$0x33]
      %v713 = vunpack.c.l.b16 %v703
      %v714 = vunpack.c.h.b16 %v703
      %v715 = vunpack.c.l.b16 %v704
      %v716 = vunpack.c.h.b16 %v704
      %v717 = vunpack.c.l.b16 %v705
      %v718 = vunpack.c.h.b16 %v705
      %v719 = vunpack.c.l.b16 %v706
      %v720 = vunpack.c.h.b16 %v706
      %v721 = vunpack.c.l.b16 %v707
      %v722 = vunpack.c.h.b16 %v707
      %v723 = vpack.c.b16 %v715, %v713
      %v724 = vpack.c.b16 %v716, %v714
      %v725 = vpack.c.b16 %v719, %v717
      %v726 = vpack.c.b16 %v720, %v718
      %v727 = vpack.c.b16 %v721, %v721
      %v728 = vpack.c.b16 %v722, %v722
      %v734 = vsel %vm309, %v698, 0
      %v737 = vsel %vm313, %v727, 0
      %v740 = vsel %vm313, %v728, 0
      %742 = vmatprep.subr.bf16.mxu0 %v724
      %743 = vmatpush1.bf16.msra.mxu0 %v723
      %744 = vmatprep.subr.bf16.mxu0 %v726
      %745 = vmatpush1.bf16.msra.mxu0 %v725
      %746 = vmatprep.subr.bf16.mxu0 %v740
      %747 = vmatpush1.bf16.msra.mxu0 %v737
      %748 = vmatprep.subr.bf16.mxu0 0
      %749 = vmatpush1.bf16.msra.mxu0 0
      %750 = vmatprep.subr.bf16.mxu0 0
      %751 = vmatpush1.bf16.msra.mxu0 0
      %752 = vmatprep.subr.bf16.mxu0 0
      %753 = vmatpush1.bf16.msra.mxu0 0
      %754 = vmatprep.subr.bf16.mxu0 0
      %755 = vmatpush1.bf16.msra.mxu0 0
      %756 = vmatprep.subr.bf16.mxu0 0
      %757 = vmatpush1.bf16.msra.mxu0 0
      %758 = vmatprep.subr.bf16.mxu0 0
      %759 = vmatpush1.bf16.msra.mxu0 0
      %760 = vmatprep.subr.bf16.mxu0 0
      %761 = vmatpush1.bf16.msra.mxu0 0
      %762 = vmatprep.subr.bf16.mxu0 0
      %763 = vmatpush1.bf16.msra.mxu0 0
      %764 = vmatprep.subr.bf16.mxu0 0
      %765 = vmatpush1.bf16.msra.mxu0 0
      %766 = vmatprep.subr.bf16.mxu0 0
      %767 = vmatpush1.bf16.msra.mxu0 0
      %768 = vmatprep.subr.bf16.mxu0 0
      %769 = vmatpush1.bf16.msra.mxu0 0
      %770 = vmatprep.subr.bf16.mxu0 0
      %771 = vmatpush1.bf16.msra.mxu0 0
      %772 = vmatprep.subr.bf16.mxu0 0
      %773 = vmatpush1.bf16.msra.mxu0 0
      %774 = vmatprep.mubr.bf16.mxu0 0
      %775 = vmatmul.mubr.bf16.gmra.mrb[0].mxu0 %v734
      %v776 = vpop.f32.mrb[0].mxu0
      %v777 = vadd.f32 0.0, %v776
      %v778 = vpop.f32.mrb[0].mxu0
      %v779 = vadd.f32 0.0, %v778
      %v780 = vpop.f32.mrb[0].mxu0
      %v781 = vpop.f32.mrb[0].mxu0
      %782 = vdwg.mxu0
      %v783 = vadd.f32 %v692, %v777
      %v784 = vadd.f32 %v694, %v779
      %785 = vst [vmem:[%s244 + $0x10] sm:$0xff] %v783
      %786 = vst [vmem:[%s244 + $0x18] sm:$0xff] %v784
      %v787 = vadd.f32 %v783, %v784
      %788 = vadd.xlane.f32.xlu0 %v787
      %v789 = vpop.xlane.xlu0 %788
      %v790 = vadd.f32 %v529, %v789
      %v791 = vmul.f32 %v783, %v783
      %v792 = vmul.f32 %v784, %v784
      %v793 = vadd.f32 %v791, %v792
      %794 = vadd.xlane.f32.xlu0 %v793
      %v795 = vpop.xlane.xlu0 %794
      %v796 = vadd.f32 %v535, %v795
      %v797 = vld [vmem:[%s1] sm:$0xf]
      %v798 = vld [vmem:[%s441] sm:$0xff]
      %v799 = vld [vmem:[%s441 + $0x8] sm:$0xff]
      %v800 = vld [vmem:[%s441 + $0x10] sm:$0xff]
      %v801 = vld [vmem:[%s441 + $0x18] sm:$0xff]
      %v802 = vld [vmem:[%s441 + $0x20] sm:$0x33]
      %v803 = vld [vmem:[%s273] sm:$0xf]
      %v804 = vld [vmem:[%s702] sm:$0xff]
      %v805 = vld [vmem:[%s702 + $0x8] sm:$0xff]
      %v806 = vld [vmem:[%s702 + $0x10] sm:$0xff]
      %v807 = vld [vmem:[%s702 + $0x18] sm:$0xff]
      %v808 = vld [vmem:[%s702 + $0x20] sm:$0x33]
      %v814 = vunpack.c.l.b16 %v804
      %v815 = vunpack.c.h.b16 %v804
      %v816 = vunpack.c.l.b16 %v805
      %v817 = vunpack.c.h.b16 %v805
      %v818 = vunpack.c.l.b16 %v806
      %v819 = vunpack.c.h.b16 %v806
      %v820 = vunpack.c.l.b16 %v807
      %v821 = vunpack.c.h.b16 %v807
      %v822 = vunpack.c.l.b16 %v808
      %v823 = vunpack.c.h.b16 %v808
      %v824 = vpack.c.b16 %v816, %v814
      %v825 = vpack.c.b16 %v817, %v815
      %v826 = vpack.c.b16 %v820, %v818
      %v827 = vpack.c.b16 %v821, %v819
      %v828 = vpack.c.b16 %v822, %v822
      %v829 = vpack.c.b16 %v823, %v823
      %v835 = vsel %vm309, %v803, 0
      %v838 = vsel %vm313, %v828, 0
      %v841 = vsel %vm313, %v829, 0
      %843 = vmatprep.subr.bf16.mxu0 %v825
      %844 = vmatpush1.bf16.msra.mxu0 %v824
      %845 = vmatprep.subr.bf16.mxu0 %v827
      %846 = vmatpush1.bf16.msra.mxu0 %v826
      %847 = vmatprep.subr.bf16.mxu0 %v841
      %848 = vmatpush1.bf16.msra.mxu0 %v838
      %849 = vmatprep.subr.bf16.mxu0 0
      %850 = vmatpush1.bf16.msra.mxu0 0
      %851 = vmatprep.subr.bf16.mxu0 0
      %852 = vmatpush1.bf16.msra.mxu0 0
      %853 = vmatprep.subr.bf16.mxu0 0
      %854 = vmatpush1.bf16.msra.mxu0 0
      %855 = vmatprep.subr.bf16.mxu0 0
      %856 = vmatpush1.bf16.msra.mxu0 0
      %857 = vmatprep.subr.bf16.mxu0 0
      %858 = vmatpush1.bf16.msra.mxu0 0
      %859 = vmatprep.subr.bf16.mxu0 0
      %860 = vmatpush1.bf16.msra.mxu0 0
      %861 = vmatprep.subr.bf16.mxu0 0
      %862 = vmatpush1.bf16.msra.mxu0 0
      %863 = vmatprep.subr.bf16.mxu0 0
      %864 = vmatpush1.bf16.msra.mxu0 0
      %865 = vmatprep.subr.bf16.mxu0 0
      %866 = vmatpush1.bf16.msra.mxu0 0
      %867 = vmatprep.subr.bf16.mxu0 0
      %868 = vmatpush1.bf16.msra.mxu0 0
      %869 = vmatprep.subr.bf16.mxu0 0
      %870 = vmatpush1.bf16.msra.mxu0 0
      %871 = vmatprep.subr.bf16.mxu0 0
      %872 = vmatpush1.bf16.msra.mxu0 0
      %873 = vmatprep.subr.bf16.mxu0 0
      %874 = vmatpush1.bf16.msra.mxu0 0
      %875 = vmatprep.mubr.bf16.mxu0 0
      %876 = vmatmul.mubr.bf16.gmra.mrb[0].mxu0 %v835
      %v877 = vpop.f32.mrb[0].mxu0
      %v878 = vadd.f32 0.0, %v877
      %v879 = vpop.f32.mrb[0].mxu0
      %v880 = vadd.f32 0.0, %v879
      %v881 = vpop.f32.mrb[0].mxu0
      %v882 = vpop.f32.mrb[0].mxu0
      %883 = vdwg.mxu0
      %v889 = vunpack.c.l.b16 %v798
      %v890 = vunpack.c.h.b16 %v798
      %v891 = vunpack.c.l.b16 %v799
      %v892 = vunpack.c.h.b16 %v799
      %v893 = vunpack.c.l.b16 %v800
      %v894 = vunpack.c.h.b16 %v800
      %v895 = vunpack.c.l.b16 %v801
      %v896 = vunpack.c.h.b16 %v801
      %v897 = vunpack.c.l.b16 %v802
      %v898 = vunpack.c.h.b16 %v802
      %v899 = vpack.c.b16 %v891, %v889
      %v900 = vpack.c.b16 %v892, %v890
      %v901 = vpack.c.b16 %v895, %v893
      %v902 = vpack.c.b16 %v896, %v894
      %v903 = vpack.c.b16 %v897, %v897
      %v904 = vpack.c.b16 %v898, %v898
      %v910 = vsel %vm309, %v797, 0
      %v913 = vsel %vm313, %v903, 0
      %v916 = vsel %vm313, %v904, 0
      %918 = vmatprep.subr.bf16.mxu0 %v900
      %919 = vmatpush1.bf16.msra.mxu0 %v899
      %920 = vmatprep.subr.bf16.mxu0 %v902
      %921 = vmatpush1.bf16.msra.mxu0 %v901
      %922 = vmatprep.subr.bf16.mxu0 %v916
      %923 = vmatpush1.bf16.msra.mxu0 %v913
      %924 = vmatprep.subr.bf16.mxu0 0
      %925 = vmatpush1.bf16.msra.mxu0 0
      %926 = vmatprep.subr.bf16.mxu0 0
      %927 = vmatpush1.bf16.msra.mxu0 0
      %928 = vmatprep.subr.bf16.mxu0 0
      %929 = vmatpush1.bf16.msra.mxu0 0
      %930 = vmatprep.subr.bf16.mxu0 0
      %931 = vmatpush1.bf16.msra.mxu0 0
      %932 = vmatprep.subr.bf16.mxu0 0
      %933 = vmatpush1.bf16.msra.mxu0 0
      %934 = vmatprep.subr.bf16.mxu0 0
      %935 = vmatpush1.bf16.msra.mxu0 0
      %936 = vmatprep.subr.bf16.mxu0 0
      %937 = vmatpush1.bf16.msra.mxu0 0
      %938 = vmatprep.subr.bf16.mxu0 0
      %939 = vmatpush1.bf16.msra.mxu0 0
      %940 = vmatprep.subr.bf16.mxu0 0
      %941 = vmatpush1.bf16.msra.mxu0 0
      %942 = vmatprep.subr.bf16.mxu0 0
      %943 = vmatpush1.bf16.msra.mxu0 0
      %944 = vmatprep.subr.bf16.mxu0 0
      %945 = vmatpush1.bf16.msra.mxu0 0
      %946 = vmatprep.subr.bf16.mxu0 0
      %947 = vmatpush1.bf16.msra.mxu0 0
      %948 = vmatprep.subr.bf16.mxu0 0
      %949 = vmatpush1.bf16.msra.mxu0 0
      %950 = vmatprep.mubr.bf16.mxu0 0
      %951 = vmatmul.mubr.bf16.gmra.mrb[0].mxu0 %v910
      %v952 = vpop.f32.mrb[0].mxu0
      %v953 = vadd.f32 %v878, %v952
      %v954 = vpop.f32.mrb[0].mxu0
      %v955 = vadd.f32 %v880, %v954
      %v956 = vpop.f32.mrb[0].mxu0
      %v957 = vpop.f32.mrb[0].mxu0
      %958 = vdwg.mxu0
      %v959 = vld [vmem:[%s436] sm:$0xf]
      %s960 = sadd.s32 %s263, 4
      %s961 = smul.u32 %s960, 10
      %s962 = smul.addr %s961, 4
      %s963 = scalar_lea.vmem %s235, %s962
      %v964 = vld [vmem:[%s963] sm:$0xff]
      %v965 = vld [vmem:[%s963 + $0x8] sm:$0xff]
      %v966 = vld [vmem:[%s963 + $0x10] sm:$0xff]
      %v967 = vld [vmem:[%s963 + $0x18] sm:$0xff]
      %v968 = vld [vmem:[%s963 + $0x20] sm:$0x33]
      %v974 = vunpack.c.l.b16 %v964
      %v975 = vunpack.c.h.b16 %v964
      %v976 = vunpack.c.l.b16 %v965
      %v977 = vunpack.c.h.b16 %v965
      %v978 = vunpack.c.l.b16 %v966
      %v979 = vunpack.c.h.b16 %v966
      %v980 = vunpack.c.l.b16 %v967
      %v981 = vunpack.c.h.b16 %v967
      %v982 = vunpack.c.l.b16 %v968
      %v983 = vunpack.c.h.b16 %v968
      %v984 = vpack.c.b16 %v976, %v974
      %v985 = vpack.c.b16 %v977, %v975
      %v986 = vpack.c.b16 %v980, %v978
      %v987 = vpack.c.b16 %v981, %v979
      %v988 = vpack.c.b16 %v982, %v982
      %v989 = vpack.c.b16 %v983, %v983
      %v995 = vsel %vm309, %v959, 0
      %v998 = vsel %vm313, %v988, 0
      %v1001 = vsel %vm313, %v989, 0
      %1003 = vmatprep.subr.bf16.mxu0 %v985
      %1004 = vmatpush1.bf16.msra.mxu0 %v984
      %1005 = vmatprep.subr.bf16.mxu0 %v987
      %1006 = vmatpush1.bf16.msra.mxu0 %v986
      %1007 = vmatprep.subr.bf16.mxu0 %v1001
      %1008 = vmatpush1.bf16.msra.mxu0 %v998
      %1009 = vmatprep.subr.bf16.mxu0 0
      %1010 = vmatpush1.bf16.msra.mxu0 0
      %1011 = vmatprep.subr.bf16.mxu0 0
      %1012 = vmatpush1.bf16.msra.mxu0 0
      %1013 = vmatprep.subr.bf16.mxu0 0
      %1014 = vmatpush1.bf16.msra.mxu0 0
      %1015 = vmatprep.subr.bf16.mxu0 0
      %1016 = vmatpush1.bf16.msra.mxu0 0
      %1017 = vmatprep.subr.bf16.mxu0 0
      %1018 = vmatpush1.bf16.msra.mxu0 0
      %1019 = vmatprep.subr.bf16.mxu0 0
      %1020 = vmatpush1.bf16.msra.mxu0 0
      %1021 = vmatprep.subr.bf16.mxu0 0
      %1022 = vmatpush1.bf16.msra.mxu0 0
      %1023 = vmatprep.subr.bf16.mxu0 0
      %1024 = vmatpush1.bf16.msra.mxu0 0
      %1025 = vmatprep.subr.bf16.mxu0 0
      %1026 = vmatpush1.bf16.msra.mxu0 0
      %1027 = vmatprep.subr.bf16.mxu0 0
      %1028 = vmatpush1.bf16.msra.mxu0 0
      %1029 = vmatprep.subr.bf16.mxu0 0
      %1030 = vmatpush1.bf16.msra.mxu0 0
      %1031 = vmatprep.subr.bf16.mxu0 0
      %1032 = vmatpush1.bf16.msra.mxu0 0
      %1033 = vmatprep.subr.bf16.mxu0 0
      %1034 = vmatpush1.bf16.msra.mxu0 0
      %1035 = vmatprep.mubr.bf16.mxu0 0
      %1036 = vmatmul.mubr.bf16.gmra.mrb[0].mxu0 %v995
      %v1037 = vpop.f32.mrb[0].mxu0
      %v1038 = vadd.f32 0.0, %v1037
      %v1039 = vpop.f32.mrb[0].mxu0
      %v1040 = vadd.f32 0.0, %v1039
      %v1041 = vpop.f32.mrb[0].mxu0
      %v1042 = vpop.f32.mrb[0].mxu0
      %1043 = vdwg.mxu0
      %v1044 = vadd.f32 %v953, %v1038
      %v1045 = vadd.f32 %v955, %v1040
      %1046 = vst [vmem:[%s244 + $0x20] sm:$0xff] %v1044
      %1047 = vst [vmem:[%s244 + $0x28] sm:$0xff] %v1045
      %v1048 = vadd.f32 %v1044, %v1045
      %1049 = vadd.xlane.f32.xlu0 %v1048
      %v1050 = vpop.xlane.xlu0 %1049
      %v1051 = vadd.f32 %v790, %v1050
      %v1052 = vmul.f32 %v1044, %v1044
      %v1053 = vmul.f32 %v1045, %v1045
      %v1054 = vadd.f32 %v1052, %v1053
      %1055 = vadd.xlane.f32.xlu0 %v1054
      %v1056 = vpop.xlane.xlu0 %1055
      %v1057 = vadd.f32 %v796, %v1056
      %v1058 = vld [vmem:[%s1] sm:$0xf]
      %v1059 = vld [vmem:[%s702] sm:$0xff]
      %v1060 = vld [vmem:[%s702 + $0x8] sm:$0xff]
      %v1061 = vld [vmem:[%s702 + $0x10] sm:$0xff]
      %v1062 = vld [vmem:[%s702 + $0x18] sm:$0xff]
      %v1063 = vld [vmem:[%s702 + $0x20] sm:$0x33]
      %v1064 = vld [vmem:[%s273] sm:$0xf]
      %v1065 = vld [vmem:[%s963] sm:$0xff]
      %v1066 = vld [vmem:[%s963 + $0x8] sm:$0xff]
      %v1067 = vld [vmem:[%s963 + $0x10] sm:$0xff]
      %v1068 = vld [vmem:[%s963 + $0x18] sm:$0xff]
      %v1069 = vld [vmem:[%s963 + $0x20] sm:$0x33]
      %v1075 = vunpack.c.l.b16 %v1065
      %v1076 = vunpack.c.h.b16 %v1065
      %v1077 = vunpack.c.l.b16 %v1066
      %v1078 = vunpack.c.h.b16 %v1066
      %v1079 = vunpack.c.l.b16 %v1067
      %v1080 = vunpack.c.h.b16 %v1067
      %v1081 = vunpack.c.l.b16 %v1068
      %v1082 = vunpack.c.h.b16 %v1068
      %v1083 = vunpack.c.l.b16 %v1069
      %v1084 = vunpack.c.h.b16 %v1069
      %v1085 = vpack.c.b16 %v1077, %v1075
      %v1086 = vpack.c.b16 %v1078, %v1076
      %v1087 = vpack.c.b16 %v1081, %v1079
      %v1088 = vpack.c.b16 %v1082, %v1080
      %v1089 = vpack.c.b16 %v1083, %v1083
      %v1090 = vpack.c.b16 %v1084, %v1084
      %v1096 = vsel %vm309, %v1064, 0
      %v1099 = vsel %vm313, %v1089, 0
      %v1102 = vsel %vm313, %v1090, 0
      %1104 = vmatprep.subr.bf16.mxu0 %v1086
      %1105 = vmatpush1.bf16.msra.mxu0 %v1085
      %1106 = vmatprep.subr.bf16.mxu0 %v1088
      %1107 = vmatpush1.bf16.msra.mxu0 %v1087
      %1108 = vmatprep.subr.bf16.mxu0 %v1102
      %1109 = vmatpush1.bf16.msra.mxu0 %v1099
      %1110 = vmatprep.subr.bf16.mxu0 0
      %1111 = vmatpush1.bf16.msra.mxu0 0
      %1112 = vmatprep.subr.bf16.mxu0 0
      %1113 = vmatpush1.bf16.msra.mxu0 0
      %1114 = vmatprep.subr.bf16.mxu0 0
      %1115 = vmatpush1.bf16.msra.mxu0 0
      %1116 = vmatprep.subr.bf16.mxu0 0
      %1117 = vmatpush1.bf16.msra.mxu0 0
      %1118 = vmatprep.subr.bf16.mxu0 0
      %1119 = vmatpush1.bf16.msra.mxu0 0
      %1120 = vmatprep.subr.bf16.mxu0 0
      %1121 = vmatpush1.bf16.msra.mxu0 0
      %1122 = vmatprep.subr.bf16.mxu0 0
      %1123 = vmatpush1.bf16.msra.mxu0 0
      %1124 = vmatprep.subr.bf16.mxu0 0
      %1125 = vmatpush1.bf16.msra.mxu0 0
      %1126 = vmatprep.subr.bf16.mxu0 0
      %1127 = vmatpush1.bf16.msra.mxu0 0
      %1128 = vmatprep.subr.bf16.mxu0 0
      %1129 = vmatpush1.bf16.msra.mxu0 0
      %1130 = vmatprep.subr.bf16.mxu0 0
      %1131 = vmatpush1.bf16.msra.mxu0 0
      %1132 = vmatprep.subr.bf16.mxu0 0
      %1133 = vmatpush1.bf16.msra.mxu0 0
      %1134 = vmatprep.subr.bf16.mxu0 0
      %1135 = vmatpush1.bf16.msra.mxu0 0
      %1136 = vmatprep.mubr.bf16.mxu0 0
      %1137 = vmatmul.mubr.bf16.gmra.mrb[0].mxu0 %v1096
      %v1138 = vpop.f32.mrb[0].mxu0
      %v1139 = vadd.f32 0.0, %v1138
      %v1140 = vpop.f32.mrb[0].mxu0
      %v1141 = vadd.f32 0.0, %v1140
      %v1142 = vpop.f32.mrb[0].mxu0
      %v1143 = vpop.f32.mrb[0].mxu0
      %1144 = vdwg.mxu0
      %v1150 = vunpack.c.l.b16 %v1059
      %v1151 = vunpack.c.h.b16 %v1059
      %v1152 = vunpack.c.l.b16 %v1060
      %v1153 = vunpack.c.h.b16 %v1060
      %v1154 = vunpack.c.l.b16 %v1061
      %v1155 = vunpack.c.h.b16 %v1061
      %v1156 = vunpack.c.l.b16 %v1062
      %v1157 = vunpack.c.h.b16 %v1062
      %v1158 = vunpack.c.l.b16 %v1063
      %v1159 = vunpack.c.h.b16 %v1063
      %v1160 = vpack.c.b16 %v1152, %v1150
      %v1161 = vpack.c.b16 %v1153, %v1151
      %v1162 = vpack.c.b16 %v1156, %v1154
      %v1163 = vpack.c.b16 %v1157, %v1155
      %v1164 = vpack.c.b16 %v1158, %v1158
      %v1165 = vpack.c.b16 %v1159, %v1159
      %v1171 = vsel %vm309, %v1058, 0
      %v1174 = vsel %vm313, %v1164, 0
      %v1177 = vsel %vm313, %v1165, 0
      %1179 = vmatprep.subr.bf16.mxu0 %v1161
      %1180 = vmatpush1.bf16.msra.mxu0 %v1160
      %1181 = vmatprep.subr.bf16.mxu0 %v1163
      %1182 = vmatpush1.bf16.msra.mxu0 %v1162
      %1183 = vmatprep.subr.bf16.mxu0 %v1177
      %1184 = vmatpush1.bf16.msra.mxu0 %v1174
      %1185 = vmatprep.subr.bf16.mxu0 0
      %1186 = vmatpush1.bf16.msra.mxu0 0
      %1187 = vmatprep.subr.bf16.mxu0 0
      %1188 = vmatpush1.bf16.msra.mxu0 0
      %1189 = vmatprep.subr.bf16.mxu0 0
      %1190 = vmatpush1.bf16.msra.mxu0 0
      %1191 = vmatprep.subr.bf16.mxu0 0
      %1192 = vmatpush1.bf16.msra.mxu0 0
      %1193 = vmatprep.subr.bf16.mxu0 0
      %1194 = vmatpush1.bf16.msra.mxu0 0
      %1195 = vmatprep.subr.bf16.mxu0 0
      %1196 = vmatpush1.bf16.msra.mxu0 0
      %1197 = vmatprep.subr.bf16.mxu0 0
      %1198 = vmatpush1.bf16.msra.mxu0 0
      %1199 = vmatprep.subr.bf16.mxu0 0
      %1200 = vmatpush1.bf16.msra.mxu0 0
      %1201 = vmatprep.subr.bf16.mxu0 0
      %1202 = vmatpush1.bf16.msra.mxu0 0
      %1203 = vmatprep.subr.bf16.mxu0 0
      %1204 = vmatpush1.bf16.msra.mxu0 0
      %1205 = vmatprep.subr.bf16.mxu0 0
      %1206 = vmatpush1.bf16.msra.mxu0 0
      %1207 = vmatprep.subr.bf16.mxu0 0
      %1208 = vmatpush1.bf16.msra.mxu0 0
      %1209 = vmatprep.subr.bf16.mxu0 0
      %1210 = vmatpush1.bf16.msra.mxu0 0
      %1211 = vmatprep.mubr.bf16.mxu0 0
      %1212 = vmatmul.mubr.bf16.gmra.mrb[0].mxu0 %v1171
      %v1213 = vpop.f32.mrb[0].mxu0
      %v1214 = vadd.f32 %v1139, %v1213
      %v1215 = vpop.f32.mrb[0].mxu0
      %v1216 = vadd.f32 %v1141, %v1215
      %v1217 = vpop.f32.mrb[0].mxu0
      %v1218 = vpop.f32.mrb[0].mxu0
      %1219 = vdwg.mxu0
      %v1220 = vld [vmem:[%s436] sm:$0xf]
      %s1221 = sadd.s32 %s263, 5
      %s1222 = smul.u32 %s1221, 10
      %s1223 = smul.addr %s1222, 4
      %s1224 = scalar_lea.vmem %s235, %s1223
      %v1225 = vld [vmem:[%s1224] sm:$0xff]
      %v1226 = vld [vmem:[%s1224 + $0x8] sm:$0xff]
      %v1227 = vld [vmem:[%s1224 + $0x10] sm:$0xff]
      %v1228 = vld [vmem:[%s1224 + $0x18] sm:$0xff]
      %v1229 = vld [vmem:[%s1224 + $0x20] sm:$0x33]
      %v1235 = vunpack.c.l.b16 %v1225
      %v1236 = vunpack.c.h.b16 %v1225
      %v1237 = vunpack.c.l.b16 %v1226
      %v1238 = vunpack.c.h.b16 %v1226
      %v1239 = vunpack.c.l.b16 %v1227
      %v1240 = vunpack.c.h.b16 %v1227
      %v1241 = vunpack.c.l.b16 %v1228
      %v1242 = vunpack.c.h.b16 %v1228
      %v1243 = vunpack.c.l.b16 %v1229
      %v1244 = vunpack.c.h.b16 %v1229
      %v1245 = vpack.c.b16 %v1237, %v1235
      %v1246 = vpack.c.b16 %v1238, %v1236
      %v1247 = vpack.c.b16 %v1241, %v1239
      %v1248 = vpack.c.b16 %v1242, %v1240
      %v1249 = vpack.c.b16 %v1243, %v1243
      %v1250 = vpack.c.b16 %v1244, %v1244
      %v1256 = vsel %vm309, %v1220, 0
      %v1259 = vsel %vm313, %v1249, 0
      %v1262 = vsel %vm313, %v1250, 0
      %1264 = vmatprep.subr.bf16.mxu0 %v1246
      %1265 = vmatpush1.bf16.msra.mxu0 %v1245
      %1266 = vmatprep.subr.bf16.mxu0 %v1248
      %1267 = vmatpush1.bf16.msra.mxu0 %v1247
      %1268 = vmatprep.subr.bf16.mxu0 %v1262
      %1269 = vmatpush1.bf16.msra.mxu0 %v1259
      %1270 = vmatprep.subr.bf16.mxu0 0
      %1271 = vmatpush1.bf16.msra.mxu0 0
      %1272 = vmatprep.subr.bf16.mxu0 0
      %1273 = vmatpush1.bf16.msra.mxu0 0
      %1274 = vmatprep.subr.bf16.mxu0 0
      %1275 = vmatpush1.bf16.msra.mxu0 0
      %1276 = vmatprep.subr.bf16.mxu0 0
      %1277 = vmatpush1.bf16.msra.mxu0 0
      %1278 = vmatprep.subr.bf16.mxu0 0
      %1279 = vmatpush1.bf16.msra.mxu0 0
      %1280 = vmatprep.subr.bf16.mxu0 0
      %1281 = vmatpush1.bf16.msra.mxu0 0
      %1282 = vmatprep.subr.bf16.mxu0 0
      %1283 = vmatpush1.bf16.msra.mxu0 0
      %1284 = vmatprep.subr.bf16.mxu0 0
      %1285 = vmatpush1.bf16.msra.mxu0 0
      %1286 = vmatprep.subr.bf16.mxu0 0
      %1287 = vmatpush1.bf16.msra.mxu0 0
      %1288 = vmatprep.subr.bf16.mxu0 0
      %1289 = vmatpush1.bf16.msra.mxu0 0
      %1290 = vmatprep.subr.bf16.mxu0 0
      %1291 = vmatpush1.bf16.msra.mxu0 0
      %1292 = vmatprep.subr.bf16.mxu0 0
      %1293 = vmatpush1.bf16.msra.mxu0 0
      %1294 = vmatprep.subr.bf16.mxu0 0
      %1295 = vmatpush1.bf16.msra.mxu0 0
      %1296 = vmatprep.mubr.bf16.mxu0 0
      %1297 = vmatmul.mubr.bf16.gmra.mrb[0].mxu0 %v1256
      %v1298 = vpop.f32.mrb[0].mxu0
      %v1299 = vadd.f32 0.0, %v1298
      %v1300 = vpop.f32.mrb[0].mxu0
      %v1301 = vadd.f32 0.0, %v1300
      %v1302 = vpop.f32.mrb[0].mxu0
      %v1303 = vpop.f32.mrb[0].mxu0
      %1304 = vdwg.mxu0
      %v1305 = vadd.f32 %v1214, %v1299
      %v1306 = vadd.f32 %v1216, %v1301
      %1307 = vst [vmem:[%s244 + $0x30] sm:$0xff] %v1305
      %1308 = vst [vmem:[%s244 + $0x38] sm:$0xff] %v1306
      %v1309 = vadd.f32 %v1305, %v1306
      %1310 = vadd.xlane.f32.xlu0 %v1309
      %v1311 = vpop.xlane.xlu0 %1310
      %v1312 = vadd.f32 %v1051, %v1311
      %v1313 = vmul.f32 %v1305, %v1305
      %v1314 = vmul.f32 %v1306, %v1306
      %v1315 = vadd.f32 %v1313, %v1314
      %1316 = vadd.xlane.f32.xlu0 %v1315
      %v1317 = vpop.xlane.xlu0 %1316
      %v1318 = vadd.f32 %v1057, %v1317
      %v1319 = vld [vmem:[%s1] sm:$0xf]
      %v1320 = vld [vmem:[%s963] sm:$0xff]
      %v1321 = vld [vmem:[%s963 + $0x8] sm:$0xff]
      %v1322 = vld [vmem:[%s963 + $0x10] sm:$0xff]
      %v1323 = vld [vmem:[%s963 + $0x18] sm:$0xff]
      %v1324 = vld [vmem:[%s963 + $0x20] sm:$0x33]
      %v1325 = vld [vmem:[%s273] sm:$0xf]
      %v1326 = vld [vmem:[%s1224] sm:$0xff]
      %v1327 = vld [vmem:[%s1224 + $0x8] sm:$0xff]
      %v1328 = vld [vmem:[%s1224 + $0x10] sm:$0xff]
      %v1329 = vld [vmem:[%s1224 + $0x18] sm:$0xff]
      %v1330 = vld [vmem:[%s1224 + $0x20] sm:$0x33]
      %v1336 = vunpack.c.l.b16 %v1326
      %v1337 = vunpack.c.h.b16 %v1326
      %v1338 = vunpack.c.l.b16 %v1327
      %v1339 = vunpack.c.h.b16 %v1327
      %v1340 = vunpack.c.l.b16 %v1328
      %v1341 = vunpack.c.h.b16 %v1328
      %v1342 = vunpack.c.l.b16 %v1329
      %v1343 = vunpack.c.h.b16 %v1329
      %v1344 = vunpack.c.l.b16 %v1330
      %v1345 = vunpack.c.h.b16 %v1330
      %v1346 = vpack.c.b16 %v1338, %v1336
      %v1347 = vpack.c.b16 %v1339, %v1337
      %v1348 = vpack.c.b16 %v1342, %v1340
      %v1349 = vpack.c.b16 %v1343, %v1341
      %v1350 = vpack.c.b16 %v1344, %v1344
      %v1351 = vpack.c.b16 %v1345, %v1345
      %v1357 = vsel %vm309, %v1325, 0
      %v1360 = vsel %vm313, %v1350, 0
      %v1363 = vsel %vm313, %v1351, 0
      %1365 = vmatprep.subr.bf16.mxu0 %v1347
      %1366 = vmatpush1.bf16.msra.mxu0 %v1346
      %1367 = vmatprep.subr.bf16.mxu0 %v1349
      %1368 = vmatpush1.bf16.msra.mxu0 %v1348
      %1369 = vmatprep.subr.bf16.mxu0 %v1363
      %1370 = vmatpush1.bf16.msra.mxu0 %v1360
      %1371 = vmatprep.subr.bf16.mxu0 0
      %1372 = vmatpush1.bf16.msra.mxu0 0
      %1373 = vmatprep.subr.bf16.mxu0 0
      %1374 = vmatpush1.bf16.msra.mxu0 0
      %1375 = vmatprep.subr.bf16.mxu0 0
      %1376 = vmatpush1.bf16.msra.mxu0 0
      %1377 = vmatprep.subr.bf16.mxu0 0
      %1378 = vmatpush1.bf16.msra.mxu0 0
      %1379 = vmatprep.subr.bf16.mxu0 0
      %1380 = vmatpush1.bf16.msra.mxu0 0
      %1381 = vmatprep.subr.bf16.mxu0 0
      %1382 = vmatpush1.bf16.msra.mxu0 0
      %1383 = vmatprep.subr.bf16.mxu0 0
      %1384 = vmatpush1.bf16.msra.mxu0 0
      %1385 = vmatprep.subr.bf16.mxu0 0
      %1386 = vmatpush1.bf16.msra.mxu0 0
      %1387 = vmatprep.subr.bf16.mxu0 0
      %1388 = vmatpush1.bf16.msra.mxu0 0
      %1389 = vmatprep.subr.bf16.mxu0 0
      %1390 = vmatpush1.bf16.msra.mxu0 0
      %1391 = vmatprep.subr.bf16.mxu0 0
      %1392 = vmatpush1.bf16.msra.mxu0 0
      %1393 = vmatprep.subr.bf16.mxu0 0
      %1394 = vmatpush1.bf16.msra.mxu0 0
      %1395 = vmatprep.subr.bf16.mxu0 0
      %1396 = vmatpush1.bf16.msra.mxu0 0
      %1397 = vmatprep.mubr.bf16.mxu0 0
      %1398 = vmatmul.mubr.bf16.gmra.mrb[0].mxu0 %v1357
      %v1399 = vpop.f32.mrb[0].mxu0
      %v1400 = vadd.f32 0.0, %v1399
      %v1401 = vpop.f32.mrb[0].mxu0
      %v1402 = vadd.f32 0.0, %v1401
      %v1403 = vpop.f32.mrb[0].mxu0
      %v1404 = vpop.f32.mrb[0].mxu0
      %1405 = vdwg.mxu0
      %v1411 = vunpack.c.l.b16 %v1320
      %v1412 = vunpack.c.h.b16 %v1320
      %v1413 = vunpack.c.l.b16 %v1321
      %v1414 = vunpack.c.h.b16 %v1321
      %v1415 = vunpack.c.l.b16 %v1322
      %v1416 = vunpack.c.h.b16 %v1322
      %v1417 = vunpack.c.l.b16 %v1323
      %v1418 = vunpack.c.h.b16 %v1323
      %v1419 = vunpack.c.l.b16 %v1324
      %v1420 = vunpack.c.h.b16 %v1324
      %v1421 = vpack.c.b16 %v1413, %v1411
      %v1422 = vpack.c.b16 %v1414, %v1412
      %v1423 = vpack.c.b16 %v1417, %v1415
      %v1424 = vpack.c.b16 %v1418, %v1416
      %v1425 = vpack.c.b16 %v1419, %v1419
      %v1426 = vpack.c.b16 %v1420, %v1420
      %v1432 = vsel %vm309, %v1319, 0
      %v1435 = vsel %vm313, %v1425, 0
      %v1438 = vsel %vm313, %v1426, 0
      %1440 = vmatprep.subr.bf16.mxu0 %v1422
      %1441 = vmatpush1.bf16.msra.mxu0 %v1421
      %1442 = vmatprep.subr.bf16.mxu0 %v1424
      %1443 = vmatpush1.bf16.msra.mxu0 %v1423
      %1444 = vmatprep.subr.bf16.mxu0 %v1438
      %1445 = vmatpush1.bf16.msra.mxu0 %v1435
      %1446 = vmatprep.subr.bf16.mxu0 0
      %1447 = vmatpush1.bf16.msra.mxu0 0
      %1448 = vmatprep.subr.bf16.mxu0 0
      %1449 = vmatpush1.bf16.msra.mxu0 0
      %1450 = vmatprep.subr.bf16.mxu0 0
      %1451 = vmatpush1.bf16.msra.mxu0 0
      %1452 = vmatprep.subr.bf16.mxu0 0
      %1453 = vmatpush1.bf16.msra.mxu0 0
      %1454 = vmatprep.subr.bf16.mxu0 0
      %1455 = vmatpush1.bf16.msra.mxu0 0
      %1456 = vmatprep.subr.bf16.mxu0 0
      %1457 = vmatpush1.bf16.msra.mxu0 0
      %1458 = vmatprep.subr.bf16.mxu0 0
      %1459 = vmatpush1.bf16.msra.mxu0 0
      %1460 = vmatprep.subr.bf16.mxu0 0
      %1461 = vmatpush1.bf16.msra.mxu0 0
      %1462 = vmatprep.subr.bf16.mxu0 0
      %1463 = vmatpush1.bf16.msra.mxu0 0
      %1464 = vmatprep.subr.bf16.mxu0 0
      %1465 = vmatpush1.bf16.msra.mxu0 0
      %1466 = vmatprep.subr.bf16.mxu0 0
      %1467 = vmatpush1.bf16.msra.mxu0 0
      %1468 = vmatprep.subr.bf16.mxu0 0
      %1469 = vmatpush1.bf16.msra.mxu0 0
      %1470 = vmatprep.subr.bf16.mxu0 0
      %1471 = vmatpush1.bf16.msra.mxu0 0
      %1472 = vmatprep.mubr.bf16.mxu0 0
      %1473 = vmatmul.mubr.bf16.gmra.mrb[0].mxu0 %v1432
      %v1474 = vpop.f32.mrb[0].mxu0
      %v1475 = vadd.f32 %v1400, %v1474
      %v1476 = vpop.f32.mrb[0].mxu0
      %v1477 = vadd.f32 %v1402, %v1476
      %v1478 = vpop.f32.mrb[0].mxu0
      %v1479 = vpop.f32.mrb[0].mxu0
      %1480 = vdwg.mxu0
      %v1481 = vld [vmem:[%s436] sm:$0xf]
      %s1482 = sadd.s32 %s263, 6
      %s1483 = smul.u32 %s1482, 10
      %s1484 = smul.addr %s1483, 4
      %s1485 = scalar_lea.vmem %s235, %s1484
      %v1486 = vld [vmem:[%s1485] sm:$0xff]
      %v1487 = vld [vmem:[%s1485 + $0x8] sm:$0xff]
      %v1488 = vld [vmem:[%s1485 + $0x10] sm:$0xff]
      %v1489 = vld [vmem:[%s1485 + $0x18] sm:$0xff]
      %v1490 = vld [vmem:[%s1485 + $0x20] sm:$0x33]
      %v1496 = vunpack.c.l.b16 %v1486
      %v1497 = vunpack.c.h.b16 %v1486
      %v1498 = vunpack.c.l.b16 %v1487
      %v1499 = vunpack.c.h.b16 %v1487
      %v1500 = vunpack.c.l.b16 %v1488
      %v1501 = vunpack.c.h.b16 %v1488
      %v1502 = vunpack.c.l.b16 %v1489
      %v1503 = vunpack.c.h.b16 %v1489
      %v1504 = vunpack.c.l.b16 %v1490
      %v1505 = vunpack.c.h.b16 %v1490
      %v1506 = vpack.c.b16 %v1498, %v1496
      %v1507 = vpack.c.b16 %v1499, %v1497
      %v1508 = vpack.c.b16 %v1502, %v1500
      %v1509 = vpack.c.b16 %v1503, %v1501
      %v1510 = vpack.c.b16 %v1504, %v1504
      %v1511 = vpack.c.b16 %v1505, %v1505
      %v1517 = vsel %vm309, %v1481, 0
      %v1520 = vsel %vm313, %v1510, 0
      %v1523 = vsel %vm313, %v1511, 0
      %1525 = vmatprep.subr.bf16.mxu0 %v1507
      %1526 = vmatpush1.bf16.msra.mxu0 %v1506
      %1527 = vmatprep.subr.bf16.mxu0 %v1509
      %1528 = vmatpush1.bf16.msra.mxu0 %v1508
      %1529 = vmatprep.subr.bf16.mxu0 %v1523
      %1530 = vmatpush1.bf16.msra.mxu0 %v1520
      %1531 = vmatprep.subr.bf16.mxu0 0
      %1532 = vmatpush1.bf16.msra.mxu0 0
      %1533 = vmatprep.subr.bf16.mxu0 0
      %1534 = vmatpush1.bf16.msra.mxu0 0
      %1535 = vmatprep.subr.bf16.mxu0 0
      %1536 = vmatpush1.bf16.msra.mxu0 0
      %1537 = vmatprep.subr.bf16.mxu0 0
      %1538 = vmatpush1.bf16.msra.mxu0 0
      %1539 = vmatprep.subr.bf16.mxu0 0
      %1540 = vmatpush1.bf16.msra.mxu0 0
      %1541 = vmatprep.subr.bf16.mxu0 0
      %1542 = vmatpush1.bf16.msra.mxu0 0
      %1543 = vmatprep.subr.bf16.mxu0 0
      %1544 = vmatpush1.bf16.msra.mxu0 0
      %1545 = vmatprep.subr.bf16.mxu0 0
      %1546 = vmatpush1.bf16.msra.mxu0 0
      %1547 = vmatprep.subr.bf16.mxu0 0
      %1548 = vmatpush1.bf16.msra.mxu0 0
      %1549 = vmatprep.subr.bf16.mxu0 0
      %1550 = vmatpush1.bf16.msra.mxu0 0
      %1551 = vmatprep.subr.bf16.mxu0 0
      %1552 = vmatpush1.bf16.msra.mxu0 0
      %1553 = vmatprep.subr.bf16.mxu0 0
      %1554 = vmatpush1.bf16.msra.mxu0 0
      %1555 = vmatprep.subr.bf16.mxu0 0
      %1556 = vmatpush1.bf16.msra.mxu0 0
      %1557 = vmatprep.mubr.bf16.mxu0 0
      %1558 = vmatmul.mubr.bf16.gmra.mrb[0].mxu0 %v1517
      %v1559 = vpop.f32.mrb[0].mxu0
      %v1560 = vadd.f32 0.0, %v1559
      %v1561 = vpop.f32.mrb[0].mxu0
      %v1562 = vadd.f32 0.0, %v1561
      %v1563 = vpop.f32.mrb[0].mxu0
      %v1564 = vpop.f32.mrb[0].mxu0
      %1565 = vdwg.mxu0
      %v1566 = vadd.f32 %v1475, %v1560
      %v1567 = vadd.f32 %v1477, %v1562
      %1568 = vst [vmem:[%s244 + $0x40] sm:$0xff] %v1566
      %1569 = vst [vmem:[%s244 + $0x48] sm:$0xff] %v1567
      %v1570 = vadd.f32 %v1566, %v1567
      %1571 = vadd.xlane.f32.xlu0 %v1570
      %v1572 = vpop.xlane.xlu0 %1571
      %v1573 = vadd.f32 %v1312, %v1572
      %v1574 = vmul.f32 %v1566, %v1566
      %v1575 = vmul.f32 %v1567, %v1567
      %v1576 = vadd.f32 %v1574, %v1575
      %1577 = vadd.xlane.f32.xlu0 %v1576
      %v1578 = vpop.xlane.xlu0 %1577
      %v1579 = vadd.f32 %v1318, %v1578
      %v1580 = vld [vmem:[%s1] sm:$0xf]
      %v1581 = vld [vmem:[%s1224] sm:$0xff]
      %v1582 = vld [vmem:[%s1224 + $0x8] sm:$0xff]
      %v1583 = vld [vmem:[%s1224 + $0x10] sm:$0xff]
      %v1584 = vld [vmem:[%s1224 + $0x18] sm:$0xff]
      %v1585 = vld [vmem:[%s1224 + $0x20] sm:$0x33]
      %v1586 = vld [vmem:[%s273] sm:$0xf]
      %v1587 = vld [vmem:[%s1485] sm:$0xff]
      %v1588 = vld [vmem:[%s1485 + $0x8] sm:$0xff]
      %v1589 = vld [vmem:[%s1485 + $0x10] sm:$0xff]
      %v1590 = vld [vmem:[%s1485 + $0x18] sm:$0xff]
      %v1591 = vld [vmem:[%s1485 + $0x20] sm:$0x33]
      %v1597 = vunpack.c.l.b16 %v1587
      %v1598 = vunpack.c.h.b16 %v1587
      %v1599 = vunpack.c.l.b16 %v1588
      %v1600 = vunpack.c.h.b16 %v1588
      %v1601 = vunpack.c.l.b16 %v1589
      %v1602 = vunpack.c.h.b16 %v1589
      %v1603 = vunpack.c.l.b16 %v1590
      %v1604 = vunpack.c.h.b16 %v1590
      %v1605 = vunpack.c.l.b16 %v1591
      %v1606 = vunpack.c.h.b16 %v1591
      %v1607 = vpack.c.b16 %v1599, %v1597
      %v1608 = vpack.c.b16 %v1600, %v1598
      %v1609 = vpack.c.b16 %v1603, %v1601
      %v1610 = vpack.c.b16 %v1604, %v1602
      %v1611 = vpack.c.b16 %v1605, %v1605
      %v1612 = vpack.c.b16 %v1606, %v1606
      %v1618 = vsel %vm309, %v1586, 0
      %v1621 = vsel %vm313, %v1611, 0
      %v1624 = vsel %vm313, %v1612, 0
      %1626 = vmatprep.subr.bf16.mxu0 %v1608
      %1627 = vmatpush1.bf16.msra.mxu0 %v1607
      %1628 = vmatprep.subr.bf16.mxu0 %v1610
      %1629 = vmatpush1.bf16.msra.mxu0 %v1609
      %1630 = vmatprep.subr.bf16.mxu0 %v1624
      %1631 = vmatpush1.bf16.msra.mxu0 %v1621
      %1632 = vmatprep.subr.bf16.mxu0 0
      %1633 = vmatpush1.bf16.msra.mxu0 0
      %1634 = vmatprep.subr.bf16.mxu0 0
      %1635 = vmatpush1.bf16.msra.mxu0 0
      %1636 = vmatprep.subr.bf16.mxu0 0
      %1637 = vmatpush1.bf16.msra.mxu0 0
      %1638 = vmatprep.subr.bf16.mxu0 0
      %1639 = vmatpush1.bf16.msra.mxu0 0
      %1640 = vmatprep.subr.bf16.mxu0 0
      %1641 = vmatpush1.bf16.msra.mxu0 0
      %1642 = vmatprep.subr.bf16.mxu0 0
      %1643 = vmatpush1.bf16.msra.mxu0 0
      %1644 = vmatprep.subr.bf16.mxu0 0
      %1645 = vmatpush1.bf16.msra.mxu0 0
      %1646 = vmatprep.subr.bf16.mxu0 0
      %1647 = vmatpush1.bf16.msra.mxu0 0
      %1648 = vmatprep.subr.bf16.mxu0 0
      %1649 = vmatpush1.bf16.msra.mxu0 0
      %1650 = vmatprep.subr.bf16.mxu0 0
      %1651 = vmatpush1.bf16.msra.mxu0 0
      %1652 = vmatprep.subr.bf16.mxu0 0
      %1653 = vmatpush1.bf16.msra.mxu0 0
      %1654 = vmatprep.subr.bf16.mxu0 0
      %1655 = vmatpush1.bf16.msra.mxu0 0
      %1656 = vmatprep.subr.bf16.mxu0 0
      %1657 = vmatpush1.bf16.msra.mxu0 0
      %1658 = vmatprep.mubr.bf16.mxu0 0
      %1659 = vmatmul.mubr.bf16.gmra.mrb[0].mxu0 %v1618
      %v1660 = vpop.f32.mrb[0].mxu0
      %v1661 = vadd.f32 0.0, %v1660
      %v1662 = vpop.f32.mrb[0].mxu0
      %v1663 = vadd.f32 0.0, %v1662
      %v1664 = vpop.f32.mrb[0].mxu0
      %v1665 = vpop.f32.mrb[0].mxu0
      %1666 = vdwg.mxu0
      %v1672 = vunpack.c.l.b16 %v1581
      %v1673 = vunpack.c.h.b16 %v1581
      %v1674 = vunpack.c.l.b16 %v1582
      %v1675 = vunpack.c.h.b16 %v1582
      %v1676 = vunpack.c.l.b16 %v1583
      %v1677 = vunpack.c.h.b16 %v1583
      %v1678 = vunpack.c.l.b16 %v1584
      %v1679 = vunpack.c.h.b16 %v1584
      %v1680 = vunpack.c.l.b16 %v1585
      %v1681 = vunpack.c.h.b16 %v1585
      %v1682 = vpack.c.b16 %v1674, %v1672
      %v1683 = vpack.c.b16 %v1675, %v1673
      %v1684 = vpack.c.b16 %v1678, %v1676
      %v1685 = vpack.c.b16 %v1679, %v1677
      %v1686 = vpack.c.b16 %v1680, %v1680
      %v1687 = vpack.c.b16 %v1681, %v1681
      %v1693 = vsel %vm309, %v1580, 0
      %v1696 = vsel %vm313, %v1686, 0
      %v1699 = vsel %vm313, %v1687, 0
      %1701 = vmatprep.subr.bf16.mxu0 %v1683
      %1702 = vmatpush1.bf16.msra.mxu0 %v1682
      %1703 = vmatprep.subr.bf16.mxu0 %v1685
      %1704 = vmatpush1.bf16.msra.mxu0 %v1684
      %1705 = vmatprep.subr.bf16.mxu0 %v1699
      %1706 = vmatpush1.bf16.msra.mxu0 %v1696
      %1707 = vmatprep.subr.bf16.mxu0 0
      %1708 = vmatpush1.bf16.msra.mxu0 0
      %1709 = vmatprep.subr.bf16.mxu0 0
      %1710 = vmatpush1.bf16.msra.mxu0 0
      %1711 = vmatprep.subr.bf16.mxu0 0
      %1712 = vmatpush1.bf16.msra.mxu0 0
      %1713 = vmatprep.subr.bf16.mxu0 0
      %1714 = vmatpush1.bf16.msra.mxu0 0
      %1715 = vmatprep.subr.bf16.mxu0 0
      %1716 = vmatpush1.bf16.msra.mxu0 0
      %1717 = vmatprep.subr.bf16.mxu0 0
      %1718 = vmatpush1.bf16.msra.mxu0 0
      %1719 = vmatprep.subr.bf16.mxu0 0
      %1720 = vmatpush1.bf16.msra.mxu0 0
      %1721 = vmatprep.subr.bf16.mxu0 0
      %1722 = vmatpush1.bf16.msra.mxu0 0
      %1723 = vmatprep.subr.bf16.mxu0 0
      %1724 = vmatpush1.bf16.msra.mxu0 0
      %1725 = vmatprep.subr.bf16.mxu0 0
      %1726 = vmatpush1.bf16.msra.mxu0 0
      %1727 = vmatprep.subr.bf16.mxu0 0
      %1728 = vmatpush1.bf16.msra.mxu0 0
      %1729 = vmatprep.subr.bf16.mxu0 0
      %1730 = vmatpush1.bf16.msra.mxu0 0
      %1731 = vmatprep.subr.bf16.mxu0 0
      %1732 = vmatpush1.bf16.msra.mxu0 0
      %1733 = vmatprep.mubr.bf16.mxu0 0
      %1734 = vmatmul.mubr.bf16.gmra.mrb[0].mxu0 %v1693
      %v1735 = vpop.f32.mrb[0].mxu0
      %v1736 = vadd.f32 %v1661, %v1735
      %v1737 = vpop.f32.mrb[0].mxu0
      %v1738 = vadd.f32 %v1663, %v1737
      %v1739 = vpop.f32.mrb[0].mxu0
      %v1740 = vpop.f32.mrb[0].mxu0
      %1741 = vdwg.mxu0
      %v1742 = vld [vmem:[%s436] sm:$0xf]
      %s1743 = sadd.s32 %s263, 7
      %s1744 = smul.u32 %s1743, 10
      %s1745 = smul.addr %s1744, 4
      %s1746 = scalar_lea.vmem %s235, %s1745
      %v1747 = vld [vmem:[%s1746] sm:$0xff]
      %v1748 = vld [vmem:[%s1746 + $0x8] sm:$0xff]
      %v1749 = vld [vmem:[%s1746 + $0x10] sm:$0xff]
      %v1750 = vld [vmem:[%s1746 + $0x18] sm:$0xff]
      %v1751 = vld [vmem:[%s1746 + $0x20] sm:$0x33]
      %v1757 = vunpack.c.l.b16 %v1747
      %v1758 = vunpack.c.h.b16 %v1747
      %v1759 = vunpack.c.l.b16 %v1748
      %v1760 = vunpack.c.h.b16 %v1748
      %v1761 = vunpack.c.l.b16 %v1749
      %v1762 = vunpack.c.h.b16 %v1749
      %v1763 = vunpack.c.l.b16 %v1750
      %v1764 = vunpack.c.h.b16 %v1750
      %v1765 = vunpack.c.l.b16 %v1751
      %v1766 = vunpack.c.h.b16 %v1751
      %v1767 = vpack.c.b16 %v1759, %v1757
      %v1768 = vpack.c.b16 %v1760, %v1758
      %v1769 = vpack.c.b16 %v1763, %v1761
      %v1770 = vpack.c.b16 %v1764, %v1762
      %v1771 = vpack.c.b16 %v1765, %v1765
      %v1772 = vpack.c.b16 %v1766, %v1766
      %v1778 = vsel %vm309, %v1742, 0
      %v1781 = vsel %vm313, %v1771, 0
      %v1784 = vsel %vm313, %v1772, 0
      %1786 = vmatprep.subr.bf16.mxu0 %v1768
      %1787 = vmatpush1.bf16.msra.mxu0 %v1767
      %1788 = vmatprep.subr.bf16.mxu0 %v1770
      %1789 = vmatpush1.bf16.msra.mxu0 %v1769
      %1790 = vmatprep.subr.bf16.mxu0 %v1784
      %1791 = vmatpush1.bf16.msra.mxu0 %v1781
      %1792 = vmatprep.subr.bf16.mxu0 0
      %1793 = vmatpush1.bf16.msra.mxu0 0
      %1794 = vmatprep.subr.bf16.mxu0 0
      %1795 = vmatpush1.bf16.msra.mxu0 0
      %1796 = vmatprep.subr.bf16.mxu0 0
      %1797 = vmatpush1.bf16.msra.mxu0 0
      %1798 = vmatprep.subr.bf16.mxu0 0
      %1799 = vmatpush1.bf16.msra.mxu0 0
      %1800 = vmatprep.subr.bf16.mxu0 0
      %1801 = vmatpush1.bf16.msra.mxu0 0
      %1802 = vmatprep.subr.bf16.mxu0 0
      %1803 = vmatpush1.bf16.msra.mxu0 0
      %1804 = vmatprep.subr.bf16.mxu0 0
      %1805 = vmatpush1.bf16.msra.mxu0 0
      %1806 = vmatprep.subr.bf16.mxu0 0
      %1807 = vmatpush1.bf16.msra.mxu0 0
      %1808 = vmatprep.subr.bf16.mxu0 0
      %1809 = vmatpush1.bf16.msra.mxu0 0
      %1810 = vmatprep.subr.bf16.mxu0 0
      %1811 = vmatpush1.bf16.msra.mxu0 0
      %1812 = vmatprep.subr.bf16.mxu0 0
      %1813 = vmatpush1.bf16.msra.mxu0 0
      %1814 = vmatprep.subr.bf16.mxu0 0
      %1815 = vmatpush1.bf16.msra.mxu0 0
      %1816 = vmatprep.subr.bf16.mxu0 0
      %1817 = vmatpush1.bf16.msra.mxu0 0
      %1818 = vmatprep.mubr.bf16.mxu0 0
      %1819 = vmatmul.mubr.bf16.gmra.mrb[0].mxu0 %v1778
      %v1820 = vpop.f32.mrb[0].mxu0
      %v1821 = vadd.f32 0.0, %v1820
      %v1822 = vpop.f32.mrb[0].mxu0
      %v1823 = vadd.f32 0.0, %v1822
      %v1824 = vpop.f32.mrb[0].mxu0
      %v1825 = vpop.f32.mrb[0].mxu0
      %1826 = vdwg.mxu0
      %v1827 = vadd.f32 %v1736, %v1821
      %v1828 = vadd.f32 %v1738, %v1823
      %1829 = vst [vmem:[%s244 + $0x50] sm:$0xff] %v1827
      %1830 = vst [vmem:[%s244 + $0x58] sm:$0xff] %v1828
      %v1831 = vadd.f32 %v1827, %v1828
      %1832 = vadd.xlane.f32.xlu0 %v1831
      %v1833 = vpop.xlane.xlu0 %1832
      %v1834 = vadd.f32 %v1573, %v1833
      %v1835 = vmul.f32 %v1827, %v1827
      %v1836 = vmul.f32 %v1828, %v1828
      %v1837 = vadd.f32 %v1835, %v1836
      %1838 = vadd.xlane.f32.xlu0 %v1837
      %v1839 = vpop.xlane.xlu0 %1838
      %v1840 = vadd.f32 %v1579, %v1839
      %v1841 = vld [vmem:[%s1] sm:$0xf]
      %v1842 = vld [vmem:[%s1485] sm:$0xff]
      %v1843 = vld [vmem:[%s1485 + $0x8] sm:$0xff]
      %v1844 = vld [vmem:[%s1485 + $0x10] sm:$0xff]
      %v1845 = vld [vmem:[%s1485 + $0x18] sm:$0xff]
      %v1846 = vld [vmem:[%s1485 + $0x20] sm:$0x33]
      %v1847 = vld [vmem:[%s273] sm:$0xf]
      %v1848 = vld [vmem:[%s1746] sm:$0xff]
      %v1849 = vld [vmem:[%s1746 + $0x8] sm:$0xff]
      %v1850 = vld [vmem:[%s1746 + $0x10] sm:$0xff]
      %v1851 = vld [vmem:[%s1746 + $0x18] sm:$0xff]
      %v1852 = vld [vmem:[%s1746 + $0x20] sm:$0x33]
      %v1858 = vunpack.c.l.b16 %v1848
      %v1859 = vunpack.c.h.b16 %v1848
      %v1860 = vunpack.c.l.b16 %v1849
      %v1861 = vunpack.c.h.b16 %v1849
      %v1862 = vunpack.c.l.b16 %v1850
      %v1863 = vunpack.c.h.b16 %v1850
      %v1864 = vunpack.c.l.b16 %v1851
      %v1865 = vunpack.c.h.b16 %v1851
      %v1866 = vunpack.c.l.b16 %v1852
      %v1867 = vunpack.c.h.b16 %v1852
      %v1868 = vpack.c.b16 %v1860, %v1858
      %v1869 = vpack.c.b16 %v1861, %v1859
      %v1870 = vpack.c.b16 %v1864, %v1862
      %v1871 = vpack.c.b16 %v1865, %v1863
      %v1872 = vpack.c.b16 %v1866, %v1866
      %v1873 = vpack.c.b16 %v1867, %v1867
      %v1879 = vsel %vm309, %v1847, 0
      %v1882 = vsel %vm313, %v1872, 0
      %v1885 = vsel %vm313, %v1873, 0
      %1887 = vmatprep.subr.bf16.mxu0 %v1869
      %1888 = vmatpush1.bf16.msra.mxu0 %v1868
      %1889 = vmatprep.subr.bf16.mxu0 %v1871
      %1890 = vmatpush1.bf16.msra.mxu0 %v1870
      %1891 = vmatprep.subr.bf16.mxu0 %v1885
      %1892 = vmatpush1.bf16.msra.mxu0 %v1882
      %1893 = vmatprep.subr.bf16.mxu0 0
      %1894 = vmatpush1.bf16.msra.mxu0 0
      %1895 = vmatprep.subr.bf16.mxu0 0
      %1896 = vmatpush1.bf16.msra.mxu0 0
      %1897 = vmatprep.subr.bf16.mxu0 0
      %1898 = vmatpush1.bf16.msra.mxu0 0
      %1899 = vmatprep.subr.bf16.mxu0 0
      %1900 = vmatpush1.bf16.msra.mxu0 0
      %1901 = vmatprep.subr.bf16.mxu0 0
      %1902 = vmatpush1.bf16.msra.mxu0 0
      %1903 = vmatprep.subr.bf16.mxu0 0
      %1904 = vmatpush1.bf16.msra.mxu0 0
      %1905 = vmatprep.subr.bf16.mxu0 0
      %1906 = vmatpush1.bf16.msra.mxu0 0
      %1907 = vmatprep.subr.bf16.mxu0 0
      %1908 = vmatpush1.bf16.msra.mxu0 0
      %1909 = vmatprep.subr.bf16.mxu0 0
      %1910 = vmatpush1.bf16.msra.mxu0 0
      %1911 = vmatprep.subr.bf16.mxu0 0
      %1912 = vmatpush1.bf16.msra.mxu0 0
      %1913 = vmatprep.subr.bf16.mxu0 0
      %1914 = vmatpush1.bf16.msra.mxu0 0
      %1915 = vmatprep.subr.bf16.mxu0 0
      %1916 = vmatpush1.bf16.msra.mxu0 0
      %1917 = vmatprep.subr.bf16.mxu0 0
      %1918 = vmatpush1.bf16.msra.mxu0 0
      %1919 = vmatprep.mubr.bf16.mxu0 0
      %1920 = vmatmul.mubr.bf16.gmra.mrb[0].mxu0 %v1879
      %v1921 = vpop.f32.mrb[0].mxu0
      %v1922 = vadd.f32 0.0, %v1921
      %v1923 = vpop.f32.mrb[0].mxu0
      %v1924 = vadd.f32 0.0, %v1923
      %v1925 = vpop.f32.mrb[0].mxu0
      %v1926 = vpop.f32.mrb[0].mxu0
      %1927 = vdwg.mxu0
      %v1933 = vunpack.c.l.b16 %v1842
      %v1934 = vunpack.c.h.b16 %v1842
      %v1935 = vunpack.c.l.b16 %v1843
      %v1936 = vunpack.c.h.b16 %v1843
      %v1937 = vunpack.c.l.b16 %v1844
      %v1938 = vunpack.c.h.b16 %v1844
      %v1939 = vunpack.c.l.b16 %v1845
      %v1940 = vunpack.c.h.b16 %v1845
      %v1941 = vunpack.c.l.b16 %v1846
      %v1942 = vunpack.c.h.b16 %v1846
      %v1943 = vpack.c.b16 %v1935, %v1933
      %v1944 = vpack.c.b16 %v1936, %v1934
      %v1945 = vpack.c.b16 %v1939, %v1937
      %v1946 = vpack.c.b16 %v1940, %v1938
      %v1947 = vpack.c.b16 %v1941, %v1941
      %v1948 = vpack.c.b16 %v1942, %v1942
      %v1954 = vsel %vm309, %v1841, 0
      %v1957 = vsel %vm313, %v1947, 0
      %v1960 = vsel %vm313, %v1948, 0
      %1962 = vmatprep.subr.bf16.mxu0 %v1944
      %1963 = vmatpush1.bf16.msra.mxu0 %v1943
      %1964 = vmatprep.subr.bf16.mxu0 %v1946
      %1965 = vmatpush1.bf16.msra.mxu0 %v1945
      %1966 = vmatprep.subr.bf16.mxu0 %v1960
      %1967 = vmatpush1.bf16.msra.mxu0 %v1957
      %1968 = vmatprep.subr.bf16.mxu0 0
      %1969 = vmatpush1.bf16.msra.mxu0 0
      %1970 = vmatprep.subr.bf16.mxu0 0
      %1971 = vmatpush1.bf16.msra.mxu0 0
      %1972 = vmatprep.subr.bf16.mxu0 0
      %1973 = vmatpush1.bf16.msra.mxu0 0
      %1974 = vmatprep.subr.bf16.mxu0 0
      %1975 = vmatpush1.bf16.msra.mxu0 0
      %1976 = vmatprep.subr.bf16.mxu0 0
      %1977 = vmatpush1.bf16.msra.mxu0 0
      %1978 = vmatprep.subr.bf16.mxu0 0
      %1979 = vmatpush1.bf16.msra.mxu0 0
      %1980 = vmatprep.subr.bf16.mxu0 0
      %1981 = vmatpush1.bf16.msra.mxu0 0
      %1982 = vmatprep.subr.bf16.mxu0 0
      %1983 = vmatpush1.bf16.msra.mxu0 0
      %1984 = vmatprep.subr.bf16.mxu0 0
      %1985 = vmatpush1.bf16.msra.mxu0 0
      %1986 = vmatprep.subr.bf16.mxu0 0
      %1987 = vmatpush1.bf16.msra.mxu0 0
      %1988 = vmatprep.subr.bf16.mxu0 0
      %1989 = vmatpush1.bf16.msra.mxu0 0
      %1990 = vmatprep.subr.bf16.mxu0 0
      %1991 = vmatpush1.bf16.msra.mxu0 0
      %1992 = vmatprep.subr.bf16.mxu0 0
      %1993 = vmatpush1.bf16.msra.mxu0 0
      %1994 = vmatprep.mubr.bf16.mxu0 0
      %1995 = vmatmul.mubr.bf16.gmra.mrb[0].mxu0 %v1954
      %v1996 = vpop.f32.mrb[0].mxu0
      %v1997 = vadd.f32 %v1922, %v1996
      %v1998 = vpop.f32.mrb[0].mxu0
      %v1999 = vadd.f32 %v1924, %v1998
      %v2000 = vpop.f32.mrb[0].mxu0
      %v2001 = vpop.f32.mrb[0].mxu0
      %2002 = vdwg.mxu0
      %v2003 = vld [vmem:[%s436] sm:$0xf]
      %s2004 = sadd.s32 %s263, 8
      %s2005 = smul.u32 %s2004, 10
      %s2006 = smul.addr %s2005, 4
      %s2007 = scalar_lea.vmem %s235, %s2006
      %v2008 = vld [vmem:[%s2007] sm:$0xff]
      %v2009 = vld [vmem:[%s2007 + $0x8] sm:$0xff]
      %v2010 = vld [vmem:[%s2007 + $0x10] sm:$0xff]
      %v2011 = vld [vmem:[%s2007 + $0x18] sm:$0xff]
      %v2012 = vld [vmem:[%s2007 + $0x20] sm:$0x33]
      %v2018 = vunpack.c.l.b16 %v2008
      %v2019 = vunpack.c.h.b16 %v2008
      %v2020 = vunpack.c.l.b16 %v2009
      %v2021 = vunpack.c.h.b16 %v2009
      %v2022 = vunpack.c.l.b16 %v2010
      %v2023 = vunpack.c.h.b16 %v2010
      %v2024 = vunpack.c.l.b16 %v2011
      %v2025 = vunpack.c.h.b16 %v2011
      %v2026 = vunpack.c.l.b16 %v2012
      %v2027 = vunpack.c.h.b16 %v2012
      %v2028 = vpack.c.b16 %v2020, %v2018
      %v2029 = vpack.c.b16 %v2021, %v2019
      %v2030 = vpack.c.b16 %v2024, %v2022
      %v2031 = vpack.c.b16 %v2025, %v2023
      %v2032 = vpack.c.b16 %v2026, %v2026
      %v2033 = vpack.c.b16 %v2027, %v2027
      %v2039 = vsel %vm309, %v2003, 0
      %v2042 = vsel %vm313, %v2032, 0
      %v2045 = vsel %vm313, %v2033, 0
      %2047 = vmatprep.subr.bf16.mxu0 %v2029
      %2048 = vmatpush1.bf16.msra.mxu0 %v2028
      %2049 = vmatprep.subr.bf16.mxu0 %v2031
      %2050 = vmatpush1.bf16.msra.mxu0 %v2030
      %2051 = vmatprep.subr.bf16.mxu0 %v2045
      %2052 = vmatpush1.bf16.msra.mxu0 %v2042
      %2053 = vmatprep.subr.bf16.mxu0 0
      %2054 = vmatpush1.bf16.msra.mxu0 0
      %2055 = vmatprep.subr.bf16.mxu0 0
      %2056 = vmatpush1.bf16.msra.mxu0 0
      %2057 = vmatprep.subr.bf16.mxu0 0
      %2058 = vmatpush1.bf16.msra.mxu0 0
      %2059 = vmatprep.subr.bf16.mxu0 0
      %2060 = vmatpush1.bf16.msra.mxu0 0
      %2061 = vmatprep.subr.bf16.mxu0 0
      %2062 = vmatpush1.bf16.msra.mxu0 0
      %2063 = vmatprep.subr.bf16.mxu0 0
      %2064 = vmatpush1.bf16.msra.mxu0 0
      %2065 = vmatprep.subr.bf16.mxu0 0
      %2066 = vmatpush1.bf16.msra.mxu0 0
      %2067 = vmatprep.subr.bf16.mxu0 0
      %2068 = vmatpush1.bf16.msra.mxu0 0
      %2069 = vmatprep.subr.bf16.mxu0 0
      %2070 = vmatpush1.bf16.msra.mxu0 0
      %2071 = vmatprep.subr.bf16.mxu0 0
      %2072 = vmatpush1.bf16.msra.mxu0 0
      %2073 = vmatprep.subr.bf16.mxu0 0
      %2074 = vmatpush1.bf16.msra.mxu0 0
      %2075 = vmatprep.subr.bf16.mxu0 0
      %2076 = vmatpush1.bf16.msra.mxu0 0
      %2077 = vmatprep.subr.bf16.mxu0 0
      %2078 = vmatpush1.bf16.msra.mxu0 0
      %2079 = vmatprep.mubr.bf16.mxu0 0
      %2080 = vmatmul.mubr.bf16.gmra.mrb[0].mxu0 %v2039
      %v2081 = vpop.f32.mrb[0].mxu0
      %v2082 = vadd.f32 0.0, %v2081
      %v2083 = vpop.f32.mrb[0].mxu0
      %v2084 = vadd.f32 0.0, %v2083
      %v2085 = vpop.f32.mrb[0].mxu0
      %v2086 = vpop.f32.mrb[0].mxu0
      %2087 = vdwg.mxu0
      %v2088 = vadd.f32 %v1997, %v2082
      %v2089 = vadd.f32 %v1999, %v2084
      %2090 = vst [vmem:[%s244 + $0x60] sm:$0xff] %v2088
      %2091 = vst [vmem:[%s244 + $0x68] sm:$0xff] %v2089
      %v2092 = vadd.f32 %v2088, %v2089
      %2093 = vadd.xlane.f32.xlu0 %v2092
      %v2094 = vpop.xlane.xlu0 %2093
      %v2095 = vadd.f32 %v1834, %v2094
      %v2096 = vmul.f32 %v2088, %v2088
      %v2097 = vmul.f32 %v2089, %v2089
      %v2098 = vadd.f32 %v2096, %v2097
      %2099 = vadd.xlane.f32.xlu0 %v2098
      %v2100 = vpop.xlane.xlu0 %2099
      %v2101 = vadd.f32 %v1840, %v2100
      %v2102 = vld [vmem:[%s1] sm:$0xf]
      %v2103 = vld [vmem:[%s1746] sm:$0xff]
      %v2104 = vld [vmem:[%s1746 + $0x8] sm:$0xff]
      %v2105 = vld [vmem:[%s1746 + $0x10] sm:$0xff]
      %v2106 = vld [vmem:[%s1746 + $0x18] sm:$0xff]
      %v2107 = vld [vmem:[%s1746 + $0x20] sm:$0x33]
      %v2108 = vld [vmem:[%s273] sm:$0xf]
      %v2109 = vld [vmem:[%s2007] sm:$0xff]
      %v2110 = vld [vmem:[%s2007 + $0x8] sm:$0xff]
      %v2111 = vld [vmem:[%s2007 + $0x10] sm:$0xff]
      %v2112 = vld [vmem:[%s2007 + $0x18] sm:$0xff]
      %v2113 = vld [vmem:[%s2007 + $0x20] sm:$0x33]
      %v2119 = vunpack.c.l.b16 %v2109
      %v2120 = vunpack.c.h.b16 %v2109
      %v2121 = vunpack.c.l.b16 %v2110
      %v2122 = vunpack.c.h.b16 %v2110
      %v2123 = vunpack.c.l.b16 %v2111
      %v2124 = vunpack.c.h.b16 %v2111
      %v2125 = vunpack.c.l.b16 %v2112
      %v2126 = vunpack.c.h.b16 %v2112
      %v2127 = vunpack.c.l.b16 %v2113
      %v2128 = vunpack.c.h.b16 %v2113
      %v2129 = vpack.c.b16 %v2121, %v2119
      %v2130 = vpack.c.b16 %v2122, %v2120
      %v2131 = vpack.c.b16 %v2125, %v2123
      %v2132 = vpack.c.b16 %v2126, %v2124
      %v2133 = vpack.c.b16 %v2127, %v2127
      %v2134 = vpack.c.b16 %v2128, %v2128
      %v2140 = vsel %vm309, %v2108, 0
      %v2143 = vsel %vm313, %v2133, 0
      %v2146 = vsel %vm313, %v2134, 0
      %2148 = vmatprep.subr.bf16.mxu0 %v2130
      %2149 = vmatpush1.bf16.msra.mxu0 %v2129
      %2150 = vmatprep.subr.bf16.mxu0 %v2132
      %2151 = vmatpush1.bf16.msra.mxu0 %v2131
      %2152 = vmatprep.subr.bf16.mxu0 %v2146
      %2153 = vmatpush1.bf16.msra.mxu0 %v2143
      %2154 = vmatprep.subr.bf16.mxu0 0
      %2155 = vmatpush1.bf16.msra.mxu0 0
      %2156 = vmatprep.subr.bf16.mxu0 0
      %2157 = vmatpush1.bf16.msra.mxu0 0
      %2158 = vmatprep.subr.bf16.mxu0 0
      %2159 = vmatpush1.bf16.msra.mxu0 0
      %2160 = vmatprep.subr.bf16.mxu0 0
      %2161 = vmatpush1.bf16.msra.mxu0 0
      %2162 = vmatprep.subr.bf16.mxu0 0
      %2163 = vmatpush1.bf16.msra.mxu0 0
      %2164 = vmatprep.subr.bf16.mxu0 0
      %2165 = vmatpush1.bf16.msra.mxu0 0
      %2166 = vmatprep.subr.bf16.mxu0 0
      %2167 = vmatpush1.bf16.msra.mxu0 0
      %2168 = vmatprep.subr.bf16.mxu0 0
      %2169 = vmatpush1.bf16.msra.mxu0 0
      %2170 = vmatprep.subr.bf16.mxu0 0
      %2171 = vmatpush1.bf16.msra.mxu0 0
      %2172 = vmatprep.subr.bf16.mxu0 0
      %2173 = vmatpush1.bf16.msra.mxu0 0
      %2174 = vmatprep.subr.bf16.mxu0 0
      %2175 = vmatpush1.bf16.msra.mxu0 0
      %2176 = vmatprep.subr.bf16.mxu0 0
      %2177 = vmatpush1.bf16.msra.mxu0 0
      %2178 = vmatprep.subr.bf16.mxu0 0
      %2179 = vmatpush1.bf16.msra.mxu0 0
      %2180 = vmatprep.mubr.bf16.mxu0 0
      %2181 = vmatmul.mubr.bf16.gmra.mrb[0].mxu0 %v2140
      %v2182 = vpop.f32.mrb[0].mxu0
      %v2183 = vadd.f32 0.0, %v2182
      %v2184 = vpop.f32.mrb[0].mxu0
      %v2185 = vadd.f32 0.0, %v2184
      %v2186 = vpop.f32.mrb[0].mxu0
      %v2187 = vpop.f32.mrb[0].mxu0
      %2188 = vdwg.mxu0
      %v2194 = vunpack.c.l.b16 %v2103
      %v2195 = vunpack.c.h.b16 %v2103
      %v2196 = vunpack.c.l.b16 %v2104
      %v2197 = vunpack.c.h.b16 %v2104
      %v2198 = vunpack.c.l.b16 %v2105
      %v2199 = vunpack.c.h.b16 %v2105
      %v2200 = vunpack.c.l.b16 %v2106
      %v2201 = vunpack.c.h.b16 %v2106
      %v2202 = vunpack.c.l.b16 %v2107
      %v2203 = vunpack.c.h.b16 %v2107
      %v2204 = vpack.c.b16 %v2196, %v2194
      %v2205 = vpack.c.b16 %v2197, %v2195
      %v2206 = vpack.c.b16 %v2200, %v2198
      %v2207 = vpack.c.b16 %v2201, %v2199
      %v2208 = vpack.c.b16 %v2202, %v2202
      %v2209 = vpack.c.b16 %v2203, %v2203
      %v2215 = vsel %vm309, %v2102, 0
      %v2218 = vsel %vm313, %v2208, 0
      %v2221 = vsel %vm313, %v2209, 0
      %2223 = vmatprep.subr.bf16.mxu0 %v2205
      %2224 = vmatpush1.bf16.msra.mxu0 %v2204
      %2225 = vmatprep.subr.bf16.mxu0 %v2207
      %2226 = vmatpush1.bf16.msra.mxu0 %v2206
      %2227 = vmatprep.subr.bf16.mxu0 %v2221
      %2228 = vmatpush1.bf16.msra.mxu0 %v2218
      %2229 = vmatprep.subr.bf16.mxu0 0
      %2230 = vmatpush1.bf16.msra.mxu0 0
      %2231 = vmatprep.subr.bf16.mxu0 0
      %2232 = vmatpush1.bf16.msra.mxu0 0
      %2233 = vmatprep.subr.bf16.mxu0 0
      %2234 = vmatpush1.bf16.msra.mxu0 0
      %2235 = vmatprep.subr.bf16.mxu0 0
      %2236 = vmatpush1.bf16.msra.mxu0 0
      %2237 = vmatprep.subr.bf16.mxu0 0
      %2238 = vmatpush1.bf16.msra.mxu0 0
      %2239 = vmatprep.subr.bf16.mxu0 0
      %2240 = vmatpush1.bf16.msra.mxu0 0
      %2241 = vmatprep.subr.bf16.mxu0 0
      %2242 = vmatpush1.bf16.msra.mxu0 0
      %2243 = vmatprep.subr.bf16.mxu0 0
      %2244 = vmatpush1.bf16.msra.mxu0 0
      %2245 = vmatprep.subr.bf16.mxu0 0
      %2246 = vmatpush1.bf16.msra.mxu0 0
      %2247 = vmatprep.subr.bf16.mxu0 0
      %2248 = vmatpush1.bf16.msra.mxu0 0
      %2249 = vmatprep.subr.bf16.mxu0 0
      %2250 = vmatpush1.bf16.msra.mxu0 0
      %2251 = vmatprep.subr.bf16.mxu0 0
      %2252 = vmatpush1.bf16.msra.mxu0 0
      %2253 = vmatprep.subr.bf16.mxu0 0
      %2254 = vmatpush1.bf16.msra.mxu0 0
      %2255 = vmatprep.mubr.bf16.mxu0 0
      %2256 = vmatmul.mubr.bf16.gmra.mrb[0].mxu0 %v2215
      %v2257 = vpop.f32.mrb[0].mxu0
      %v2258 = vadd.f32 %v2183, %v2257
      %v2259 = vpop.f32.mrb[0].mxu0
      %v2260 = vadd.f32 %v2185, %v2259
      %v2261 = vpop.f32.mrb[0].mxu0
      %v2262 = vpop.f32.mrb[0].mxu0
      %2263 = vdwg.mxu0
      %v2264 = vld [vmem:[%s436] sm:$0xf]
      %s2265 = sadd.s32 %s263, 9
      %s2266 = smul.u32 %s2265, 10
      %s2267 = smul.addr %s2266, 4
      %s2268 = scalar_lea.vmem %s235, %s2267
      %v2269 = vld [vmem:[%s2268] sm:$0xff]
      %v2270 = vld [vmem:[%s2268 + $0x8] sm:$0xff]
      %v2271 = vld [vmem:[%s2268 + $0x10] sm:$0xff]
      %v2272 = vld [vmem:[%s2268 + $0x18] sm:$0xff]
      %v2273 = vld [vmem:[%s2268 + $0x20] sm:$0x33]
      %v2279 = vunpack.c.l.b16 %v2269
      %v2280 = vunpack.c.h.b16 %v2269
      %v2281 = vunpack.c.l.b16 %v2270
      %v2282 = vunpack.c.h.b16 %v2270
      %v2283 = vunpack.c.l.b16 %v2271
      %v2284 = vunpack.c.h.b16 %v2271
      %v2285 = vunpack.c.l.b16 %v2272
      %v2286 = vunpack.c.h.b16 %v2272
      %v2287 = vunpack.c.l.b16 %v2273
      %v2288 = vunpack.c.h.b16 %v2273
      %v2289 = vpack.c.b16 %v2281, %v2279
      %v2290 = vpack.c.b16 %v2282, %v2280
      %v2291 = vpack.c.b16 %v2285, %v2283
      %v2292 = vpack.c.b16 %v2286, %v2284
      %v2293 = vpack.c.b16 %v2287, %v2287
      %v2294 = vpack.c.b16 %v2288, %v2288
      %v2300 = vsel %vm309, %v2264, 0
      %v2303 = vsel %vm313, %v2293, 0
      %v2306 = vsel %vm313, %v2294, 0
      %2308 = vmatprep.subr.bf16.mxu0 %v2290
      %2309 = vmatpush1.bf16.msra.mxu0 %v2289
      %2310 = vmatprep.subr.bf16.mxu0 %v2292
      %2311 = vmatpush1.bf16.msra.mxu0 %v2291
      %2312 = vmatprep.subr.bf16.mxu0 %v2306
      %2313 = vmatpush1.bf16.msra.mxu0 %v2303
      %2314 = vmatprep.subr.bf16.mxu0 0
      %2315 = vmatpush1.bf16.msra.mxu0 0
      %2316 = vmatprep.subr.bf16.mxu0 0
      %2317 = vmatpush1.bf16.msra.mxu0 0
      %2318 = vmatprep.subr.bf16.mxu0 0
      %2319 = vmatpush1.bf16.msra.mxu0 0
      %2320 = vmatprep.subr.bf16.mxu0 0
      %2321 = vmatpush1.bf16.msra.mxu0 0
      %2322 = vmatprep.subr.bf16.mxu0 0
      %2323 = vmatpush1.bf16.msra.mxu0 0
      %2324 = vmatprep.subr.bf16.mxu0 0
      %2325 = vmatpush1.bf16.msra.mxu0 0
      %2326 = vmatprep.subr.bf16.mxu0 0
      %2327 = vmatpush1.bf16.msra.mxu0 0
      %2328 = vmatprep.subr.bf16.mxu0 0
      %2329 = vmatpush1.bf16.msra.mxu0 0
      %2330 = vmatprep.subr.bf16.mxu0 0
      %2331 = vmatpush1.bf16.msra.mxu0 0
      %2332 = vmatprep.subr.bf16.mxu0 0
      %2333 = vmatpush1.bf16.msra.mxu0 0
      %2334 = vmatprep.subr.bf16.mxu0 0
      %2335 = vmatpush1.bf16.msra.mxu0 0
      %2336 = vmatprep.subr.bf16.mxu0 0
      %2337 = vmatpush1.bf16.msra.mxu0 0
      %2338 = vmatprep.subr.bf16.mxu0 0
      %2339 = vmatpush1.bf16.msra.mxu0 0
      %2340 = vmatprep.mubr.bf16.mxu0 0
      %2341 = vmatmul.mubr.bf16.gmra.mrb[0].mxu0 %v2300
      %v2342 = vpop.f32.mrb[0].mxu0
      %v2343 = vadd.f32 0.0, %v2342
      %v2344 = vpop.f32.mrb[0].mxu0
      %v2345 = vadd.f32 0.0, %v2344
      %v2346 = vpop.f32.mrb[0].mxu0
      %v2347 = vpop.f32.mrb[0].mxu0
      %2348 = vdwg.mxu0
      %v2349 = vadd.f32 %v2258, %v2343
      %v2350 = vadd.f32 %v2260, %v2345
      %2351 = vst [vmem:[%s244 + $0x70] sm:$0xff] %v2349
      %2352 = vst [vmem:[%s244 + $0x78] sm:$0xff] %v2350
      %v2353 = vadd.f32 %v2349, %v2350
      %2354 = vadd.xlane.f32.xlu0 %v2353
      %v2355 = vpop.xlane.xlu0 %2354
      %v2356 = vadd.f32 %v2095, %v2355
      %v2357 = vmul.f32 %v2349, %v2349
      %v2358 = vmul.f32 %v2350, %v2350
      %v2359 = vadd.f32 %v2357, %v2358
      %2360 = vadd.xlane.f32.xlu0 %v2359
      %v2361 = vpop.xlane.xlu0 %2360
      %v2362 = vadd.f32 %v2101, %v2361
      %vm2363 = vcmask 7168
      %2364 = vst.msk [vmem:[%s253] sm:$0xff] %vm2363, %v2356
      %2365 = vst.msk [vmem:[%s261] sm:$0xff] %vm2363, %v2362
      %s2366 = smul.u32 16, %s21
      %p2367 = scmp.lt.s32.totalorder %s20, 1
      %s2368 = scalar_select %p2367, %s20, 1
      %p2369 = scmp.lt.s32.totalorder %s2366, 31
      %s2370 = scalar_select %p2369, %s2366, 31
      %s2371 = smul.addr %s2368, 32
      %s2372 = sadd.s32 %s2370, %s2371
      %s2373 = smul.addr %s2372, 8
      %s2374 = scalar_lea.vmem %s2, %s2373
      %p2375 = scmp.lt.s32.totalorder %s20, 1
      %s2376 = scalar_select %p2375, %s20, 1
      %p2377 = scmp.lt.s32.totalorder %s21, 1
      %s2378 = scalar_select %p2377, %s21, 1
      %s2379 = smul.addr %s2376, 2
      %s2380 = sadd.s32 %s2378, %s2379
      %s2381 = smul.addr %s2380, 8
      %s2382 = scalar_lea.vmem %s3, %s2381
      %p2383 = scmp.lt.s32.totalorder %s20, 1
      %s2384 = scalar_select %p2383, %s20, 1
      %p2385 = scmp.lt.s32.totalorder %s21, 1
      %s2386 = scalar_select %p2385, %s21, 1
      %s2387 = smul.addr %s2384, 2
      %s2388 = sadd.s32 %s2386, %s2387
      %s2389 = smul.addr %s2388, 8
      %s2390 = scalar_lea.vmem %s4, %s2389
      // Predicated region
      $region29: #{block3d_forward.2} parent=27 // pred_check
        %p2391 = pneg %p95
      $region30: #{block3d_forward.2} parent=27 // pred_check_branch
        %2393 = sbr.rel (%p2391) target = $region32
      $region31: #{block3d_forward.2} parent=27 // pred_region
        %s2394 = smul.u32 16, %s21
      $region32: #{block3d_forward.2} parent=27 // pred_fallthru
        _
      // Predicated region
      $region33: #{block3d_forward.2} parent=27 // pred_check
        %p2395 = pneg %p123
      $region34: #{block3d_forward.2} parent=27 // pred_check_branch
        %2397 = sbr.rel (%p2395) target = $region36
      $region35: #{block3d_forward.2} parent=27 // pred_region
        _
      $region36: #{block3d_forward.2} parent=27 // pred_fallthru
        _
      // Predicated region
      $region37: #{block3d_forward.2} parent=27 // pred_check
        %p2398 = pneg %p151
      $region38: #{block3d_forward.2} parent=27 // pred_check_branch
        %2400 = sbr.rel (%p2398) target = $region40
      $region39: #{block3d_forward.2} parent=27 // pred_region
        _
      $region40: #{block3d_forward.2} parent=27 // pred_fallthru
        _
    $region28: #{block3d_forward.2} parent=5 // pred_fallthru
      _
    %p2401 = scmp.le.s32.totalorder 2, %s11
    // Predicated region
    $region41: #{block3d_forward.2} parent=5 // pred_check
      %p2402 = pneg %p2401
    $region42: #{block3d_forward.2} parent=5 // pred_check_branch
      %2404 = sbr.rel (%p2402) target = $region44
    $region43: #{block3d_forward.2} parent=5 // pred_region
      %s2405 = ssub.s32 %s11, 2
      // Predicated region
      $region45: #{block3d_forward.2} parent=43 // pred_check
        %p2406 = pneg %p101
      $region46: #{block3d_forward.2} parent=43 // pred_check_branch
        %2408 = sbr.rel (%p2406) target = $region48
      $region47: #{block3d_forward.2} parent=43 // pred_region
        %s2409 = smul.u32 16, %s23
        %p2410 = scmp.lt.s32.totalorder %s22, 1
        %s2411 = scalar_select %p2410, %s22, 1
        %p2412 = scmp.lt.s32.totalorder %s2409, 31
        %s2413 = scalar_select %p2412, %s2409, 31
        %s2414 = smul.addr %s2411, 32
        %s2415 = sadd.s32 %s2413, %s2414
        %s2416 = smul.addr %s2415, 8
        %s2417 = scalar_lea.vmem %s2, %s2416
      $region48: #{block3d_forward.2} parent=43 // pred_fallthru
        _
      // Predicated region
      $region49: #{block3d_forward.2} parent=43 // pred_check
        %p2418 = pneg %p129
      $region50: #{block3d_forward.2} parent=43 // pred_check_branch
        %2420 = sbr.rel (%p2418) target = $region52
      $region51: #{block3d_forward.2} parent=43 // pred_region
        %p2421 = scmp.lt.s32.totalorder %s22, 1
        %s2422 = scalar_select %p2421, %s22, 1
        %p2423 = scmp.lt.s32.totalorder %s23, 1
        %s2424 = scalar_select %p2423, %s23, 1
        %s2425 = smul.addr %s2422, 2
        %s2426 = sadd.s32 %s2424, %s2425
        %s2427 = smul.addr %s2426, 8
        %s2428 = scalar_lea.vmem %s3, %s2427
      $region52: #{block3d_forward.2} parent=43 // pred_fallthru
        _
      // Predicated region
      $region53: #{block3d_forward.2} parent=43 // pred_check
        %p2429 = pneg %p157
      $region54: #{block3d_forward.2} parent=43 // pred_check_branch
        %2431 = sbr.rel (%p2429) target = $region56
      $region55: #{block3d_forward.2} parent=43 // pred_region
        %p2432 = scmp.lt.s32.totalorder %s22, 1
        %s2433 = scalar_select %p2432, %s22, 1
        %p2434 = scmp.lt.s32.totalorder %s23, 1
        %s2435 = scalar_select %p2434, %s23, 1
        %s2436 = smul.addr %s2433, 2
        %s2437 = sadd.s32 %s2435, %s2436
        %s2438 = smul.addr %s2437, 8
        %s2439 = scalar_lea.vmem %s4, %s2438
      $region56: #{block3d_forward.2} parent=43 // pred_fallthru
        _
    $region44: #{block3d_forward.2} parent=5 // pred_fallthru
      _
  $region6: #{block3d_forward.2} parent=0 // loop_footer
    %s15 = sadd.s32 1, %s11
  $region7: #{block3d_forward.2} parent=0 // loop_footer_branch
    %10 = sbr.rel target = $region3
  $region8: #{block3d_forward.2} parent=0 // loop_exit
    _

</llo_original>
